<compile_context>
chip_gen: v5e
topology: v5e:2x2
jax: 0.10.0
libtpu: 0.0.40
codegen_flags: <defaults>
</compile_context>

<pallas_src>
import functools

import jax
import jax.numpy as jnp
from jax import lax
from jax.experimental import pallas as pl
from jax.experimental.pallas import tpu as pltpu

_LANE = 128


def _round_up(x, m):
    return (x + m - 1) // m * m


def _default_ew_dtype():
    """bf16 elementwise on v6e/v7x (bf16 VPU/EUP); f32 on v5e and older."""
    try:
        kind = jax.devices()[0].device_kind.lower()
    except Exception:
        return jnp.float32
    for old in ("v2", "v3", "v4", "v5"):
        if old in kind:
            return jnp.float32
    return jnp.bfloat16


def _vmem_capacity_bytes():
    try:
        return int(pltpu.get_tpu_info().vmem_capacity_bytes)
    except Exception:
        return 64 * 1024 * 1024      # conservative (v7x) fallback


# --------------------------------------------------------------------------
# Kernel
# --------------------------------------------------------------------------
def _mlp_kernel(n_layers, res, gelu_approx,
                x_ref, wpre_ref, bpre_ref, wl_ref, bl_ref,
                wpost_ref, bpost_ref, o_ref):
    ew = bpre_ref.dtype        # elementwise dtype (bf16 on v6e/v7x, f32 on v5e)
    cdt = wpre_ref.dtype       # matmul input dtype (bf16)

    def act(z):
        if gelu_approx:
            # tanh-form GELU: transcendental goes to the otherwise-idle EUP slot
            return 0.5 * z * (1.0 + jnp.tanh(
                0.7978845608028654 * (z + 0.044715 * (z * z * z))))
        # exact erf GELU (nn.GELU default) -- long VALU polynomial
        return 0.5 * z * (1.0 + lax.erf(z * 0.7071067811865476))

    def layer(h, w, b):
        z = jnp.dot(h.astype(cdt), w, preferred_element_type=jnp.float32)
        z = act(z.astype(ew) + b)
        return (z + h) if res else z

    # linear_pre + act
    h = jnp.dot(x_ref[...], wpre_ref[...], preferred_element_type=jnp.float32)
    h = act(h.astype(ew) + bpre_ref[...])

    # hidden layers (static unroll for small counts; fori_loop for large ones
    # to bound live ranges / instruction footprint)
    if n_layers > 4:
        h = lax.fori_loop(0, n_layers,
                          lambda i, hh: layer(hh, wl_ref[i], bl_ref[i]),
                          h, unroll=2)
    else:
        for i in range(n_layers):
            h = layer(h, wl_ref[i], bl_ref[i])

    # linear_post (bias kept f32 for output accuracy)
    out = jnp.dot(h.astype(cdt), wpost_ref[...],
                  preferred_element_type=jnp.float32)
    o_ref[...] = (out + bpost_ref[...]).astype(o_ref.dtype)


# --------------------------------------------------------------------------
# One-time parameter preparation (hoisted out of the per-call path)
# --------------------------------------------------------------------------
def prepare_params(params, *, n_layers, compute_dtype=jnp.bfloat16,
                   ew_dtype=None):
    """Pad feature dims to 128 lanes and cast once. Idempotent."""
    if isinstance(params, dict) and params.get("_prepared", False):
        return params
    if ew_dtype is None:
        ew_dtype = _default_ew_dtype()
    cdt = jnp.dtype(compute_dtype)
    ew = jnp.dtype(ew_dtype)
    f32 = jnp.float32

    n_input, hidden = params["w_pre"].shape
    n_output = params["w_post"].shape[1]
    nl = max(n_layers, 1)                       # padded layer-stack size (>=1)

    n_in_p = _round_up(n_input, _LANE)
    hid_p = _round_up(hidden, _LANE)
    n_out_p = _round_up(n_output, _LANE)

    w_pre = jnp.zeros((n_in_p, hid_p), cdt).at[:n_input, :hidden].set(
        params["w_pre"].astype(cdt))
    b_pre = jnp.zeros((1, hid_p), ew).at[:, :hidden].set(
        params["b_pre"].reshape(1, hidden).astype(ew))
    w_lay = jnp.zeros((nl, hid_p, hid_p), cdt)
    b_lay = jnp.zeros((nl, 1, hid_p), ew)
    if n_layers > 0:
        w_lay = w_lay.at[:n_layers, :hidden, :hidden].set(
            params["w_layers"].astype(cdt))
        b_lay = b_lay.at[:n_layers, :, :hidden].set(
            params["b_layers"].reshape(n_layers, 1, hidden).astype(ew))
    w_post = jnp.zeros((hid_p, n_out_p), cdt).at[:hidden, :n_output].set(
        params["w_post"].astype(cdt))
    b_post = jnp.zeros((1, n_out_p), f32).at[:, :n_output].set(
        params["b_post"].reshape(1, n_output).astype(f32))

    return {
        "_prepared": True,
        "n_input": n_input, "hidden": hidden, "n_output": n_output,
        "n_layers": n_layers, "nl": nl,
        "n_in_p": n_in_p, "hid_p": hid_p, "n_out_p": n_out_p,
        "compute_dtype": cdt, "ew_dtype": ew,
        "w_pre": w_pre, "b_pre": b_pre,
        "w_layers": w_lay, "b_layers": b_lay,
        "w_post": w_post, "b_post": b_post,
    }


# --------------------------------------------------------------------------
# Wrapper
# --------------------------------------------------------------------------
def mlp_pallas(x, params, *, n_layers, res=True, tile_m=512,
               gelu_approx=True, compute_dtype=jnp.bfloat16, ew_dtype=None):
    """x: (..., n_input). params: raw dict (see init_params) or prepared dict."""
    prepared = prepare_params(params, n_layers=n_layers,
                              compute_dtype=compute_dtype, ew_dtype=ew_dtype)
    assert prepared["n_layers"] == n_layers

    orig_shape = x.shape
    n_input = prepared["n_input"]
    assert orig_shape[-1] == n_input
    x2 = x.reshape(-1, n_input) if x.ndim != 2 else x
    N = x2.shape[0]

    n_output = prepared["n_output"]
    nl = prepared["nl"]
    n_in_p, hid_p, n_out_p = (prepared["n_in_p"], prepared["hid_p"],
                              prepared["n_out_p"])
    cdt, ew = prepared["compute_dtype"], prepared["ew_dtype"]
    out_dtype = x.dtype

    # ---- VMEM budget (generation-aware) ----
    vmem_cap = _vmem_capacity_bytes()
    budget_frac = 0.75 if vmem_cap >= 100 * 1024 * 1024 else 0.55
    budget = int(vmem_cap * budget_frac)

    w_itm, ew_itm = cdt.itemsize, ew.itemsize
    out_itm = jnp.dtype(out_dtype).itemsize
    weight_bytes = ((n_in_p * hid_p + nl * hid_p * hid_p + hid_p * n_out_p)
                    * w_itm + (hid_p + nl * hid_p) * ew_itm + n_out_p * 4)

    def vmem_estimate(tm_, weight_bufs):
        act_io = 2 * tm_ * n_in_p * w_itm + 2 * tm_ * n_out_p * out_itm
        live = tm_ * hid_p * (2 * 4 + 2 * ew_itm)   # f32 acc/temps + h/z in ew
        return act_io + live + weight_bufs * weight_bytes

    # TODO(synk): layer-streaming fallback (second 'arbitrary' grid axis over
    # n_layers with the activation carried in VMEM scratch) for configs where
    # the full weight stack alone exceeds the VMEM budget (mostly v7x, 64 MiB).

    def choose_tiling(weight_bufs):
        steps = max(1, pl.cdiv(N, max(8, tile_m)))
        if N >= 16:
            steps = max(steps, 2)          # feed both v7x TensorCores
        if steps > 1 and steps % 2:
            steps += 1                     # even step count splits cleanly
        while True:
            tm = max(8, _round_up(pl.cdiv(N, steps), 8))
            if vmem_estimate(tm, weight_bufs) <= budget or tm <= 128:
                return steps, tm
            steps += 2 if steps > 1 else 1
            if steps > 1 and steps % 2:
                steps += 1

    kernel = functools.partial(_mlp_kernel, n_layers, res, gelu_approx)
    w_args = (prepared["w_pre"], prepared["b_pre"], prepared["w_layers"],
              prepared["b_layers"], prepared["w_post"], prepared["b_post"])

    def run(weight_bufs):
        steps, tm = choose_tiling(weight_bufs)
        n_rows = steps * tm
        if n_rows == N and n_in_p == n_input and x2.dtype == cdt:
            xp = x2                        # skip the padding copy entirely
        else:
            xp = jnp.zeros((n_rows, n_in_p), cdt).at[:N, :n_input].set(
                x2.astype(cdt))

        wmode = pl.Buffered(1) if weight_bufs == 1 else None

        def wspec(shape, idx):
            if wmode is None:
                return pl.BlockSpec(shape, idx)
            return pl.BlockSpec(shape, idx, pipeline_mode=wmode)

        vmem_limit = min(int(vmem_cap * 0.9),
                         max(48 * 1024 * 1024,
                             int(1.5 * vmem_estimate(tm, 2))))

        call = pl.pallas_call(
            kernel,
            out_shape=jax.ShapeDtypeStruct((n_rows, n_out_p), out_dtype),
            grid_spec=pltpu.PrefetchScalarGridSpec(
                num_scalar_prefetch=0,
                grid=(steps,),
                in_specs=[
                    # x tile: rows tiled across the grid, features lane-dense.
                    pl.BlockSpec((tm, n_in_p), lambda i: (i, 0)),
                    # weights/biases: VMEM-resident, constant block index.
                    wspec((n_in_p, hid_p), lambda i: (0, 0)),
                    wspec((1, hid_p), lambda i: (0, 0)),
                    wspec((nl, hid_p, hid_p), lambda i: (0, 0, 0)),
                    wspec((nl, 1, hid_p), lambda i: (0, 0, 0)),
                    wspec((hid_p, n_out_p), lambda i: (0, 0)),
                    wspec((1, n_out_p), lambda i: (0, 0)),
                ],
                out_specs=pl.BlockSpec((tm, n_out_p), lambda i: (i, 0)),
            ),
            compiler_params=pltpu.CompilerParams(
                dimension_semantics=("parallel",),
                vmem_limit_bytes=vmem_limit),
        )
        return call(xp, *w_args), n_rows

    try:
        # Single-buffered resident weights (block index never changes); the
        # row tile is sized against the 1x weight footprint.
        out_p, n_rows = run(1)
    except Exception:
        # Fallback for JAX versions rejecting Buffered(1): re-tile against a
        # 2x (double-buffered) weight footprint and rebuild.
        out_p, n_rows = run(2)

    if n_rows != N or n_out_p != n_output:
        out_p = out_p[:N, :n_output]
    return out_p.reshape(orig_shape[:-1] + (n_output,))


# --------------------------------------------------------------------------
# Synthetic params + pure-JAX reference
# --------------------------------------------------------------------------
def init_params(key, n_input, hidden_size, n_output, n_layers):
    """Deterministic synthetic parameters (shapes match the PyTorch module)."""
    ks = jax.random.split(key, 6)
    scale_pre = 1.0 / jnp.sqrt(n_input)
    scale_h = 1.0 / jnp.sqrt(hidden_size)
    return {
        # Stored as (in, out) so the kernel does x @ W (PyTorch stores (out, in)).
        "w_pre": jax.random.uniform(ks[0], (n_input, hidden_size),
                                    jnp.float32, -scale_pre, scale_pre),
        "b_pre": jax.random.uniform(ks[1], (1, hidden_size),
                                    jnp.float32, -scale_pre, scale_pre),
        "w_layers": jax.random.uniform(ks[2], (n_layers, hidden_size, hidden_size),
                                       jnp.float32, -scale_h, scale_h),
        "b_layers": jax.random.uniform(ks[3], (n_layers, 1, hidden_size),
                                       jnp.float32, -scale_h, scale_h),
        "w_post": jax.random.uniform(ks[4], (hidden_size, n_output),
                                     jnp.float32, -scale_h, scale_h),
        "b_post": jax.random.uniform(ks[5], (1, n_output),
                                     jnp.float32, -scale_h, scale_h),
    }


def mlp_reference(x, params, *, n_layers, res=True):
    """Pure-JAX f32 reference matching the PyTorch forward (exact-erf GELU)."""
    h = jax.nn.gelu(x @ params["w_pre"] + params["b_pre"], approximate=False)
    for i in range(n_layers):
        z = jax.nn.gelu(h @ params["w_layers"][i] + params["b_layers"][i],
                        approximate=False)
        h = z + h if res else z
    return h @ params["w_post"] + params["b_post"]


if __name__ == "__main__":
    # Small shapes consistent with the module: N tokens with n_input features.
    N = 256
    n_input, hidden_size, n_output, n_layers = 32, 64, 16, 2

    key = jax.random.PRNGKey(0)
    kx, kp = jax.random.split(key)
    x = jax.random.normal(kx, (N, n_input), jnp.float32)
    params = init_params(kp, n_input, hidden_size, n_output, n_layers)

    # One-time weight prep (pad to lane multiples + cast), hoisted out of the
    # per-call path so repeated forwards don't re-stream weights through XLA.
    prepared = prepare_params(params, n_layers=n_layers)

    out = mlp_pallas(x, prepared, n_layers=n_layers, res=True)
    out = jax.block_until_ready(out)

    ref = mlp_reference(x, params, n_layers=n_layers, res=True)
    assert out.shape == (N, n_output)
    # bf16 MXU inputs / elementwise with f32 accumulation + tanh GELU ->
    # loosened tolerance vs the f32 erf reference.
    err = float(jnp.max(jnp.abs(out - ref)))
    assert jnp.allclose(out, ref, atol=5e-2, rtol=5e-2), (
        f"mismatch vs reference: max abs err {err:.3e}")

    print("KERNEL_OK")
</pallas_src>

<mosaic_0001>
module attributes {stable_mosaic.version = 11 : i64} {
  func.func @_mlp_kernel(%arg0: i32, %arg1: memref<128x128xbf16, #tpu.memory_space<vmem>>, %arg2: memref<128x128xbf16, #tpu.memory_space<vmem>>, %arg3: memref<1x128xbf16, #tpu.memory_space<vmem>>, %arg4: memref<2x128x128xbf16, #tpu.memory_space<vmem>>, %arg5: memref<2x1x128xbf16, #tpu.memory_space<vmem>>, %arg6: memref<128x128xbf16, #tpu.memory_space<vmem>>, %arg7: memref<1x128xf32, #tpu.memory_space<vmem>>, %arg8: memref<128x128xf32, #tpu.memory_space<vmem>>) attributes {dimension_semantics = [#tpu.dimension_semantics<parallel>], iteration_bounds = array<i64: 2>, scalar_prefetch = 0 : i64, scratch_operands = 0 : i64, tpu.core_type = #tpu.core_type<tc>, window_params = [{transform_indices = @transform_0, window_bounds = array<i64: 128, 128>}, {pipeline_mode = #tpu.pipeline_mode<synchronous>, transform_indices = @transform_1, window_bounds = array<i64: 128, 128>}, {pipeline_mode = #tpu.pipeline_mode<synchronous>, transform_indices = @transform_2, window_bounds = array<i64: 1, 128>}, {pipeline_mode = #tpu.pipeline_mode<synchronous>, transform_indices = @transform_3, window_bounds = array<i64: 2, 128, 128>}, {pipeline_mode = #tpu.pipeline_mode<synchronous>, transform_indices = @transform_4, window_bounds = array<i64: 2, 1, 128>}, {pipeline_mode = #tpu.pipeline_mode<synchronous>, transform_indices = @transform_5, window_bounds = array<i64: 128, 128>}, {pipeline_mode = #tpu.pipeline_mode<synchronous>, transform_indices = @transform_6, window_bounds = array<i64: 1, 128>}, {transform_indices = @transform_7, window_bounds = array<i64: 128, 128>}]} {
    %c0 = arith.constant 0 : index
    %c0_0 = arith.constant 0 : index
    %0 = vector.load %arg1[%c0, %c0_0] : memref<128x128xbf16, #tpu.memory_space<vmem>>, vector<128x128xbf16>
    %c0_1 = arith.constant 0 : index
    %c0_2 = arith.constant 0 : index
    %1 = vector.load %arg2[%c0_1, %c0_2] : memref<128x128xbf16, #tpu.memory_space<vmem>>, vector<128x128xbf16>
    %cst = arith.constant dense<0.000000e+00> : vector<128x128xf32>
    %2 = tpu.matmul %0, %1, %cst {dimension_numbers = #tpu.dot_dimension_numbers<[1], [0], [0], [1], [0, 0, 1, 1], [], []>} : vector<128x128xbf16>, vector<128x128xbf16>, vector<128x128xf32> -> vector<128x128xf32>
    %3 = arith.truncf %2 : vector<128x128xf32> to vector<128x128xbf16>
    %c0_3 = arith.constant 0 : index
    %c0_4 = arith.constant 0 : index
    %4 = vector.load %arg3[%c0_3, %c0_4] : memref<1x128xbf16, #tpu.memory_space<vmem>>, vector<1x128xbf16>
    %5 = vector.broadcast %4 : vector<1x128xbf16> to vector<128x128xbf16>
    %6 = arith.addf %3, %5 : vector<128x128xbf16>
    %cst_5 = arith.constant 5.000000e-01 : bf16
    %7 = vector.broadcast %cst_5 : bf16 to vector<128x128xbf16>
    %8 = arith.mulf %7, %6 : vector<128x128xbf16>
    %9 = arith.mulf %6, %6 : vector<128x128xbf16>
    %10 = arith.mulf %9, %6 : vector<128x128xbf16>
    %cst_6 = arith.constant 4.467770e-02 : bf16
    %11 = vector.broadcast %cst_6 : bf16 to vector<128x128xbf16>
    %12 = arith.mulf %11, %10 : vector<128x128xbf16>
    %13 = arith.addf %6, %12 : vector<128x128xbf16>
    %cst_7 = arith.constant 7.968750e-01 : bf16
    %14 = vector.broadcast %cst_7 : bf16 to vector<128x128xbf16>
    %15 = arith.mulf %14, %13 : vector<128x128xbf16>
    %16 = math.tanh %15 : vector<128x128xbf16>
    %cst_8 = arith.constant 1.000000e+00 : bf16
    %17 = vector.broadcast %cst_8 : bf16 to vector<128x128xbf16>
    %18 = arith.addf %17, %16 : vector<128x128xbf16>
    %19 = arith.mulf %8, %18 : vector<128x128xbf16>
    %c0_9 = arith.constant 0 : index
    %c0_10 = arith.constant 0 : index
    %c0_11 = arith.constant 0 : index
    %20 = vector.load %arg4[%c0_9, %c0_10, %c0_11] : memref<2x128x128xbf16, #tpu.memory_space<vmem>>, vector<1x128x128xbf16>
    %21 = vector.shape_cast %20 : vector<1x128x128xbf16> to vector<128x128xbf16>
    %c0_12 = arith.constant 0 : index
    %c0_13 = arith.constant 0 : index
    %c0_14 = arith.constant 0 : index
    %22 = vector.load %arg5[%c0_12, %c0_13, %c0_14] : memref<2x1x128xbf16, #tpu.memory_space<vmem>>, vector<1x1x128xbf16>
    %23 = vector.shape_cast %22 : vector<1x1x128xbf16> to vector<1x128xbf16>
    %cst_15 = arith.constant dense<0.000000e+00> : vector<128x128xf32>
    %24 = tpu.matmul %19, %21, %cst_15 {dimension_numbers = #tpu.dot_dimension_numbers<[1], [0], [0], [1], [0, 0, 1, 1], [], []>} : vector<128x128xbf16>, vector<128x128xbf16>, vector<128x128xf32> -> vector<128x128xf32>
    %25 = arith.truncf %24 : vector<128x128xf32> to vector<128x128xbf16>
    %26 = vector.broadcast %23 : vector<1x128xbf16> to vector<128x128xbf16>
    %27 = arith.addf %25, %26 : vector<128x128xbf16>
    %cst_16 = arith.constant 5.000000e-01 : bf16
    %28 = vector.broadcast %cst_16 : bf16 to vector<128x128xbf16>
    %29 = arith.mulf %28, %27 : vector<128x128xbf16>
    %30 = arith.mulf %27, %27 : vector<128x128xbf16>
    %31 = arith.mulf %30, %27 : vector<128x128xbf16>
    %cst_17 = arith.constant 4.467770e-02 : bf16
    %32 = vector.broadcast %cst_17 : bf16 to vector<128x128xbf16>
    %33 = arith.mulf %32, %31 : vector<128x128xbf16>
    %34 = arith.addf %27, %33 : vector<128x128xbf16>
    %cst_18 = arith.constant 7.968750e-01 : bf16
    %35 = vector.broadcast %cst_18 : bf16 to vector<128x128xbf16>
    %36 = arith.mulf %35, %34 : vector<128x128xbf16>
    %37 = math.tanh %36 : vector<128x128xbf16>
    %cst_19 = arith.constant 1.000000e+00 : bf16
    %38 = vector.broadcast %cst_19 : bf16 to vector<128x128xbf16>
    %39 = arith.addf %38, %37 : vector<128x128xbf16>
    %40 = arith.mulf %29, %39 : vector<128x128xbf16>
    %41 = arith.addf %40, %19 : vector<128x128xbf16>
    %c1 = arith.constant 1 : index
    %c0_20 = arith.constant 0 : index
    %c0_21 = arith.constant 0 : index
    %42 = vector.load %arg4[%c1, %c0_20, %c0_21] : memref<2x128x128xbf16, #tpu.memory_space<vmem>>, vector<1x128x128xbf16>
    %43 = vector.shape_cast %42 : vector<1x128x128xbf16> to vector<128x128xbf16>
    %c1_22 = arith.constant 1 : index
    %c0_23 = arith.constant 0 : index
    %c0_24 = arith.constant 0 : index
    %44 = vector.load %arg5[%c1_22, %c0_23, %c0_24] : memref<2x1x128xbf16, #tpu.memory_space<vmem>>, vector<1x1x128xbf16>
    %45 = vector.shape_cast %44 : vector<1x1x128xbf16> to vector<1x128xbf16>
    %cst_25 = arith.constant dense<0.000000e+00> : vector<128x128xf32>
    %46 = tpu.matmul %41, %43, %cst_25 {dimension_numbers = #tpu.dot_dimension_numbers<[1], [0], [0], [1], [0, 0, 1, 1], [], []>} : vector<128x128xbf16>, vector<128x128xbf16>, vector<128x128xf32> -> vector<128x128xf32>
    %47 = arith.truncf %46 : vector<128x128xf32> to vector<128x128xbf16>
    %48 = vector.broadcast %45 : vector<1x128xbf16> to vector<128x128xbf16>
    %49 = arith.addf %47, %48 : vector<128x128xbf16>
    %cst_26 = arith.constant 5.000000e-01 : bf16
    %50 = vector.broadcast %cst_26 : bf16 to vector<128x128xbf16>
    %51 = arith.mulf %50, %49 : vector<128x128xbf16>
    %52 = arith.mulf %49, %49 : vector<128x128xbf16>
    %53 = arith.mulf %52, %49 : vector<128x128xbf16>
    %cst_27 = arith.constant 4.467770e-02 : bf16
    %54 = vector.broadcast %cst_27 : bf16 to vector<128x128xbf16>
    %55 = arith.mulf %54, %53 : vector<128x128xbf16>
    %56 = arith.addf %49, %55 : vector<128x128xbf16>
    %cst_28 = arith.constant 7.968750e-01 : bf16
    %57 = vector.broadcast %cst_28 : bf16 to vector<128x128xbf16>
    %58 = arith.mulf %57, %56 : vector<128x128xbf16>
    %59 = math.tanh %58 : vector<128x128xbf16>
    %cst_29 = arith.constant 1.000000e+00 : bf16
    %60 = vector.broadcast %cst_29 : bf16 to vector<128x128xbf16>
    %61 = arith.addf %60, %59 : vector<128x128xbf16>
    %62 = arith.mulf %51, %61 : vector<128x128xbf16>
    %63 = arith.addf %62, %41 : vector<128x128xbf16>
    %c0_30 = arith.constant 0 : index
    %c0_31 = arith.constant 0 : index
    %64 = vector.load %arg6[%c0_30, %c0_31] : memref<128x128xbf16, #tpu.memory_space<vmem>>, vector<128x128xbf16>
    %cst_32 = arith.constant dense<0.000000e+00> : vector<128x128xf32>
    %65 = tpu.matmul %63, %64, %cst_32 {dimension_numbers = #tpu.dot_dimension_numbers<[1], [0], [0], [1], [0, 0, 1, 1], [], []>} : vector<128x128xbf16>, vector<128x128xbf16>, vector<128x128xf32> -> vector<128x128xf32>
    %c0_33 = arith.constant 0 : index
    %c0_34 = arith.constant 0 : index
    %66 = vector.load %arg7[%c0_33, %c0_34] : memref<1x128xf32, #tpu.memory_space<vmem>>, vector<1x128xf32>
    %67 = vector.broadcast %66 : vector<1x128xf32> to vector<128x128xf32>
    %68 = arith.addf %65, %67 : vector<128x128xf32>
    %c0_35 = arith.constant 0 : index
    %c0_36 = arith.constant 0 : index
    %69 = vector.load %arg8[%c0_35, %c0_36] : memref<128x128xf32, #tpu.memory_space<vmem>>, vector<128x128xf32>
    tpu.vector_store %arg8[%c0_35, %c0_36], %68 {strides = array<i32>} : memref<128x128xf32, #tpu.memory_space<vmem>>, vector<128x128xf32>,
    return
  }
  func.func @transform_0(%arg0: i32) -> (i32, i32) {
    %c0_i32 = arith.constant 0 : i32
    %c0_i32_0 = arith.constant 0 : i32
    return %arg0, %c0_i32 : i32, i32
  }
  func.func @transform_1(%arg0: i32) -> (i32, i32) {
    %c0_i32 = arith.constant 0 : i32
    %c0_i32_0 = arith.constant 0 : i32
    %c0_i32_1 = arith.constant 0 : i32
    return %c0_i32, %c0_i32_0 : i32, i32
  }
  func.func @transform_2(%arg0: i32) -> (i32, i32) {
    %c0_i32 = arith.constant 0 : i32
    %c0_i32_0 = arith.constant 0 : i32
    %c0_i32_1 = arith.constant 0 : i32
    return %c0_i32, %c0_i32_0 : i32, i32
  }
  func.func @transform_3(%arg0: i32) -> (i32, i32, i32) {
    %c0_i32 = arith.constant 0 : i32
    %c0_i32_0 = arith.constant 0 : i32
    %c0_i32_1 = arith.constant 0 : i32
    %c0_i32_2 = arith.constant 0 : i32
    return %c0_i32, %c0_i32_0, %c0_i32_1 : i32, i32, i32
  }
  func.func @transform_4(%arg0: i32) -> (i32, i32, i32) {
    %c0_i32 = arith.constant 0 : i32
    %c0_i32_0 = arith.constant 0 : i32
    %c0_i32_1 = arith.constant 0 : i32
    %c0_i32_2 = arith.constant 0 : i32
    return %c0_i32, %c0_i32_0, %c0_i32_1 : i32, i32, i32
  }
  func.func @transform_5(%arg0: i32) -> (i32, i32) {
    %c0_i32 = arith.constant 0 : i32
    %c0_i32_0 = arith.constant 0 : i32
    %c0_i32_1 = arith.constant 0 : i32
    return %c0_i32, %c0_i32_0 : i32, i32
  }
  func.func @transform_6(%arg0: i32) -> (i32, i32) {
    %c0_i32 = arith.constant 0 : i32
    %c0_i32_0 = arith.constant 0 : i32
    %c0_i32_1 = arith.constant 0 : i32
    return %c0_i32, %c0_i32_0 : i32, i32
  }
  func.func @transform_7(%arg0: i32) -> (i32, i32) {
    %c0_i32 = arith.constant 0 : i32
    %c0_i32_0 = arith.constant 0 : i32
    return %arg0, %c0_i32 : i32, i32
  }
}

module attributes {stable_mosaic.version = 11 : i64} {
  func.func @_mlp_kernel(%arg0: i32, %arg1: memref<128x128xbf16, #tpu.memory_space<vmem>>, %arg2: memref<128x128xbf16, #tpu.memory_space<vmem>>, %arg3: memref<1x128xbf16, #tpu.memory_space<vmem>>, %arg4: memref<2x128x128xbf16, #tpu.memory_space<vmem>>, %arg5: memref<2x1x128xbf16, #tpu.memory_space<vmem>>, %arg6: memref<128x128xbf16, #tpu.memory_space<vmem>>, %arg7: memref<1x128xf32, #tpu.memory_space<vmem>>, %arg8: memref<128x128xf32, #tpu.memory_space<vmem>>) attributes {dimension_semantics = [#tpu.dimension_semantics<parallel>], iteration_bounds = array<i64: 2>, scalar_prefetch = 0 : i64, scratch_operands = 0 : i64, tpu.core_type = #tpu.core_type<tc>, window_params = [{transform_indices = @transform_0, window_bounds = array<i64: 128, 128>}, {pipeline_mode = #tpu.pipeline_mode<synchronous>, transform_indices = @transform_1, window_bounds = array<i64: 128, 128>}, {pipeline_mode = #tpu.pipeline_mode<synchronous>, transform_indices = @transform_2, window_bounds = array<i64: 1, 128>}, {pipeline_mode = #tpu.pipeline_mode<synchronous>, transform_indices = @transform_3, window_bounds = array<i64: 2, 128, 128>}, {pipeline_mode = #tpu.pipeline_mode<synchronous>, transform_indices = @transform_4, window_bounds = array<i64: 2, 1, 128>}, {pipeline_mode = #tpu.pipeline_mode<synchronous>, transform_indices = @transform_5, window_bounds = array<i64: 128, 128>}, {pipeline_mode = #tpu.pipeline_mode<synchronous>, transform_indices = @transform_6, window_bounds = array<i64: 1, 128>}, {transform_indices = @transform_7, window_bounds = array<i64: 128, 128>}]} {
    %c0 = arith.constant 0 : index
    %c0_0 = arith.constant 0 : index
    %0 = vector.load %arg1[%c0, %c0_0] : memref<128x128xbf16, #tpu.memory_space<vmem>>, vector<128x128xbf16>
    %c0_1 = arith.constant 0 : index
    %c0_2 = arith.constant 0 : index
    %1 = vector.load %arg2[%c0_1, %c0_2] : memref<128x128xbf16, #tpu.memory_space<vmem>>, vector<128x128xbf16>
    %cst = arith.constant dense<0.000000e+00> : vector<128x128xf32>
    %2 = tpu.matmul %0, %1, %cst {dimension_numbers = #tpu.dot_dimension_numbers<[1], [0], [0], [1], [0, 0, 1, 1], [], []>} : vector<128x128xbf16>, vector<128x128xbf16>, vector<128x128xf32> -> vector<128x128xf32>
    %3 = arith.truncf %2 : vector<128x128xf32> to vector<128x128xbf16>
    %c0_3 = arith.constant 0 : index
    %c0_4 = arith.constant 0 : index
    %4 = vector.load %arg3[%c0_3, %c0_4] : memref<1x128xbf16, #tpu.memory_space<vmem>>, vector<1x128xbf16>
    %5 = vector.broadcast %4 : vector<1x128xbf16> to vector<128x128xbf16>
    %6 = arith.addf %3, %5 : vector<128x128xbf16>
    %cst_5 = arith.constant 5.000000e-01 : bf16
    %7 = vector.broadcast %cst_5 : bf16 to vector<128x128xbf16>
    %8 = arith.mulf %7, %6 : vector<128x128xbf16>
    %9 = arith.mulf %6, %6 : vector<128x128xbf16>
    %10 = arith.mulf %9, %6 : vector<128x128xbf16>
    %cst_6 = arith.constant 4.467770e-02 : bf16
    %11 = vector.broadcast %cst_6 : bf16 to vector<128x128xbf16>
    %12 = arith.mulf %11, %10 : vector<128x128xbf16>
    %13 = arith.addf %6, %12 : vector<128x128xbf16>
    %cst_7 = arith.constant 7.968750e-01 : bf16
    %14 = vector.broadcast %cst_7 : bf16 to vector<128x128xbf16>
    %15 = arith.mulf %14, %13 : vector<128x128xbf16>
    %16 = math.tanh %15 : vector<128x128xbf16>
    %cst_8 = arith.constant 1.000000e+00 : bf16
    %17 = vector.broadcast %cst_8 : bf16 to vector<128x128xbf16>
    %18 = arith.addf %17, %16 : vector<128x128xbf16>
    %19 = arith.mulf %8, %18 : vector<128x128xbf16>
    %c0_9 = arith.constant 0 : index
    %c0_10 = arith.constant 0 : index
    %c0_11 = arith.constant 0 : index
    %20 = vector.load %arg4[%c0_9, %c0_10, %c0_11] : memref<2x128x128xbf16, #tpu.memory_space<vmem>>, vector<1x128x128xbf16>
    %21 = vector.shape_cast %20 : vector<1x128x128xbf16> to vector<128x128xbf16>
    %c0_12 = arith.constant 0 : index
    %c0_13 = arith.constant 0 : index
    %c0_14 = arith.constant 0 : index
    %22 = vector.load %arg5[%c0_12, %c0_13, %c0_14] : memref<2x1x128xbf16, #tpu.memory_space<vmem>>, vector<1x1x128xbf16>
    %23 = vector.shape_cast %22 : vector<1x1x128xbf16> to vector<1x128xbf16>
    %cst_15 = arith.constant dense<0.000000e+00> : vector<128x128xf32>
    %24 = tpu.matmul %19, %21, %cst_15 {dimension_numbers = #tpu.dot_dimension_numbers<[1], [0], [0], [1], [0, 0, 1, 1], [], []>} : vector<128x128xbf16>, vector<128x128xbf16>, vector<128x128xf32> -> vector<128x128xf32>
    %25 = arith.truncf %24 : vector<128x128xf32> to vector<128x128xbf16>
    %26 = vector.broadcast %23 : vector<1x128xbf16> to vector<128x128xbf16>
    %27 = arith.addf %25, %26 : vector<128x128xbf16>
    %cst_16 = arith.constant 5.000000e-01 : bf16
    %28 = vector.broadcast %cst_16 : bf16 to vector<128x128xbf16>
    %29 = arith.mulf %28, %27 : vector<128x128xbf16>
    %30 = arith.mulf %27, %27 : vector<128x128xbf16>
    %31 = arith.mulf %30, %27 : vector<128x128xbf16>
    %cst_17 = arith.constant 4.467770e-02 : bf16
    %32 = vector.broadcast %cst_17 : bf16 to vector<128x128xbf16>
    %33 = arith.mulf %32, %31 : vector<128x128xbf16>
    %34 = arith.addf %27, %33 : vector<128x128xbf16>
    %cst_18 = arith.constant 7.968750e-01 : bf16
    %35 = vector.broadcast %cst_18 : bf16 to vector<128x128xbf16>
    %36 = arith.mulf %35, %34 : vector<128x128xbf16>
    %37 = math.tanh %36 : vector<128x128xbf16>
    %cst_19 = arith.constant 1.000000e+00 : bf16
    %38 = vector.broadcast %cst_19 : bf16 to vector<128x128xbf16>
    %39 = arith.addf %38, %37 : vector<128x128xbf16>
    %40 = arith.mulf %29, %39 : vector<128x128xbf16>
    %41 = arith.addf %40, %19 : vector<128x128xbf16>
    %c1 = arith.constant 1 : index
    %c0_20 = arith.constant 0 : index
    %c0_21 = arith.constant 0 : index
    %42 = vector.load %arg4[%c1, %c0_20, %c0_21] : memref<2x128x128xbf16, #tpu.memory_space<vmem>>, vector<1x128x128xbf16>
    %43 = vector.shape_cast %42 : vector<1x128x128xbf16> to vector<128x128xbf16>
    %c1_22 = arith.constant 1 : index
    %c0_23 = arith.constant 0 : index
    %c0_24 = arith.constant 0 : index
    %44 = vector.load %arg5[%c1_22, %c0_23, %c0_24] : memref<2x1x128xbf16, #tpu.memory_space<vmem>>, vector<1x1x128xbf16>
    %45 = vector.shape_cast %44 : vector<1x1x128xbf16> to vector<1x128xbf16>
    %cst_25 = arith.constant dense<0.000000e+00> : vector<128x128xf32>
    %46 = tpu.matmul %41, %43, %cst_25 {dimension_numbers = #tpu.dot_dimension_numbers<[1], [0], [0], [1], [0, 0, 1, 1], [], []>} : vector<128x128xbf16>, vector<128x128xbf16>, vector<128x128xf32> -> vector<128x128xf32>
    %47 = arith.truncf %46 : vector<128x128xf32> to vector<128x128xbf16>
    %48 = vector.broadcast %45 : vector<1x128xbf16> to vector<128x128xbf16>
    %49 = arith.addf %47, %48 : vector<128x128xbf16>
    %cst_26 = arith.constant 5.000000e-01 : bf16
    %50 = vector.broadcast %cst_26 : bf16 to vector<128x128xbf16>
    %51 = arith.mulf %50, %49 : vector<128x128xbf16>
    %52 = arith.mulf %49, %49 : vector<128x128xbf16>
    %53 = arith.mulf %52, %49 : vector<128x128xbf16>
    %cst_27 = arith.constant 4.467770e-02 : bf16
    %54 = vector.broadcast %cst_27 : bf16 to vector<128x128xbf16>
    %55 = arith.mulf %54, %53 : vector<128x128xbf16>
    %56 = arith.addf %49, %55 : vector<128x128xbf16>
    %cst_28 = arith.constant 7.968750e-01 : bf16
    %57 = vector.broadcast %cst_28 : bf16 to vector<128x128xbf16>
    %58 = arith.mulf %57, %56 : vector<128x128xbf16>
    %59 = math.tanh %58 : vector<128x128xbf16>
    %cst_29 = arith.constant 1.000000e+00 : bf16
    %60 = vector.broadcast %cst_29 : bf16 to vector<128x128xbf16>
    %61 = arith.addf %60, %59 : vector<128x128xbf16>
    %62 = arith.mulf %51, %61 : vector<128x128xbf16>
    %63 = arith.addf %62, %41 : vector<128x128xbf16>
    %c0_30 = arith.constant 0 : index
    %c0_31 = arith.constant 0 : index
    %64 = vector.load %arg6[%c0_30, %c0_31] : memref<128x128xbf16, #tpu.memory_space<vmem>>, vector<128x128xbf16>
    %cst_32 = arith.constant dense<0.000000e+00> : vector<128x128xf32>
    %65 = tpu.matmul %63, %64, %cst_32 {dimension_numbers = #tpu.dot_dimension_numbers<[1], [0], [0], [1], [0, 0, 1, 1], [], []>} : vector<128x128xbf16>, vector<128x128xbf16>, vector<128x128xf32> -> vector<128x128xf32>
    %c0_33 = arith.constant 0 : index
    %c0_34 = arith.constant 0 : index
    %66 = vector.load %arg7[%c0_33, %c0_34] : memref<1x128xf32, #tpu.memory_space<vmem>>, vector<1x128xf32>
    %67 = vector.broadcast %66 : vector<1x128xf32> to vector<128x128xf32>
    %68 = arith.addf %65, %67 : vector<128x128xf32>
    %c0_35 = arith.constant 0 : index
    %c0_36 = arith.constant 0 : index
    %69 = vector.load %arg8[%c0_35, %c0_36] : memref<128x128xf32, #tpu.memory_space<vmem>>, vector<128x128xf32>
    tpu.vector_store %arg8[%c0_35, %c0_36], %68 {strides = array<i32>} : memref<128x128xf32, #tpu.memory_space<vmem>>, vector<128x128xf32>,
    return
  }
  func.func @transform_0(%arg0: i32) -> (i32, i32) {
    %c0_i32 = arith.constant 0 : i32
    %c0_i32_0 = arith.constant 0 : i32
    return %arg0, %c0_i32 : i32, i32
  }
  func.func @transform_1(%arg0: i32) -> (i32, i32) {
    %c0_i32 = arith.constant 0 : i32
    %c0_i32_0 = arith.constant 0 : i32
    %c0_i32_1 = arith.constant 0 : i32
    return %c0_i32, %c0_i32_0 : i32, i32
  }
  func.func @transform_2(%arg0: i32) -> (i32, i32) {
    %c0_i32 = arith.constant 0 : i32
    %c0_i32_0 = arith.constant 0 : i32
    %c0_i32_1 = arith.constant 0 : i32
    return %c0_i32, %c0_i32_0 : i32, i32
  }
  func.func @transform_3(%arg0: i32) -> (i32, i32, i32) {
    %c0_i32 = arith.constant 0 : i32
    %c0_i32_0 = arith.constant 0 : i32
    %c0_i32_1 = arith.constant 0 : i32
    %c0_i32_2 = arith.constant 0 : i32
    return %c0_i32, %c0_i32_0, %c0_i32_1 : i32, i32, i32
  }
  func.func @transform_4(%arg0: i32) -> (i32, i32, i32) {
    %c0_i32 = arith.constant 0 : i32
    %c0_i32_0 = arith.constant 0 : i32
    %c0_i32_1 = arith.constant 0 : i32
    %c0_i32_2 = arith.constant 0 : i32
    return %c0_i32, %c0_i32_0, %c0_i32_1 : i32, i32, i32
  }
  func.func @transform_5(%arg0: i32) -> (i32, i32) {
    %c0_i32 = arith.constant 0 : i32
    %c0_i32_0 = arith.constant 0 : i32
    %c0_i32_1 = arith.constant 0 : i32
    return %c0_i32, %c0_i32_0 : i32, i32
  }
  func.func @transform_6(%arg0: i32) -> (i32, i32) {
    %c0_i32 = arith.constant 0 : i32
    %c0_i32_0 = arith.constant 0 : i32
    %c0_i32_1 = arith.constant 0 : i32
    return %c0_i32, %c0_i32_0 : i32, i32
  }
  func.func @transform_7(%arg0: i32) -> (i32, i32) {
    %c0_i32 = arith.constant 0 : i32
    %c0_i32_0 = arith.constant 0 : i32
    return %arg0, %c0_i32 : i32, i32
  }
}

</mosaic_0001>

<llo_original>
// kernel: tpu_custom_call.1
$region0: #{tpu_custom_call.1}
  #allocation0 [shape = 'u32[]', space=smem, size = 0x4, offset = 0x4, fixed_abs, tag = 'smem constant byte address 0x4 - core index']
  #allocation1 [shape = 'u32[72,128]{1,0:T(1,128)}', space=vmem, size = 0x9000, scoped, tag = 'internal scratch']
  %s0 = inlined_call_operand.hbm [shape: bf16[256,128], index: 0, kind: input, shape index: {}]
  %s1 = inlined_call_operand.hbm [shape: bf16[128,128], index: 1, kind: input, shape index: {}]
  %s2 = inlined_call_operand.vmem [shape: bf16[1,128], index: 2, kind: input, shape index: {}]
  %s3 = inlined_call_operand.hbm [shape: bf16[2,128,128], index: 3, kind: input, shape index: {}]
  %s4 = inlined_call_operand.vmem [shape: bf16[2,1,128], index: 4, kind: input, shape index: {}]
  %s5 = inlined_call_operand.hbm [shape: bf16[128,128], index: 5, kind: input, shape index: {}]
  %s6 = inlined_call_operand.vmem [shape: f32[1,128], index: 6, kind: input, shape index: {}]
  %s7 = inlined_call_operand.hbm [shape: f32[256,128], index: 7, kind: output, shape index: {}]
  %s8 = sld [smem:[#allocation0]]
  $region77: #{tpu_custom_call.1} parent=0
    _
  %s10 = ssub.s32 1, %s8
  %s11 = scalar_select 0, %s10, %s8
  $region1: #{tpu_custom_call.1} parent=0
    #allocation2 [shape = 'u8[65536]{0}', space=vmem, size = 0x10000, scoped, tag = 'input window, operand 0']
    #allocation3 [shape = 's32[2]{0}', space=sflag, size = 0x8, scoped, tag = 'scoped memory for tpu_custom_call.1']
    #allocation4 [shape = 's32[2]{0}', space=sflag, size = 0x8, scoped, tag = 'scoped memory for tpu_custom_call.1']
    #allocation5 [shape = 'u8[32768]{0}', space=vmem, size = 0x8000, scoped, tag = 'input window, operand 1, single buffered']
    #allocation6 [shape = 's32[1]{0}', space=sflag, size = 0x4, scoped, tag = 'scoped memory for tpu_custom_call.1']
    #allocation7 [shape = 'u8[65536]{0}', space=vmem, size = 0x10000, scoped, tag = 'input window, operand 3, single buffered']
    #allocation8 [shape = 'u8[32768]{0}', space=vmem, size = 0x8000, scoped, tag = 'input window, operand 5, single buffered']
    #allocation9 [shape = 's32[1]{0}', space=sflag, size = 0x4, scoped, tag = 'scoped memory for tpu_custom_call.1']
    #allocation10 [shape = 'u8[131072]{0}', space=vmem, size = 0x20000, scoped, tag = 'output window, operand 0']
    %12 = vsyncpa [#allocation3], 0
    %s13 = scalar_lea.sflag [#allocation3], 1
    %14 = vsyncpa %s13, 0
    %15 = vsyncpa [#allocation6], 0
    %16 = vsyncpa [#allocation9], 0
    %17 = vsyncpa [#allocation4], 0
    %s18 = scalar_lea.sflag [#allocation4], 1
    %19 = vsyncpa %s18, 0
    loop: start=0, step=1, limit=4
    $region2: #{tpu_custom_call.1} parent=1 // loop_pre_header
      _
    $region3: #{tpu_custom_call.1} parent=1 // loop_header
      %s21 = sphi 0, %s25
      %p22 = scmp.ge.s32.totalorder %s21, 4
      %s31 = sphi 0, %s33
      %s34 = sphi 0, %s31
      %s35 = sphi 0, %s34
      %s51 = sphi 0, %s35
      %s55 = sphi 0, %s55
      %s57 = sphi 0, %s55
      %s58 = sphi 0, %s57
      %s72 = sphi 0, %s58
      %s76 = sphi 0, %s76
      %s78 = sphi 0, %s76
      %s79 = sphi 0, %s78
      %s93 = sphi 0, %s79
      %s97 = sphi 0, %s97
      %s99 = sphi 0, %s97
      %s100 = sphi 0, %s99
      %s114 = sphi 0, %s100
      %s118 = sphi 0, %s118
      %s120 = sphi 0, %s118
      %s121 = sphi 0, %s120
      %s135 = sphi 0, %s121
      %s139 = sphi 0, %s139
      %s141 = sphi 0, %s139
      %s142 = sphi 0, %s141
      %s156 = sphi 0, %s142
      %s160 = sphi 0, %s160
      %s162 = sphi 0, %s160
      %s163 = sphi 0, %s162
      %s177 = sphi 0, %s163
      %s183 = sphi 0, %s185
      %s186 = sphi 0, %s183
      %s187 = sphi 0, %s186
      %s203 = sphi 0, %s187
    $region4: #{tpu_custom_call.1} parent=1 // loop_header_branch
      %24 = sbr.rel (%p22) target = $region8
    $region5: #{tpu_custom_call.1} parent=1 // loop_body
      %s26 = ssub.s32 %s21, 1
      %s27 = ssub.s32 %s21, 2
      %s28 = sadd.s32 %s21, 1
      %s29 = ssub.s32 %s21, %s28
      %p30 = scmp.eq.s32.totalorder %s29, 0
      %s32 = sadd.s32 %s31, 1
      %s33 = scalar_select %p30, %s31, %s32
      %p36 = pneg %p30
      %p37 = scmp.eq.s32.totalorder %s21, 1
      %p38 = por %p36, %p37
      %p39 = scmp.ne.s32.totalorder %s31, %s34
      %p40 = scmp.eq.s32.totalorder %s21, 0
      %p41 = por %p39, %p40
      %p42 = scmp.ne.s32.totalorder %s31, %s34
      %p43 = scmp.eq.s32.totalorder %s26, 1
      %p44 = por %p42, %p43
      %p45 = scmp.ne.s32.totalorder %s34, %s35
      %p46 = scmp.eq.s32.totalorder %s26, 0
      %p47 = por %p45, %p46
      %p48 = scmp.ne.s32.totalorder %s34, %s35
      %p49 = scmp.eq.s32.totalorder %s27, 1
      %p50 = por %p48, %p49
      %p52 = scmp.ne.s32.totalorder %s35, %s51
      %p53 = scmp.eq.s32.totalorder %s27, 0
      %p54 = por %p52, %p53
      %s56 = sadd.s32 %s55, 1
      %p59 = scmp.eq.s32.totalorder %s21, 1
      %p60 = scmp.ne.s32.totalorder %s55, %s57
      %p61 = scmp.eq.s32.totalorder %s21, 0
      %p62 = por %p60, %p61
      %p63 = scmp.ne.s32.totalorder %s55, %s57
      %p64 = scmp.eq.s32.totalorder %s26, 1
      %p65 = por %p63, %p64
      %p66 = scmp.ne.s32.totalorder %s57, %s58
      %p67 = scmp.eq.s32.totalorder %s26, 0
      %p68 = por %p66, %p67
      %p69 = scmp.ne.s32.totalorder %s57, %s58
      %p70 = scmp.eq.s32.totalorder %s27, 1
      %p71 = por %p69, %p70
      %p73 = scmp.ne.s32.totalorder %s58, %s72
      %p74 = scmp.eq.s32.totalorder %s27, 0
      %p75 = por %p73, %p74
      %s77 = sadd.s32 %s76, 1
      %p80 = scmp.eq.s32.totalorder %s21, 1
      %p81 = scmp.ne.s32.totalorder %s76, %s78
      %p82 = scmp.eq.s32.totalorder %s21, 0
      %p83 = por %p81, %p82
      %p84 = scmp.ne.s32.totalorder %s76, %s78
      %p85 = scmp.eq.s32.totalorder %s26, 1
      %p86 = por %p84, %p85
      %p87 = scmp.ne.s32.totalorder %s78, %s79
      %p88 = scmp.eq.s32.totalorder %s26, 0
      %p89 = por %p87, %p88
      %p90 = scmp.ne.s32.totalorder %s78, %s79
      %p91 = scmp.eq.s32.totalorder %s27, 1
      %p92 = por %p90, %p91
      %p94 = scmp.ne.s32.totalorder %s79, %s93
      %p95 = scmp.eq.s32.totalorder %s27, 0
      %p96 = por %p94, %p95
      %s98 = sadd.s32 %s97, 1
      %p101 = scmp.eq.s32.totalorder %s21, 1
      %p102 = scmp.ne.s32.totalorder %s97, %s99
      %p103 = scmp.eq.s32.totalorder %s21, 0
      %p104 = por %p102, %p103
      %p105 = scmp.ne.s32.totalorder %s97, %s99
      %p106 = scmp.eq.s32.totalorder %s26, 1
      %p107 = por %p105, %p106
      %p108 = scmp.ne.s32.totalorder %s99, %s100
      %p109 = scmp.eq.s32.totalorder %s26, 0
      %p110 = por %p108, %p109
      %p111 = scmp.ne.s32.totalorder %s99, %s100
      %p112 = scmp.eq.s32.totalorder %s27, 1
      %p113 = por %p111, %p112
      %p115 = scmp.ne.s32.totalorder %s100, %s114
      %p116 = scmp.eq.s32.totalorder %s27, 0
      %p117 = por %p115, %p116
      %s119 = sadd.s32 %s118, 1
      %p122 = scmp.eq.s32.totalorder %s21, 1
      %p123 = scmp.ne.s32.totalorder %s118, %s120
      %p124 = scmp.eq.s32.totalorder %s21, 0
      %p125 = por %p123, %p124
      %p126 = scmp.ne.s32.totalorder %s118, %s120
      %p127 = scmp.eq.s32.totalorder %s26, 1
      %p128 = por %p126, %p127
      %p129 = scmp.ne.s32.totalorder %s120, %s121
      %p130 = scmp.eq.s32.totalorder %s26, 0
      %p131 = por %p129, %p130
      %p132 = scmp.ne.s32.totalorder %s120, %s121
      %p133 = scmp.eq.s32.totalorder %s27, 1
      %p134 = por %p132, %p133
      %p136 = scmp.ne.s32.totalorder %s121, %s135
      %p137 = scmp.eq.s32.totalorder %s27, 0
      %p138 = por %p136, %p137
      %s140 = sadd.s32 %s139, 1
      %p143 = scmp.eq.s32.totalorder %s21, 1
      %p144 = scmp.ne.s32.totalorder %s139, %s141
      %p145 = scmp.eq.s32.totalorder %s21, 0
      %p146 = por %p144, %p145
      %p147 = scmp.ne.s32.totalorder %s139, %s141
      %p148 = scmp.eq.s32.totalorder %s26, 1
      %p149 = por %p147, %p148
      %p150 = scmp.ne.s32.totalorder %s141, %s142
      %p151 = scmp.eq.s32.totalorder %s26, 0
      %p152 = por %p150, %p151
      %p153 = scmp.ne.s32.totalorder %s141, %s142
      %p154 = scmp.eq.s32.totalorder %s27, 1
      %p155 = por %p153, %p154
      %p157 = scmp.ne.s32.totalorder %s142, %s156
      %p158 = scmp.eq.s32.totalorder %s27, 0
      %p159 = por %p157, %p158
      %s161 = sadd.s32 %s160, 1
      %p164 = scmp.eq.s32.totalorder %s21, 1
      %p165 = scmp.ne.s32.totalorder %s160, %s162
      %p166 = scmp.eq.s32.totalorder %s21, 0
      %p167 = por %p165, %p166
      %p168 = scmp.ne.s32.totalorder %s160, %s162
      %p169 = scmp.eq.s32.totalorder %s26, 1
      %p170 = por %p168, %p169
      %p171 = scmp.ne.s32.totalorder %s162, %s163
      %p172 = scmp.eq.s32.totalorder %s26, 0
      %p173 = por %p171, %p172
      %p174 = scmp.ne.s32.totalorder %s162, %s163
      %p175 = scmp.eq.s32.totalorder %s27, 1
      %p176 = por %p174, %p175
      %p178 = scmp.ne.s32.totalorder %s163, %s177
      %p179 = scmp.eq.s32.totalorder %s27, 0
      %p180 = por %p178, %p179
      %s181 = ssub.s32 %s21, %s28
      %p182 = scmp.eq.s32.totalorder %s181, 0
      %s184 = sadd.s32 %s183, 1
      %s185 = scalar_select %p182, %s183, %s184
      %p188 = pneg %p182
      %p189 = scmp.eq.s32.totalorder %s21, 1
      %p190 = por %p188, %p189
      %p191 = scmp.ne.s32.totalorder %s183, %s186
      %p192 = scmp.eq.s32.totalorder %s21, 0
      %p193 = por %p191, %p192
      %p194 = scmp.ne.s32.totalorder %s183, %s186
      %p195 = scmp.eq.s32.totalorder %s26, 1
      %p196 = por %p194, %p195
      %p197 = scmp.ne.s32.totalorder %s186, %s187
      %p198 = scmp.eq.s32.totalorder %s26, 0
      %p199 = por %p197, %p198
      %p200 = scmp.ne.s32.totalorder %s186, %s187
      %p201 = scmp.eq.s32.totalorder %s27, 1
      %p202 = por %p200, %p201
      %p204 = scmp.ne.s32.totalorder %s187, %s203
      %p205 = scmp.eq.s32.totalorder %s27, 0
      %p206 = por %p204, %p205
      %p207 = scmp.le.s32.totalorder 1, %s21
      %p208 = scmp.lt.s32.totalorder %s21, 3
      %p209 = pnand %p207, %p208
      %p210 = pneg %p209
      // Predicated region
      $region9: #{tpu_custom_call.1} parent=5 // pred_check
        _
      $region10: #{tpu_custom_call.1} parent=5 // pred_check_branch
        %212 = sbr.rel (%p209) target = $region12
      $region11: #{tpu_custom_call.1} parent=5 // pred_region
        %s213 = ssub.s32 %s21, 1
        // Predicated region
        $region13: #{tpu_custom_call.1} parent=11 // pred_check
          %p214 = pneg %p68
        $region14: #{tpu_custom_call.1} parent=11 // pred_check_branch
          %216 = sbr.rel (%p214) target = $region16
        $region15: #{tpu_custom_call.1} parent=11 // pred_region
          %218 = vsyncadd [#allocation6], 0
          %s219 = sshll.u32 %s1, 4
          %s220 = int_to_ptr.hbm [resolvable:$true] %s219
          %s221 = sshll.u32 [#allocation5], 4
          %s222 = int_to_ptr.vmem [resolvable:$true] %s221
          %227 = dma.hbm_to_vmem [thread:$0]  %s220, 1024, %s222, [#allocation6], 64, 64, 4
        $region16: #{tpu_custom_call.1} parent=11 // pred_fallthru
          _
        // Predicated region
        $region17: #{tpu_custom_call.1} parent=11 // pred_check
          %p228 = pneg %p89
        $region18: #{tpu_custom_call.1} parent=11 // pred_check_branch
          %230 = sbr.rel (%p228) target = $region20
        $region19: #{tpu_custom_call.1} parent=11 // pred_region
          _
        $region20: #{tpu_custom_call.1} parent=11 // pred_fallthru
          _
        // Predicated region
        $region21: #{tpu_custom_call.1} parent=11 // pred_check
          %p231 = pneg %p110
        $region22: #{tpu_custom_call.1} parent=11 // pred_check_branch
          %233 = sbr.rel (%p231) target = $region24
        $region23: #{tpu_custom_call.1} parent=11 // pred_region
          %235 = vsyncadd [#allocation6], 0
          %s236 = sshll.u32 %s3, 4
          %s237 = int_to_ptr.hbm [resolvable:$true] %s236
          %s238 = sshll.u32 [#allocation7], 4
          %s239 = int_to_ptr.vmem [resolvable:$true] %s238
          %244 = dma.hbm_to_vmem [thread:$0]  %s237, 2048, %s239, [#allocation6], 64, 64, 4
        $region24: #{tpu_custom_call.1} parent=11 // pred_fallthru
          _
        // Predicated region
        $region25: #{tpu_custom_call.1} parent=11 // pred_check
          %p245 = pneg %p131
        $region26: #{tpu_custom_call.1} parent=11 // pred_check_branch
          %247 = sbr.rel (%p245) target = $region28
        $region27: #{tpu_custom_call.1} parent=11 // pred_region
          _
        $region28: #{tpu_custom_call.1} parent=11 // pred_fallthru
          _
        // Predicated region
        $region29: #{tpu_custom_call.1} parent=11 // pred_check
          %p248 = pneg %p152
        $region30: #{tpu_custom_call.1} parent=11 // pred_check_branch
          %250 = sbr.rel (%p248) target = $region32
        $region31: #{tpu_custom_call.1} parent=11 // pred_region
          %252 = vsyncadd [#allocation9], 0
          %s253 = sshll.u32 %s5, 4
          %s254 = int_to_ptr.hbm [resolvable:$true] %s253
          %s255 = sshll.u32 [#allocation8], 4
          %s256 = int_to_ptr.vmem [resolvable:$true] %s255
          %261 = dma.hbm_to_vmem [thread:$0]  %s254, 1024, %s256, [#allocation9], 64, 64, 4
        $region32: #{tpu_custom_call.1} parent=11 // pred_fallthru
          _
        // Predicated region
        $region33: #{tpu_custom_call.1} parent=11 // pred_check
          %p262 = pneg %p173
        $region34: #{tpu_custom_call.1} parent=11 // pred_check_branch
          %264 = sbr.rel (%p262) target = $region36
        $region35: #{tpu_custom_call.1} parent=11 // pred_region
          _
        $region36: #{tpu_custom_call.1} parent=11 // pred_fallthru
          _
      $region12: #{tpu_custom_call.1} parent=5 // pred_fallthru
        _
      %p265 = scmp.lt.s32.totalorder %s21, 2
      // Predicated region
      $region37: #{tpu_custom_call.1} parent=5 // pred_check
        %p266 = pneg %p265
      $region38: #{tpu_custom_call.1} parent=5 // pred_check_branch
        %268 = sbr.rel (%p266) target = $region40
      $region39: #{tpu_custom_call.1} parent=5 // pred_region
        // Predicated region
        $region41: #{tpu_custom_call.1} parent=39 // pred_check
          %p269 = pneg %p41
        $region42: #{tpu_custom_call.1} parent=39 // pred_check_branch
          %271 = sbr.rel (%p269) target = $region44
        $region43: #{tpu_custom_call.1} parent=39 // pred_region
          %s272 = sand.u32 %s31, 1
          %s273 = scalar_lea.sflag [#allocation3], %s272
          %s274 = sand.u32 %s31, 1
          %s275 = smul.addr %s274, 64
          %s276 = scalar_lea.vmem [#allocation2], %s275
          %s277 = smul.u32 16, %s21
          %279 = vsyncadd %s273, 0
          %s280 = smul.addr %s277, 4
          %s281 = scalar_lea.hbm %s0, %s280
          %s282 = sshll.u32 %s281, 4
          %s283 = int_to_ptr.hbm [resolvable:$true] %s282
          %s284 = sshll.u32 %s276, 4
          %s285 = int_to_ptr.vmem [resolvable:$true] %s284
          %290 = dma.hbm_to_vmem [thread:$0]  %s283, 1024, %s285, %s273, 64, 64, 4
        $region44: #{tpu_custom_call.1} parent=39 // pred_fallthru
          _
      $region40: #{tpu_custom_call.1} parent=5 // pred_fallthru
        _
      %p291 = scmp.le.s32.totalorder 1, %s21
      %p292 = scmp.lt.s32.totalorder %s21, 3
      %p293 = pnand %p291, %p292
      %p294 = pneg %p293
      // Predicated region
      $region45: #{tpu_custom_call.1} parent=5 // pred_check
        _
      $region46: #{tpu_custom_call.1} parent=5 // pred_check_branch
        %296 = sbr.rel (%p293) target = $region48
      $region47: #{tpu_custom_call.1} parent=5 // pred_region
        %s297 = ssub.s32 %s21, 1
        %s298 = sand.u32 %s34, 1
        %s299 = scalar_lea.sflag [#allocation3], %s298
        %s300 = sand.u32 %s34, 1
        %s301 = smul.addr %s300, 64
        %s302 = scalar_lea.vmem [#allocation2], %s301
        // Predicated region
        $region49: #{tpu_custom_call.1} parent=47 // pred_check
          %p303 = pneg %p47
        $region50: #{tpu_custom_call.1} parent=47 // pred_check_branch
          %305 = sbr.rel (%p303) target = $region52
        $region51: #{tpu_custom_call.1} parent=47 // pred_region
          %307 = dma.done %s299, 1024
        $region52: #{tpu_custom_call.1} parent=47 // pred_fallthru
          _
        // Predicated region
        $region53: #{tpu_custom_call.1} parent=47 // pred_check
          %p308 = pneg %p68
        $region54: #{tpu_custom_call.1} parent=47 // pred_check_branch
          %310 = sbr.rel (%p308) target = $region56
        $region55: #{tpu_custom_call.1} parent=47 // pred_region
          %312 = dma.done [#allocation6], 1024
        $region56: #{tpu_custom_call.1} parent=47 // pred_fallthru
          _
        // Predicated region
        $region57: #{tpu_custom_call.1} parent=47 // pred_check
          %p313 = pneg %p110
        $region58: #{tpu_custom_call.1} parent=47 // pred_check_branch
          %315 = sbr.rel (%p313) target = $region60
        $region59: #{tpu_custom_call.1} parent=47 // pred_region
          %317 = dma.done [#allocation6], 2048
        $region60: #{tpu_custom_call.1} parent=47 // pred_fallthru
          _
        // Predicated region
        $region61: #{tpu_custom_call.1} parent=47 // pred_check
          %p318 = pneg %p152
        $region62: #{tpu_custom_call.1} parent=47 // pred_check_branch
          %320 = sbr.rel (%p318) target = $region64
        $region63: #{tpu_custom_call.1} parent=47 // pred_region
          %322 = dma.done [#allocation9], 1024
        $region64: #{tpu_custom_call.1} parent=47 // pred_fallthru
          _
        %s323 = sand.u32 %s34, 1
        %s324 = scalar_lea.sflag [#allocation3], %s323
        %s325 = sand.u32 %s34, 1
        %s326 = smul.addr %s325, 64
        %s327 = scalar_lea.vmem [#allocation2], %s326
        %p328 = pneg %p47
        %p329 = pneg %p44
        %p330 = pneg %p68
        %p331 = pneg %p65
        %p332 = pneg %p89
        %p333 = pneg %p86
        %p334 = pneg %p110
        %p335 = pneg %p107
        %p336 = pneg %p131
        %p337 = pneg %p128
        %p338 = pneg %p152
        %p339 = pneg %p149
        %p340 = pneg %p173
        %p341 = pneg %p170
        %p342 = pneg %p199
        %p343 = pneg %p196
        %s344 = sand.u32 %s186, 1
        %s345 = scalar_lea.sflag [#allocation4], %s344
        %s346 = sand.u32 %s186, 1
        %s347 = smul.addr %s346, 128
        %s348 = scalar_lea.vmem [#allocation10], %s347
        %s349 = smul.u32 16, %s26
        %s350 = smul.u32 16, %s26
        %v351 = vld [vmem:[%s302] sm:$0xf]
        %v352 = vld [vmem:[%s302 + $0x4] sm:$0xf]
        %v353 = vld [vmem:[%s302 + $0x8] sm:$0xf]
        %v354 = vld [vmem:[%s302 + $0xc] sm:$0xf]
        %v355 = vld [vmem:[%s302 + $0x10] sm:$0xf]
        %v356 = vld [vmem:[%s302 + $0x14] sm:$0xf]
        %v357 = vld [vmem:[%s302 + $0x18] sm:$0xf]
        %v358 = vld [vmem:[%s302 + $0x1c] sm:$0xf]
        %v359 = vld [vmem:[%s302 + $0x20] sm:$0xf]
        %v360 = vld [vmem:[%s302 + $0x24] sm:$0xf]
        %v361 = vld [vmem:[%s302 + $0x28] sm:$0xf]
        %v362 = vld [vmem:[%s302 + $0x2c] sm:$0xf]
        %v363 = vld [vmem:[%s302 + $0x30] sm:$0xf]
        %v364 = vld [vmem:[%s302 + $0x34] sm:$0xf]
        %v365 = vld [vmem:[%s302 + $0x38] sm:$0xf]
        %v366 = vld [vmem:[%s302 + $0x3c] sm:$0xf]
        %v367 = vld [vmem:[#allocation5] sm:$0xf]
        %v368 = vld [vmem:[#allocation5 + $0x4] sm:$0xf]
        %v369 = vld [vmem:[#allocation5 + $0x8] sm:$0xf]
        %v370 = vld [vmem:[#allocation5 + $0xc] sm:$0xf]
        %v371 = vld [vmem:[#allocation5 + $0x10] sm:$0xf]
        %v372 = vld [vmem:[#allocation5 + $0x14] sm:$0xf]
        %v373 = vld [vmem:[#allocation5 + $0x18] sm:$0xf]
        %v374 = vld [vmem:[#allocation5 + $0x1c] sm:$0xf]
        %v375 = vld [vmem:[#allocation5 + $0x20] sm:$0xf]
        %v376 = vld [vmem:[#allocation5 + $0x24] sm:$0xf]
        %v377 = vld [vmem:[#allocation5 + $0x28] sm:$0xf]
        %v378 = vld [vmem:[#allocation5 + $0x2c] sm:$0xf]
        %v379 = vld [vmem:[#allocation5 + $0x30] sm:$0xf]
        %v380 = vld [vmem:[#allocation5 + $0x34] sm:$0xf]
        %v381 = vld [vmem:[#allocation5 + $0x38] sm:$0xf]
        %v382 = vld [vmem:[#allocation5 + $0x3c] sm:$0xf]
        %v399 = vunpack.c.l.b16 %v351
        %v400 = vunpack.c.l.b16 %v352
        %v401 = vunpack.c.l.b16 %v353
        %v402 = vunpack.c.l.b16 %v354
        %v403 = vunpack.c.l.b16 %v355
        %v404 = vunpack.c.l.b16 %v356
        %v405 = vunpack.c.l.b16 %v357
        %v406 = vunpack.c.l.b16 %v358
        %v407 = vunpack.c.l.b16 %v359
        %v408 = vunpack.c.l.b16 %v360
        %v409 = vunpack.c.l.b16 %v361
        %v410 = vunpack.c.l.b16 %v362
        %v411 = vunpack.c.l.b16 %v363
        %v412 = vunpack.c.l.b16 %v364
        %v413 = vunpack.c.l.b16 %v365
        %v414 = vunpack.c.l.b16 %v366
        %v415 = vpack.c.b16 %v400, %v399
        %v416 = vpack.c.b16 %v402, %v401
        %v417 = vpack.c.b16 %v404, %v403
        %v418 = vpack.c.b16 %v406, %v405
        %v419 = vpack.c.b16 %v408, %v407
        %v420 = vpack.c.b16 %v410, %v409
        %v421 = vpack.c.b16 %v412, %v411
        %v422 = vpack.c.b16 %v414, %v413
        %v447 = vunpack.c.l.b16 %v367
        %v448 = vunpack.c.l.b16 %v368
        %v449 = vunpack.c.l.b16 %v369
        %v450 = vunpack.c.l.b16 %v370
        %v451 = vunpack.c.l.b16 %v371
        %v452 = vunpack.c.l.b16 %v372
        %v453 = vunpack.c.l.b16 %v373
        %v454 = vunpack.c.l.b16 %v374
        %v455 = vunpack.c.l.b16 %v375
        %v456 = vunpack.c.l.b16 %v376
        %v457 = vunpack.c.l.b16 %v377
        %v458 = vunpack.c.l.b16 %v378
        %v459 = vunpack.c.l.b16 %v379
        %v460 = vunpack.c.l.b16 %v380
        %v461 = vunpack.c.l.b16 %v381
        %v462 = vunpack.c.l.b16 %v382
        %v463 = vpack.c.b16 %v448, %v447
        %v464 = vpack.c.b16 %v450, %v449
        %v465 = vpack.c.b16 %v452, %v451
        %v466 = vpack.c.b16 %v454, %v453
        %v467 = vpack.c.b16 %v456, %v455
        %v468 = vpack.c.b16 %v458, %v457
        %v469 = vpack.c.b16 %v460, %v459
        %v470 = vpack.c.b16 %v462, %v461
        %479 = vmatpush.bf16.msra.mxu0 %v470
        %480 = vmatpush.bf16.msra.mxu0 %v469
        %481 = vmatpush.bf16.msra.mxu0 %v468
        %482 = vmatpush.bf16.msra.mxu0 %v467
        %483 = vmatpush.bf16.msra.mxu0 %v466
        %484 = vmatpush.bf16.msra.mxu0 %v465
        %485 = vmatpush.bf16.msra.mxu0 %v464
        %486 = vmatpush.bf16.msra.mxu0 %v463
        %487 = vmatmul.bf16.gmra.mxu0 %v415
        %v488 = vpop.f32.mrf.mxu0
        %v489 = vadd.f32 0.0, %v488
        %v490 = vpop.f32.mrf.mxu0
        %v491 = vadd.f32 0.0, %v490
        %492 = vmatmul.bf16.gmra.mxu0 %v416
        %v493 = vpop.f32.mrf.mxu0
        %v494 = vadd.f32 0.0, %v493
        %v495 = vpop.f32.mrf.mxu0
        %v496 = vadd.f32 0.0, %v495
        %497 = vmatmul.bf16.gmra.mxu0 %v417
        %v498 = vpop.f32.mrf.mxu0
        %v499 = vadd.f32 0.0, %v498
        %v500 = vpop.f32.mrf.mxu0
        %v501 = vadd.f32 0.0, %v500
        %502 = vmatmul.bf16.gmra.mxu0 %v418
        %v503 = vpop.f32.mrf.mxu0
        %v504 = vadd.f32 0.0, %v503
        %v505 = vpop.f32.mrf.mxu0
        %v506 = vadd.f32 0.0, %v505
        %507 = vmatmul.bf16.gmra.mxu0 %v419
        %v508 = vpop.f32.mrf.mxu0
        %v509 = vadd.f32 0.0, %v508
        %v510 = vpop.f32.mrf.mxu0
        %v511 = vadd.f32 0.0, %v510
        %512 = vmatmul.bf16.gmra.mxu0 %v420
        %v513 = vpop.f32.mrf.mxu0
        %v514 = vadd.f32 0.0, %v513
        %v515 = vpop.f32.mrf.mxu0
        %v516 = vadd.f32 0.0, %v515
        %517 = vmatmul.bf16.gmra.mxu0 %v421
        %v518 = vpop.f32.mrf.mxu0
        %v519 = vadd.f32 0.0, %v518
        %v520 = vpop.f32.mrf.mxu0
        %v521 = vadd.f32 0.0, %v520
        %522 = vmatmul.bf16.gmra.mxu0 %v422
        %v523 = vpop.f32.mrf.mxu0
        %v524 = vadd.f32 0.0, %v523
        %v525 = vpop.f32.mrf.mxu0
        %v526 = vadd.f32 0.0, %v525
        %527 = vdwg.mxu0
        %v528 = vpack.c.bf16 %v489, %v489
        %v529 = vpack.c.bf16 %v491, %v491
        %v530 = vpack.c.bf16 %v494, %v494
        %v531 = vpack.c.bf16 %v496, %v496
        %v532 = vpack.c.bf16 %v499, %v499
        %v533 = vpack.c.bf16 %v501, %v501
        %v534 = vpack.c.bf16 %v504, %v504
        %v535 = vpack.c.bf16 %v506, %v506
        %v536 = vpack.c.bf16 %v509, %v509
        %v537 = vpack.c.bf16 %v511, %v511
        %v538 = vpack.c.bf16 %v514, %v514
        %v539 = vpack.c.bf16 %v516, %v516
        %v540 = vpack.c.bf16 %v519, %v519
        %v541 = vpack.c.bf16 %v521, %v521
        %v542 = vpack.c.bf16 %v524, %v524
        %v543 = vpack.c.bf16 %v526, %v526
        %v544 = vld [vmem:[%s2] sm:$0x1]
        %v546 = vpack.i.b16 %v544, %v544
        %v548 = vperm.slane %v546, 0
        %v549 = vunpack.c.l.bf16 %v528
        %v550 = vunpack.c.l.bf16 %v529
        %v551 = vunpack.c.l.bf16 %v530
        %v552 = vunpack.c.l.bf16 %v531
        %v553 = vunpack.c.l.bf16 %v532
        %v554 = vunpack.c.l.bf16 %v533
        %v555 = vunpack.c.l.bf16 %v534
        %v556 = vunpack.c.l.bf16 %v535
        %v557 = vunpack.c.l.bf16 %v536
        %v558 = vunpack.c.l.bf16 %v537
        %v559 = vunpack.c.l.bf16 %v538
        %v560 = vunpack.c.l.bf16 %v539
        %v561 = vunpack.c.l.bf16 %v540
        %v562 = vunpack.c.l.bf16 %v541
        %v563 = vunpack.c.l.bf16 %v542
        %v564 = vunpack.c.l.bf16 %v543
        %v565 = vunpack.c.l.bf16 %v548
        %v566 = vadd.f32 %v549, %v565
        %v567 = vadd.f32 %v550, %v565
        %v568 = vadd.f32 %v551, %v565
        %v569 = vadd.f32 %v552, %v565
        %v570 = vadd.f32 %v553, %v565
        %v571 = vadd.f32 %v554, %v565
        %v572 = vadd.f32 %v555, %v565
        %v573 = vadd.f32 %v556, %v565
        %v574 = vadd.f32 %v557, %v565
        %v575 = vadd.f32 %v558, %v565
        %v576 = vadd.f32 %v559, %v565
        %v577 = vadd.f32 %v560, %v565
        %v578 = vadd.f32 %v561, %v565
        %v579 = vadd.f32 %v562, %v565
        %v580 = vadd.f32 %v563, %v565
        %v581 = vadd.f32 %v564, %v565
        %v582 = vpack.c.bf16 %v566, %v566
        %v583 = vpack.c.bf16 %v567, %v567
        %v584 = vpack.c.bf16 %v568, %v568
        %v585 = vpack.c.bf16 %v569, %v569
        %v586 = vpack.c.bf16 %v570, %v570
        %v587 = vpack.c.bf16 %v571, %v571
        %v588 = vpack.c.bf16 %v572, %v572
        %v589 = vpack.c.bf16 %v573, %v573
        %v590 = vpack.c.bf16 %v574, %v574
        %v591 = vpack.c.bf16 %v575, %v575
        %v592 = vpack.c.bf16 %v576, %v576
        %v593 = vpack.c.bf16 %v577, %v577
        %v594 = vpack.c.bf16 %v578, %v578
        %v595 = vpack.c.bf16 %v579, %v579
        %v596 = vpack.c.bf16 %v580, %v580
        %v597 = vpack.c.bf16 %v581, %v581
        %v598 = vunpack.c.l.bf16 %v582
        %v599 = vunpack.c.l.bf16 %v583
        %v600 = vunpack.c.l.bf16 %v584
        %v601 = vunpack.c.l.bf16 %v585
        %v602 = vunpack.c.l.bf16 %v586
        %v603 = vunpack.c.l.bf16 %v587
        %v604 = vunpack.c.l.bf16 %v588
        %v605 = vunpack.c.l.bf16 %v589
        %v606 = vunpack.c.l.bf16 %v590
        %v607 = vunpack.c.l.bf16 %v591
        %v608 = vunpack.c.l.bf16 %v592
        %v609 = vunpack.c.l.bf16 %v593
        %v610 = vunpack.c.l.bf16 %v594
        %v611 = vunpack.c.l.bf16 %v595
        %v612 = vunpack.c.l.bf16 %v596
        %v613 = vunpack.c.l.bf16 %v597
        %v614 = vmul.f32 %v598, 0.5
        %v615 = vmul.f32 %v599, 0.5
        %v616 = vmul.f32 %v600, 0.5
        %v617 = vmul.f32 %v601, 0.5
        %v618 = vmul.f32 %v602, 0.5
        %v619 = vmul.f32 %v603, 0.5
        %v620 = vmul.f32 %v604, 0.5
        %v621 = vmul.f32 %v605, 0.5
        %v622 = vmul.f32 %v606, 0.5
        %v623 = vmul.f32 %v607, 0.5
        %v624 = vmul.f32 %v608, 0.5
        %v625 = vmul.f32 %v609, 0.5
        %v626 = vmul.f32 %v610, 0.5
        %v627 = vmul.f32 %v611, 0.5
        %v628 = vmul.f32 %v612, 0.5
        %v629 = vmul.f32 %v613, 0.5
        %v630 = vpack.c.bf16 %v614, %v614
        %v631 = vpack.c.bf16 %v615, %v615
        %v632 = vpack.c.bf16 %v616, %v616
        %v633 = vpack.c.bf16 %v617, %v617
        %v634 = vpack.c.bf16 %v618, %v618
        %v635 = vpack.c.bf16 %v619, %v619
        %v636 = vpack.c.bf16 %v620, %v620
        %v637 = vpack.c.bf16 %v621, %v621
        %v638 = vpack.c.bf16 %v622, %v622
        %v639 = vpack.c.bf16 %v623, %v623
        %v640 = vpack.c.bf16 %v624, %v624
        %v641 = vpack.c.bf16 %v625, %v625
        %v642 = vpack.c.bf16 %v626, %v626
        %v643 = vpack.c.bf16 %v627, %v627
        %v644 = vpack.c.bf16 %v628, %v628
        %v645 = vpack.c.bf16 %v629, %v629
        %v646 = vmul.f32 %v598, %v598
        %v647 = vmul.f32 %v599, %v599
        %v648 = vmul.f32 %v600, %v600
        %v649 = vmul.f32 %v601, %v601
        %v650 = vmul.f32 %v602, %v602
        %v651 = vmul.f32 %v603, %v603
        %v652 = vmul.f32 %v604, %v604
        %v653 = vmul.f32 %v605, %v605
        %v654 = vmul.f32 %v606, %v606
        %v655 = vmul.f32 %v607, %v607
        %v656 = vmul.f32 %v608, %v608
        %v657 = vmul.f32 %v609, %v609
        %v658 = vmul.f32 %v610, %v610
        %v659 = vmul.f32 %v611, %v611
        %v660 = vmul.f32 %v612, %v612
        %v661 = vmul.f32 %v613, %v613
        %v662 = vpack.c.bf16 %v646, %v646
        %v663 = vpack.c.bf16 %v647, %v647
        %v664 = vpack.c.bf16 %v648, %v648
        %v665 = vpack.c.bf16 %v649, %v649
        %v666 = vpack.c.bf16 %v650, %v650
        %v667 = vpack.c.bf16 %v651, %v651
        %v668 = vpack.c.bf16 %v652, %v652
        %v669 = vpack.c.bf16 %v653, %v653
        %v670 = vpack.c.bf16 %v654, %v654
        %v671 = vpack.c.bf16 %v655, %v655
        %v672 = vpack.c.bf16 %v656, %v656
        %v673 = vpack.c.bf16 %v657, %v657
        %v674 = vpack.c.bf16 %v658, %v658
        %v675 = vpack.c.bf16 %v659, %v659
        %v676 = vpack.c.bf16 %v660, %v660
        %v677 = vpack.c.bf16 %v661, %v661
        %v678 = vunpack.c.l.bf16 %v662
        %v679 = vunpack.c.l.bf16 %v663
        %v680 = vunpack.c.l.bf16 %v664
        %v681 = vunpack.c.l.bf16 %v665
        %v682 = vunpack.c.l.bf16 %v666
        %v683 = vunpack.c.l.bf16 %v667
        %v684 = vunpack.c.l.bf16 %v668
        %v685 = vunpack.c.l.bf16 %v669
        %v686 = vunpack.c.l.bf16 %v670
        %v687 = vunpack.c.l.bf16 %v671
        %v688 = vunpack.c.l.bf16 %v672
        %v689 = vunpack.c.l.bf16 %v673
        %v690 = vunpack.c.l.bf16 %v674
        %v691 = vunpack.c.l.bf16 %v675
        %v692 = vunpack.c.l.bf16 %v676
        %v693 = vunpack.c.l.bf16 %v677
        %v694 = vmul.f32 %v678, %v598
        %v695 = vmul.f32 %v679, %v599
        %v696 = vmul.f32 %v680, %v600
        %v697 = vmul.f32 %v681, %v601
        %v698 = vmul.f32 %v682, %v602
        %v699 = vmul.f32 %v683, %v603
        %v700 = vmul.f32 %v684, %v604
        %v701 = vmul.f32 %v685, %v605
        %v702 = vmul.f32 %v686, %v606
        %v703 = vmul.f32 %v687, %v607
        %v704 = vmul.f32 %v688, %v608
        %v705 = vmul.f32 %v689, %v609
        %v706 = vmul.f32 %v690, %v610
        %v707 = vmul.f32 %v691, %v611
        %v708 = vmul.f32 %v692, %v612
        %v709 = vmul.f32 %v693, %v613
        %v710 = vpack.c.bf16 %v694, %v694
        %v711 = vpack.c.bf16 %v695, %v695
        %v712 = vpack.c.bf16 %v696, %v696
        %v713 = vpack.c.bf16 %v697, %v697
        %v714 = vpack.c.bf16 %v698, %v698
        %v715 = vpack.c.bf16 %v699, %v699
        %v716 = vpack.c.bf16 %v700, %v700
        %v717 = vpack.c.bf16 %v701, %v701
        %v718 = vpack.c.bf16 %v702, %v702
        %v719 = vpack.c.bf16 %v703, %v703
        %v720 = vpack.c.bf16 %v704, %v704
        %v721 = vpack.c.bf16 %v705, %v705
        %v722 = vpack.c.bf16 %v706, %v706
        %v723 = vpack.c.bf16 %v707, %v707
        %v724 = vpack.c.bf16 %v708, %v708
        %v725 = vpack.c.bf16 %v709, %v709
        %v726 = vunpack.c.l.bf16 %v710
        %v727 = vunpack.c.l.bf16 %v711
        %v728 = vunpack.c.l.bf16 %v712
        %v729 = vunpack.c.l.bf16 %v713
        %v730 = vunpack.c.l.bf16 %v714
        %v731 = vunpack.c.l.bf16 %v715
        %v732 = vunpack.c.l.bf16 %v716
        %v733 = vunpack.c.l.bf16 %v717
        %v734 = vunpack.c.l.bf16 %v718
        %v735 = vunpack.c.l.bf16 %v719
        %v736 = vunpack.c.l.bf16 %v720
        %v737 = vunpack.c.l.bf16 %v721
        %v738 = vunpack.c.l.bf16 %v722
        %v739 = vunpack.c.l.bf16 %v723
        %v740 = vunpack.c.l.bf16 %v724
        %v741 = vunpack.c.l.bf16 %v725
        %v742 = vmul.f32 %v726, 0.044677734
        %v743 = vmul.f32 %v727, 0.044677734
        %v744 = vmul.f32 %v728, 0.044677734
        %v745 = vmul.f32 %v729, 0.044677734
        %v746 = vmul.f32 %v730, 0.044677734
        %v747 = vmul.f32 %v731, 0.044677734
        %v748 = vmul.f32 %v732, 0.044677734
        %v749 = vmul.f32 %v733, 0.044677734
        %v750 = vmul.f32 %v734, 0.044677734
        %v751 = vmul.f32 %v735, 0.044677734
        %v752 = vmul.f32 %v736, 0.044677734
        %v753 = vmul.f32 %v737, 0.044677734
        %v754 = vmul.f32 %v738, 0.044677734
        %v755 = vmul.f32 %v739, 0.044677734
        %v756 = vmul.f32 %v740, 0.044677734
        %v757 = vmul.f32 %v741, 0.044677734
        %v758 = vpack.c.bf16 %v742, %v742
        %v759 = vpack.c.bf16 %v743, %v743
        %v760 = vpack.c.bf16 %v744, %v744
        %v761 = vpack.c.bf16 %v745, %v745
        %v762 = vpack.c.bf16 %v746, %v746
        %v763 = vpack.c.bf16 %v747, %v747
        %v764 = vpack.c.bf16 %v748, %v748
        %v765 = vpack.c.bf16 %v749, %v749
        %v766 = vpack.c.bf16 %v750, %v750
        %v767 = vpack.c.bf16 %v751, %v751
        %v768 = vpack.c.bf16 %v752, %v752
        %v769 = vpack.c.bf16 %v753, %v753
        %v770 = vpack.c.bf16 %v754, %v754
        %v771 = vpack.c.bf16 %v755, %v755
        %v772 = vpack.c.bf16 %v756, %v756
        %v773 = vpack.c.bf16 %v757, %v757
        %v774 = vunpack.c.l.bf16 %v758
        %v775 = vunpack.c.l.bf16 %v759
        %v776 = vunpack.c.l.bf16 %v760
        %v777 = vunpack.c.l.bf16 %v761
        %v778 = vunpack.c.l.bf16 %v762
        %v779 = vunpack.c.l.bf16 %v763
        %v780 = vunpack.c.l.bf16 %v764
        %v781 = vunpack.c.l.bf16 %v765
        %v782 = vunpack.c.l.bf16 %v766
        %v783 = vunpack.c.l.bf16 %v767
        %v784 = vunpack.c.l.bf16 %v768
        %v785 = vunpack.c.l.bf16 %v769
        %v786 = vunpack.c.l.bf16 %v770
        %v787 = vunpack.c.l.bf16 %v771
        %v788 = vunpack.c.l.bf16 %v772
        %v789 = vunpack.c.l.bf16 %v773
        %v790 = vadd.f32 %v598, %v774
        %v791 = vadd.f32 %v599, %v775
        %v792 = vadd.f32 %v600, %v776
        %v793 = vadd.f32 %v601, %v777
        %v794 = vadd.f32 %v602, %v778
        %v795 = vadd.f32 %v603, %v779
        %v796 = vadd.f32 %v604, %v780
        %v797 = vadd.f32 %v605, %v781
        %v798 = vadd.f32 %v606, %v782
        %v799 = vadd.f32 %v607, %v783
        %v800 = vadd.f32 %v608, %v784
        %v801 = vadd.f32 %v609, %v785
        %v802 = vadd.f32 %v610, %v786
        %v803 = vadd.f32 %v611, %v787
        %v804 = vadd.f32 %v612, %v788
        %v805 = vadd.f32 %v613, %v789
        %v806 = vpack.c.bf16 %v790, %v790
        %v807 = vpack.c.bf16 %v791, %v791
        %v808 = vpack.c.bf16 %v792, %v792
        %v809 = vpack.c.bf16 %v793, %v793
        %v810 = vpack.c.bf16 %v794, %v794
        %v811 = vpack.c.bf16 %v795, %v795
        %v812 = vpack.c.bf16 %v796, %v796
        %v813 = vpack.c.bf16 %v797, %v797
        %v814 = vpack.c.bf16 %v798, %v798
        %v815 = vpack.c.bf16 %v799, %v799
        %v816 = vpack.c.bf16 %v800, %v800
        %v817 = vpack.c.bf16 %v801, %v801
        %v818 = vpack.c.bf16 %v802, %v802
        %v819 = vpack.c.bf16 %v803, %v803
        %v820 = vpack.c.bf16 %v804, %v804
        %v821 = vpack.c.bf16 %v805, %v805
        %v822 = vunpack.c.l.bf16 %v806
        %v823 = vunpack.c.l.bf16 %v807
        %v824 = vunpack.c.l.bf16 %v808
        %v825 = vunpack.c.l.bf16 %v809
        %v826 = vunpack.c.l.bf16 %v810
        %v827 = vunpack.c.l.bf16 %v811
        %v828 = vunpack.c.l.bf16 %v812
        %v829 = vunpack.c.l.bf16 %v813
        %v830 = vunpack.c.l.bf16 %v814
        %v831 = vunpack.c.l.bf16 %v815
        %v832 = vunpack.c.l.bf16 %v816
        %v833 = vunpack.c.l.bf16 %v817
        %v834 = vunpack.c.l.bf16 %v818
        %v835 = vunpack.c.l.bf16 %v819
        %v836 = vunpack.c.l.bf16 %v820
        %v837 = vunpack.c.l.bf16 %v821
        %v838 = vmul.f32 %v822, 0.796875
        %v839 = vmul.f32 %v823, 0.796875
        %v840 = vmul.f32 %v824, 0.796875
        %v841 = vmul.f32 %v825, 0.796875
        %v842 = vmul.f32 %v826, 0.796875
        %v843 = vmul.f32 %v827, 0.796875
        %v844 = vmul.f32 %v828, 0.796875
        %v845 = vmul.f32 %v829, 0.796875
        %v846 = vmul.f32 %v830, 0.796875
        %v847 = vmul.f32 %v831, 0.796875
        %v848 = vmul.f32 %v832, 0.796875
        %v849 = vmul.f32 %v833, 0.796875
        %v850 = vmul.f32 %v834, 0.796875
        %v851 = vmul.f32 %v835, 0.796875
        %v852 = vmul.f32 %v836, 0.796875
        %v853 = vmul.f32 %v837, 0.796875
        %v854 = vpack.c.bf16 %v838, %v838
        %v855 = vpack.c.bf16 %v839, %v839
        %v856 = vpack.c.bf16 %v840, %v840
        %v857 = vpack.c.bf16 %v841, %v841
        %v858 = vpack.c.bf16 %v842, %v842
        %v859 = vpack.c.bf16 %v843, %v843
        %v860 = vpack.c.bf16 %v844, %v844
        %v861 = vpack.c.bf16 %v845, %v845
        %v862 = vpack.c.bf16 %v846, %v846
        %v863 = vpack.c.bf16 %v847, %v847
        %v864 = vpack.c.bf16 %v848, %v848
        %v865 = vpack.c.bf16 %v849, %v849
        %v866 = vpack.c.bf16 %v850, %v850
        %v867 = vpack.c.bf16 %v851, %v851
        %v868 = vpack.c.bf16 %v852, %v852
        %v869 = vpack.c.bf16 %v853, %v853
        %v870 = vunpack.c.l.bf16 %v854
        %v871 = vunpack.c.l.bf16 %v855
        %v872 = vunpack.c.l.bf16 %v856
        %v873 = vunpack.c.l.bf16 %v857
        %v874 = vunpack.c.l.bf16 %v858
        %v875 = vunpack.c.l.bf16 %v859
        %v876 = vunpack.c.l.bf16 %v860
        %v877 = vunpack.c.l.bf16 %v861
        %v878 = vunpack.c.l.bf16 %v862
        %v879 = vunpack.c.l.bf16 %v863
        %v880 = vunpack.c.l.bf16 %v864
        %v881 = vunpack.c.l.bf16 %v865
        %v882 = vunpack.c.l.bf16 %v866
        %v883 = vunpack.c.l.bf16 %v867
        %v884 = vunpack.c.l.bf16 %v868
        %v885 = vunpack.c.l.bf16 %v869
        %v886 = vtanh.pop %v870
        %v887 = vtanh.pop %v871
        %v888 = vtanh.pop %v872
        %v889 = vtanh.pop %v873
        %v890 = vtanh.pop %v874
        %v891 = vtanh.pop %v875
        %v892 = vtanh.pop %v876
        %v893 = vtanh.pop %v877
        %v894 = vtanh.pop %v878
        %v895 = vtanh.pop %v879
        %v896 = vtanh.pop %v880
        %v897 = vtanh.pop %v881
        %v898 = vtanh.pop %v882
        %v899 = vtanh.pop %v883
        %v900 = vtanh.pop %v884
        %v901 = vtanh.pop %v885
        %v902 = vpack.c.bf16 %v886, %v886
        %v903 = vpack.c.bf16 %v887, %v887
        %v904 = vpack.c.bf16 %v888, %v888
        %v905 = vpack.c.bf16 %v889, %v889
        %v906 = vpack.c.bf16 %v890, %v890
        %v907 = vpack.c.bf16 %v891, %v891
        %v908 = vpack.c.bf16 %v892, %v892
        %v909 = vpack.c.bf16 %v893, %v893
        %v910 = vpack.c.bf16 %v894, %v894
        %v911 = vpack.c.bf16 %v895, %v895
        %v912 = vpack.c.bf16 %v896, %v896
        %v913 = vpack.c.bf16 %v897, %v897
        %v914 = vpack.c.bf16 %v898, %v898
        %v915 = vpack.c.bf16 %v899, %v899
        %v916 = vpack.c.bf16 %v900, %v900
        %v917 = vpack.c.bf16 %v901, %v901
        %v918 = vunpack.c.l.bf16 %v902
        %v919 = vunpack.c.l.bf16 %v903
        %v920 = vunpack.c.l.bf16 %v904
        %v921 = vunpack.c.l.bf16 %v905
        %v922 = vunpack.c.l.bf16 %v906
        %v923 = vunpack.c.l.bf16 %v907
        %v924 = vunpack.c.l.bf16 %v908
        %v925 = vunpack.c.l.bf16 %v909
        %v926 = vunpack.c.l.bf16 %v910
        %v927 = vunpack.c.l.bf16 %v911
        %v928 = vunpack.c.l.bf16 %v912
        %v929 = vunpack.c.l.bf16 %v913
        %v930 = vunpack.c.l.bf16 %v914
        %v931 = vunpack.c.l.bf16 %v915
        %v932 = vunpack.c.l.bf16 %v916
        %v933 = vunpack.c.l.bf16 %v917
        %v934 = vadd.f32 %v918, 1.0
        %v935 = vadd.f32 %v919, 1.0
        %v936 = vadd.f32 %v920, 1.0
        %v937 = vadd.f32 %v921, 1.0
        %v938 = vadd.f32 %v922, 1.0
        %v939 = vadd.f32 %v923, 1.0
        %v940 = vadd.f32 %v924, 1.0
        %v941 = vadd.f32 %v925, 1.0
        %v942 = vadd.f32 %v926, 1.0
        %v943 = vadd.f32 %v927, 1.0
        %v944 = vadd.f32 %v928, 1.0
        %v945 = vadd.f32 %v929, 1.0
        %v946 = vadd.f32 %v930, 1.0
        %v947 = vadd.f32 %v931, 1.0
        %v948 = vadd.f32 %v932, 1.0
        %v949 = vadd.f32 %v933, 1.0
        %v950 = vpack.c.bf16 %v934, %v934
        %v951 = vpack.c.bf16 %v935, %v935
        %v952 = vpack.c.bf16 %v936, %v936
        %v953 = vpack.c.bf16 %v937, %v937
        %v954 = vpack.c.bf16 %v938, %v938
        %v955 = vpack.c.bf16 %v939, %v939
        %v956 = vpack.c.bf16 %v940, %v940
        %v957 = vpack.c.bf16 %v941, %v941
        %v958 = vpack.c.bf16 %v942, %v942
        %v959 = vpack.c.bf16 %v943, %v943
        %v960 = vpack.c.bf16 %v944, %v944
        %v961 = vpack.c.bf16 %v945, %v945
        %v962 = vpack.c.bf16 %v946, %v946
        %v963 = vpack.c.bf16 %v947, %v947
        %v964 = vpack.c.bf16 %v948, %v948
        %v965 = vpack.c.bf16 %v949, %v949
        %v966 = vunpack.c.l.bf16 %v630
        %v967 = vunpack.c.l.bf16 %v631
        %v968 = vunpack.c.l.bf16 %v632
        %v969 = vunpack.c.l.bf16 %v633
        %v970 = vunpack.c.l.bf16 %v634
        %v971 = vunpack.c.l.bf16 %v635
        %v972 = vunpack.c.l.bf16 %v636
        %v973 = vunpack.c.l.bf16 %v637
        %v974 = vunpack.c.l.bf16 %v638
        %v975 = vunpack.c.l.bf16 %v639
        %v976 = vunpack.c.l.bf16 %v640
        %v977 = vunpack.c.l.bf16 %v641
        %v978 = vunpack.c.l.bf16 %v642
        %v979 = vunpack.c.l.bf16 %v643
        %v980 = vunpack.c.l.bf16 %v644
        %v981 = vunpack.c.l.bf16 %v645
        %v982 = vunpack.c.l.bf16 %v950
        %v983 = vunpack.c.l.bf16 %v951
        %v984 = vunpack.c.l.bf16 %v952
        %v985 = vunpack.c.l.bf16 %v953
        %v986 = vunpack.c.l.bf16 %v954
        %v987 = vunpack.c.l.bf16 %v955
        %v988 = vunpack.c.l.bf16 %v956
        %v989 = vunpack.c.l.bf16 %v957
        %v990 = vunpack.c.l.bf16 %v958
        %v991 = vunpack.c.l.bf16 %v959
        %v992 = vunpack.c.l.bf16 %v960
        %v993 = vunpack.c.l.bf16 %v961
        %v994 = vunpack.c.l.bf16 %v962
        %v995 = vunpack.c.l.bf16 %v963
        %v996 = vunpack.c.l.bf16 %v964
        %v997 = vunpack.c.l.bf16 %v965
        %v998 = vmul.f32 %v966, %v982
        %v999 = vmul.f32 %v967, %v983
        %v1000 = vmul.f32 %v968, %v984
        %v1001 = vmul.f32 %v969, %v985
        %v1002 = vmul.f32 %v970, %v986
        %v1003 = vmul.f32 %v971, %v987
        %v1004 = vmul.f32 %v972, %v988
        %v1005 = vmul.f32 %v973, %v989
        %v1006 = vmul.f32 %v974, %v990
        %v1007 = vmul.f32 %v975, %v991
        %v1008 = vmul.f32 %v976, %v992
        %v1009 = vmul.f32 %v977, %v993
        %v1010 = vmul.f32 %v978, %v994
        %v1011 = vmul.f32 %v979, %v995
        %v1012 = vmul.f32 %v980, %v996
        %v1013 = vmul.f32 %v981, %v997
        %v1014 = vpack.c.bf16 %v998, %v998
        %v1015 = vpack.c.bf16 %v999, %v999
        %v1016 = vpack.c.bf16 %v1000, %v1000
        %v1017 = vpack.c.bf16 %v1001, %v1001
        %v1018 = vpack.c.bf16 %v1002, %v1002
        %v1019 = vpack.c.bf16 %v1003, %v1003
        %v1020 = vpack.c.bf16 %v1004, %v1004
        %v1021 = vpack.c.bf16 %v1005, %v1005
        %v1022 = vpack.c.bf16 %v1006, %v1006
        %v1023 = vpack.c.bf16 %v1007, %v1007
        %v1024 = vpack.c.bf16 %v1008, %v1008
        %v1025 = vpack.c.bf16 %v1009, %v1009
        %v1026 = vpack.c.bf16 %v1010, %v1010
        %v1027 = vpack.c.bf16 %v1011, %v1011
        %v1028 = vpack.c.bf16 %v1012, %v1012
        %v1029 = vpack.c.bf16 %v1013, %v1013
        %v1030 = vld [vmem:[#allocation7] sm:$0xf]
        %v1031 = vld [vmem:[#allocation7 + $0x4] sm:$0xf]
        %v1032 = vld [vmem:[#allocation7 + $0x8] sm:$0xf]
        %v1033 = vld [vmem:[#allocation7 + $0xc] sm:$0xf]
        %v1034 = vld [vmem:[#allocation7 + $0x10] sm:$0xf]
        %v1035 = vld [vmem:[#allocation7 + $0x14] sm:$0xf]
        %v1036 = vld [vmem:[#allocation7 + $0x18] sm:$0xf]
        %v1037 = vld [vmem:[#allocation7 + $0x1c] sm:$0xf]
        %v1038 = vld [vmem:[#allocation7 + $0x20] sm:$0xf]
        %v1039 = vld [vmem:[#allocation7 + $0x24] sm:$0xf]
        %v1040 = vld [vmem:[#allocation7 + $0x28] sm:$0xf]
        %v1041 = vld [vmem:[#allocation7 + $0x2c] sm:$0xf]
        %v1042 = vld [vmem:[#allocation7 + $0x30] sm:$0xf]
        %v1043 = vld [vmem:[#allocation7 + $0x34] sm:$0xf]
        %v1044 = vld [vmem:[#allocation7 + $0x38] sm:$0xf]
        %v1045 = vld [vmem:[#allocation7 + $0x3c] sm:$0xf]
        %v1046 = vld [vmem:[%s4] sm:$0x1]
        %v1063 = vunpack.c.l.b16 %v1014
        %v1064 = vunpack.c.l.b16 %v1015
        %v1065 = vunpack.c.l.b16 %v1016
        %v1066 = vunpack.c.l.b16 %v1017
        %v1067 = vunpack.c.l.b16 %v1018
        %v1068 = vunpack.c.l.b16 %v1019
        %v1069 = vunpack.c.l.b16 %v1020
        %v1070 = vunpack.c.l.b16 %v1021
        %v1071 = vunpack.c.l.b16 %v1022
        %v1072 = vunpack.c.l.b16 %v1023
        %v1073 = vunpack.c.l.b16 %v1024
        %v1074 = vunpack.c.l.b16 %v1025
        %v1075 = vunpack.c.l.b16 %v1026
        %v1076 = vunpack.c.l.b16 %v1027
        %v1077 = vunpack.c.l.b16 %v1028
        %v1078 = vunpack.c.l.b16 %v1029
        %v1079 = vpack.c.b16 %v1064, %v1063
        %v1080 = vpack.c.b16 %v1066, %v1065
        %v1081 = vpack.c.b16 %v1068, %v1067
        %v1082 = vpack.c.b16 %v1070, %v1069
        %v1083 = vpack.c.b16 %v1072, %v1071
        %v1084 = vpack.c.b16 %v1074, %v1073
        %v1085 = vpack.c.b16 %v1076, %v1075
        %v1086 = vpack.c.b16 %v1078, %v1077
        %v1111 = vunpack.c.l.b16 %v1030
        %v1112 = vunpack.c.l.b16 %v1031
        %v1113 = vunpack.c.l.b16 %v1032
        %v1114 = vunpack.c.l.b16 %v1033
        %v1115 = vunpack.c.l.b16 %v1034
        %v1116 = vunpack.c.l.b16 %v1035
        %v1117 = vunpack.c.l.b16 %v1036
        %v1118 = vunpack.c.l.b16 %v1037
        %v1119 = vunpack.c.l.b16 %v1038
        %v1120 = vunpack.c.l.b16 %v1039
        %v1121 = vunpack.c.l.b16 %v1040
        %v1122 = vunpack.c.l.b16 %v1041
        %v1123 = vunpack.c.l.b16 %v1042
        %v1124 = vunpack.c.l.b16 %v1043
        %v1125 = vunpack.c.l.b16 %v1044
        %v1126 = vunpack.c.l.b16 %v1045
        %v1127 = vpack.c.b16 %v1112, %v1111
        %v1128 = vpack.c.b16 %v1114, %v1113
        %v1129 = vpack.c.b16 %v1116, %v1115
        %v1130 = vpack.c.b16 %v1118, %v1117
        %v1131 = vpack.c.b16 %v1120, %v1119
        %v1132 = vpack.c.b16 %v1122, %v1121
        %v1133 = vpack.c.b16 %v1124, %v1123
        %v1134 = vpack.c.b16 %v1126, %v1125
        %1143 = vmatpush.bf16.msra.mxu0 %v1134
        %1144 = vmatpush.bf16.msra.mxu0 %v1133
        %1145 = vmatpush.bf16.msra.mxu0 %v1132
        %1146 = vmatpush.bf16.msra.mxu0 %v1131
        %1147 = vmatpush.bf16.msra.mxu0 %v1130
        %1148 = vmatpush.bf16.msra.mxu0 %v1129
        %1149 = vmatpush.bf16.msra.mxu0 %v1128
        %1150 = vmatpush.bf16.msra.mxu0 %v1127
        %1151 = vmatmul.bf16.gmra.mxu0 %v1079
        %v1152 = vpop.f32.mrf.mxu0
        %v1153 = vadd.f32 0.0, %v1152
        %v1154 = vpop.f32.mrf.mxu0
        %v1155 = vadd.f32 0.0, %v1154
        %1156 = vmatmul.bf16.gmra.mxu0 %v1080
        %v1157 = vpop.f32.mrf.mxu0
        %v1158 = vadd.f32 0.0, %v1157
        %v1159 = vpop.f32.mrf.mxu0
        %v1160 = vadd.f32 0.0, %v1159
        %1161 = vmatmul.bf16.gmra.mxu0 %v1081
        %v1162 = vpop.f32.mrf.mxu0
        %v1163 = vadd.f32 0.0, %v1162
        %v1164 = vpop.f32.mrf.mxu0
        %v1165 = vadd.f32 0.0, %v1164
        %1166 = vmatmul.bf16.gmra.mxu0 %v1082
        %v1167 = vpop.f32.mrf.mxu0
        %v1168 = vadd.f32 0.0, %v1167
        %v1169 = vpop.f32.mrf.mxu0
        %v1170 = vadd.f32 0.0, %v1169
        %1171 = vmatmul.bf16.gmra.mxu0 %v1083
        %v1172 = vpop.f32.mrf.mxu0
        %v1173 = vadd.f32 0.0, %v1172
        %v1174 = vpop.f32.mrf.mxu0
        %v1175 = vadd.f32 0.0, %v1174
        %1176 = vmatmul.bf16.gmra.mxu0 %v1084
        %v1177 = vpop.f32.mrf.mxu0
        %v1178 = vadd.f32 0.0, %v1177
        %v1179 = vpop.f32.mrf.mxu0
        %v1180 = vadd.f32 0.0, %v1179
        %1181 = vmatmul.bf16.gmra.mxu0 %v1085
        %v1182 = vpop.f32.mrf.mxu0
        %v1183 = vadd.f32 0.0, %v1182
        %v1184 = vpop.f32.mrf.mxu0
        %v1185 = vadd.f32 0.0, %v1184
        %1186 = vmatmul.bf16.gmra.mxu0 %v1086
        %v1187 = vpop.f32.mrf.mxu0
        %v1188 = vadd.f32 0.0, %v1187
        %v1189 = vpop.f32.mrf.mxu0
        %v1190 = vadd.f32 0.0, %v1189
        %1191 = vdwg.mxu0
        %v1192 = vpack.c.bf16 %v1153, %v1153
        %v1193 = vpack.c.bf16 %v1155, %v1155
        %v1194 = vpack.c.bf16 %v1158, %v1158
        %v1195 = vpack.c.bf16 %v1160, %v1160
        %v1196 = vpack.c.bf16 %v1163, %v1163
        %v1197 = vpack.c.bf16 %v1165, %v1165
        %v1198 = vpack.c.bf16 %v1168, %v1168
        %v1199 = vpack.c.bf16 %v1170, %v1170
        %v1200 = vpack.c.bf16 %v1173, %v1173
        %v1201 = vpack.c.bf16 %v1175, %v1175
        %v1202 = vpack.c.bf16 %v1178, %v1178
        %v1203 = vpack.c.bf16 %v1180, %v1180
        %v1204 = vpack.c.bf16 %v1183, %v1183
        %v1205 = vpack.c.bf16 %v1185, %v1185
        %v1206 = vpack.c.bf16 %v1188, %v1188
        %v1207 = vpack.c.bf16 %v1190, %v1190
        %v1209 = vpack.i.b16 %v1046, %v1046
        %v1211 = vperm.slane %v1209, 0
        %v1212 = vunpack.c.l.bf16 %v1192
        %v1213 = vunpack.c.l.bf16 %v1193
        %v1214 = vunpack.c.l.bf16 %v1194
        %v1215 = vunpack.c.l.bf16 %v1195
        %v1216 = vunpack.c.l.bf16 %v1196
        %v1217 = vunpack.c.l.bf16 %v1197
        %v1218 = vunpack.c.l.bf16 %v1198
        %v1219 = vunpack.c.l.bf16 %v1199
        %v1220 = vunpack.c.l.bf16 %v1200
        %v1221 = vunpack.c.l.bf16 %v1201
        %v1222 = vunpack.c.l.bf16 %v1202
        %v1223 = vunpack.c.l.bf16 %v1203
        %v1224 = vunpack.c.l.bf16 %v1204
        %v1225 = vunpack.c.l.bf16 %v1205
        %v1226 = vunpack.c.l.bf16 %v1206
        %v1227 = vunpack.c.l.bf16 %v1207
        %v1228 = vunpack.c.l.bf16 %v1211
        %v1229 = vadd.f32 %v1212, %v1228
        %v1230 = vadd.f32 %v1213, %v1228
        %v1231 = vadd.f32 %v1214, %v1228
        %v1232 = vadd.f32 %v1215, %v1228
        %v1233 = vadd.f32 %v1216, %v1228
        %v1234 = vadd.f32 %v1217, %v1228
        %v1235 = vadd.f32 %v1218, %v1228
        %v1236 = vadd.f32 %v1219, %v1228
        %v1237 = vadd.f32 %v1220, %v1228
        %v1238 = vadd.f32 %v1221, %v1228
        %v1239 = vadd.f32 %v1222, %v1228
        %v1240 = vadd.f32 %v1223, %v1228
        %v1241 = vadd.f32 %v1224, %v1228
        %v1242 = vadd.f32 %v1225, %v1228
        %v1243 = vadd.f32 %v1226, %v1228
        %v1244 = vadd.f32 %v1227, %v1228
        %v1245 = vpack.c.bf16 %v1229, %v1229
        %v1246 = vpack.c.bf16 %v1230, %v1230
        %v1247 = vpack.c.bf16 %v1231, %v1231
        %v1248 = vpack.c.bf16 %v1232, %v1232
        %v1249 = vpack.c.bf16 %v1233, %v1233
        %v1250 = vpack.c.bf16 %v1234, %v1234
        %v1251 = vpack.c.bf16 %v1235, %v1235
        %v1252 = vpack.c.bf16 %v1236, %v1236
        %v1253 = vpack.c.bf16 %v1237, %v1237
        %v1254 = vpack.c.bf16 %v1238, %v1238
        %v1255 = vpack.c.bf16 %v1239, %v1239
        %v1256 = vpack.c.bf16 %v1240, %v1240
        %v1257 = vpack.c.bf16 %v1241, %v1241
        %v1258 = vpack.c.bf16 %v1242, %v1242
        %v1259 = vpack.c.bf16 %v1243, %v1243
        %v1260 = vpack.c.bf16 %v1244, %v1244
        %v1261 = vunpack.c.l.bf16 %v1245
        %v1262 = vunpack.c.l.bf16 %v1246
        %v1263 = vunpack.c.l.bf16 %v1247
        %v1264 = vunpack.c.l.bf16 %v1248
        %v1265 = vunpack.c.l.bf16 %v1249
        %v1266 = vunpack.c.l.bf16 %v1250
        %v1267 = vunpack.c.l.bf16 %v1251
        %v1268 = vunpack.c.l.bf16 %v1252
        %v1269 = vunpack.c.l.bf16 %v1253
        %v1270 = vunpack.c.l.bf16 %v1254
        %v1271 = vunpack.c.l.bf16 %v1255
        %v1272 = vunpack.c.l.bf16 %v1256
        %v1273 = vunpack.c.l.bf16 %v1257
        %v1274 = vunpack.c.l.bf16 %v1258
        %v1275 = vunpack.c.l.bf16 %v1259
        %v1276 = vunpack.c.l.bf16 %v1260
        %v1277 = vmul.f32 %v1261, 0.5
        %v1278 = vmul.f32 %v1262, 0.5
        %v1279 = vmul.f32 %v1263, 0.5
        %v1280 = vmul.f32 %v1264, 0.5
        %v1281 = vmul.f32 %v1265, 0.5
        %v1282 = vmul.f32 %v1266, 0.5
        %v1283 = vmul.f32 %v1267, 0.5
        %v1284 = vmul.f32 %v1268, 0.5
        %v1285 = vmul.f32 %v1269, 0.5
        %v1286 = vmul.f32 %v1270, 0.5
        %v1287 = vmul.f32 %v1271, 0.5
        %v1288 = vmul.f32 %v1272, 0.5
        %v1289 = vmul.f32 %v1273, 0.5
        %v1290 = vmul.f32 %v1274, 0.5
        %v1291 = vmul.f32 %v1275, 0.5
        %v1292 = vmul.f32 %v1276, 0.5
        %v1293 = vpack.c.bf16 %v1277, %v1277
        %v1294 = vpack.c.bf16 %v1278, %v1278
        %v1295 = vpack.c.bf16 %v1279, %v1279
        %v1296 = vpack.c.bf16 %v1280, %v1280
        %v1297 = vpack.c.bf16 %v1281, %v1281
        %v1298 = vpack.c.bf16 %v1282, %v1282
        %v1299 = vpack.c.bf16 %v1283, %v1283
        %v1300 = vpack.c.bf16 %v1284, %v1284
        %v1301 = vpack.c.bf16 %v1285, %v1285
        %v1302 = vpack.c.bf16 %v1286, %v1286
        %v1303 = vpack.c.bf16 %v1287, %v1287
        %v1304 = vpack.c.bf16 %v1288, %v1288
        %v1305 = vpack.c.bf16 %v1289, %v1289
        %v1306 = vpack.c.bf16 %v1290, %v1290
        %v1307 = vpack.c.bf16 %v1291, %v1291
        %v1308 = vpack.c.bf16 %v1292, %v1292
        %v1309 = vmul.f32 %v1261, %v1261
        %v1310 = vmul.f32 %v1262, %v1262
        %v1311 = vmul.f32 %v1263, %v1263
        %v1312 = vmul.f32 %v1264, %v1264
        %v1313 = vmul.f32 %v1265, %v1265
        %v1314 = vmul.f32 %v1266, %v1266
        %v1315 = vmul.f32 %v1267, %v1267
        %v1316 = vmul.f32 %v1268, %v1268
        %v1317 = vmul.f32 %v1269, %v1269
        %v1318 = vmul.f32 %v1270, %v1270
        %v1319 = vmul.f32 %v1271, %v1271
        %v1320 = vmul.f32 %v1272, %v1272
        %v1321 = vmul.f32 %v1273, %v1273
        %v1322 = vmul.f32 %v1274, %v1274
        %v1323 = vmul.f32 %v1275, %v1275
        %v1324 = vmul.f32 %v1276, %v1276
        %v1325 = vpack.c.bf16 %v1309, %v1309
        %v1326 = vpack.c.bf16 %v1310, %v1310
        %v1327 = vpack.c.bf16 %v1311, %v1311
        %v1328 = vpack.c.bf16 %v1312, %v1312
        %v1329 = vpack.c.bf16 %v1313, %v1313
        %v1330 = vpack.c.bf16 %v1314, %v1314
        %v1331 = vpack.c.bf16 %v1315, %v1315
        %v1332 = vpack.c.bf16 %v1316, %v1316
        %v1333 = vpack.c.bf16 %v1317, %v1317
        %v1334 = vpack.c.bf16 %v1318, %v1318
        %v1335 = vpack.c.bf16 %v1319, %v1319
        %v1336 = vpack.c.bf16 %v1320, %v1320
        %v1337 = vpack.c.bf16 %v1321, %v1321
        %v1338 = vpack.c.bf16 %v1322, %v1322
        %v1339 = vpack.c.bf16 %v1323, %v1323
        %v1340 = vpack.c.bf16 %v1324, %v1324
        %v1341 = vunpack.c.l.bf16 %v1325
        %v1342 = vunpack.c.l.bf16 %v1326
        %v1343 = vunpack.c.l.bf16 %v1327
        %v1344 = vunpack.c.l.bf16 %v1328
        %v1345 = vunpack.c.l.bf16 %v1329
        %v1346 = vunpack.c.l.bf16 %v1330
        %v1347 = vunpack.c.l.bf16 %v1331
        %v1348 = vunpack.c.l.bf16 %v1332
        %v1349 = vunpack.c.l.bf16 %v1333
        %v1350 = vunpack.c.l.bf16 %v1334
        %v1351 = vunpack.c.l.bf16 %v1335
        %v1352 = vunpack.c.l.bf16 %v1336
        %v1353 = vunpack.c.l.bf16 %v1337
        %v1354 = vunpack.c.l.bf16 %v1338
        %v1355 = vunpack.c.l.bf16 %v1339
        %v1356 = vunpack.c.l.bf16 %v1340
        %v1357 = vmul.f32 %v1341, %v1261
        %v1358 = vmul.f32 %v1342, %v1262
        %v1359 = vmul.f32 %v1343, %v1263
        %v1360 = vmul.f32 %v1344, %v1264
        %v1361 = vmul.f32 %v1345, %v1265
        %v1362 = vmul.f32 %v1346, %v1266
        %v1363 = vmul.f32 %v1347, %v1267
        %v1364 = vmul.f32 %v1348, %v1268
        %v1365 = vmul.f32 %v1349, %v1269
        %v1366 = vmul.f32 %v1350, %v1270
        %v1367 = vmul.f32 %v1351, %v1271
        %v1368 = vmul.f32 %v1352, %v1272
        %v1369 = vmul.f32 %v1353, %v1273
        %v1370 = vmul.f32 %v1354, %v1274
        %v1371 = vmul.f32 %v1355, %v1275
        %v1372 = vmul.f32 %v1356, %v1276
        %v1373 = vpack.c.bf16 %v1357, %v1357
        %v1374 = vpack.c.bf16 %v1358, %v1358
        %v1375 = vpack.c.bf16 %v1359, %v1359
        %v1376 = vpack.c.bf16 %v1360, %v1360
        %v1377 = vpack.c.bf16 %v1361, %v1361
        %v1378 = vpack.c.bf16 %v1362, %v1362
        %v1379 = vpack.c.bf16 %v1363, %v1363
        %v1380 = vpack.c.bf16 %v1364, %v1364
        %v1381 = vpack.c.bf16 %v1365, %v1365
        %v1382 = vpack.c.bf16 %v1366, %v1366
        %v1383 = vpack.c.bf16 %v1367, %v1367
        %v1384 = vpack.c.bf16 %v1368, %v1368
        %v1385 = vpack.c.bf16 %v1369, %v1369
        %v1386 = vpack.c.bf16 %v1370, %v1370
        %v1387 = vpack.c.bf16 %v1371, %v1371
        %v1388 = vpack.c.bf16 %v1372, %v1372
        %v1389 = vunpack.c.l.bf16 %v1373
        %v1390 = vunpack.c.l.bf16 %v1374
        %v1391 = vunpack.c.l.bf16 %v1375
        %v1392 = vunpack.c.l.bf16 %v1376
        %v1393 = vunpack.c.l.bf16 %v1377
        %v1394 = vunpack.c.l.bf16 %v1378
        %v1395 = vunpack.c.l.bf16 %v1379
        %v1396 = vunpack.c.l.bf16 %v1380
        %v1397 = vunpack.c.l.bf16 %v1381
        %v1398 = vunpack.c.l.bf16 %v1382
        %v1399 = vunpack.c.l.bf16 %v1383
        %v1400 = vunpack.c.l.bf16 %v1384
        %v1401 = vunpack.c.l.bf16 %v1385
        %v1402 = vunpack.c.l.bf16 %v1386
        %v1403 = vunpack.c.l.bf16 %v1387
        %v1404 = vunpack.c.l.bf16 %v1388
        %v1405 = vmul.f32 %v1389, 0.044677734
        %v1406 = vmul.f32 %v1390, 0.044677734
        %v1407 = vmul.f32 %v1391, 0.044677734
        %v1408 = vmul.f32 %v1392, 0.044677734
        %v1409 = vmul.f32 %v1393, 0.044677734
        %v1410 = vmul.f32 %v1394, 0.044677734
        %v1411 = vmul.f32 %v1395, 0.044677734
        %v1412 = vmul.f32 %v1396, 0.044677734
        %v1413 = vmul.f32 %v1397, 0.044677734
        %v1414 = vmul.f32 %v1398, 0.044677734
        %v1415 = vmul.f32 %v1399, 0.044677734
        %v1416 = vmul.f32 %v1400, 0.044677734
        %v1417 = vmul.f32 %v1401, 0.044677734
        %v1418 = vmul.f32 %v1402, 0.044677734
        %v1419 = vmul.f32 %v1403, 0.044677734
        %v1420 = vmul.f32 %v1404, 0.044677734
        %v1421 = vpack.c.bf16 %v1405, %v1405
        %v1422 = vpack.c.bf16 %v1406, %v1406
        %v1423 = vpack.c.bf16 %v1407, %v1407
        %v1424 = vpack.c.bf16 %v1408, %v1408
        %v1425 = vpack.c.bf16 %v1409, %v1409
        %v1426 = vpack.c.bf16 %v1410, %v1410
        %v1427 = vpack.c.bf16 %v1411, %v1411
        %v1428 = vpack.c.bf16 %v1412, %v1412
        %v1429 = vpack.c.bf16 %v1413, %v1413
        %v1430 = vpack.c.bf16 %v1414, %v1414
        %v1431 = vpack.c.bf16 %v1415, %v1415
        %v1432 = vpack.c.bf16 %v1416, %v1416
        %v1433 = vpack.c.bf16 %v1417, %v1417
        %v1434 = vpack.c.bf16 %v1418, %v1418
        %v1435 = vpack.c.bf16 %v1419, %v1419
        %v1436 = vpack.c.bf16 %v1420, %v1420
        %v1437 = vunpack.c.l.bf16 %v1421
        %v1438 = vunpack.c.l.bf16 %v1422
        %v1439 = vunpack.c.l.bf16 %v1423
        %v1440 = vunpack.c.l.bf16 %v1424
        %v1441 = vunpack.c.l.bf16 %v1425
        %v1442 = vunpack.c.l.bf16 %v1426
        %v1443 = vunpack.c.l.bf16 %v1427
        %v1444 = vunpack.c.l.bf16 %v1428
        %v1445 = vunpack.c.l.bf16 %v1429
        %v1446 = vunpack.c.l.bf16 %v1430
        %v1447 = vunpack.c.l.bf16 %v1431
        %v1448 = vunpack.c.l.bf16 %v1432
        %v1449 = vunpack.c.l.bf16 %v1433
        %v1450 = vunpack.c.l.bf16 %v1434
        %v1451 = vunpack.c.l.bf16 %v1435
        %v1452 = vunpack.c.l.bf16 %v1436
        %v1453 = vadd.f32 %v1261, %v1437
        %v1454 = vadd.f32 %v1262, %v1438
        %v1455 = vadd.f32 %v1263, %v1439
        %v1456 = vadd.f32 %v1264, %v1440
        %v1457 = vadd.f32 %v1265, %v1441
        %v1458 = vadd.f32 %v1266, %v1442
        %v1459 = vadd.f32 %v1267, %v1443
        %v1460 = vadd.f32 %v1268, %v1444
        %v1461 = vadd.f32 %v1269, %v1445
        %v1462 = vadd.f32 %v1270, %v1446
        %v1463 = vadd.f32 %v1271, %v1447
        %v1464 = vadd.f32 %v1272, %v1448
        %v1465 = vadd.f32 %v1273, %v1449
        %v1466 = vadd.f32 %v1274, %v1450
        %v1467 = vadd.f32 %v1275, %v1451
        %v1468 = vadd.f32 %v1276, %v1452
        %v1469 = vpack.c.bf16 %v1453, %v1453
        %v1470 = vpack.c.bf16 %v1454, %v1454
        %v1471 = vpack.c.bf16 %v1455, %v1455
        %v1472 = vpack.c.bf16 %v1456, %v1456
        %v1473 = vpack.c.bf16 %v1457, %v1457
        %v1474 = vpack.c.bf16 %v1458, %v1458
        %v1475 = vpack.c.bf16 %v1459, %v1459
        %v1476 = vpack.c.bf16 %v1460, %v1460
        %v1477 = vpack.c.bf16 %v1461, %v1461
        %v1478 = vpack.c.bf16 %v1462, %v1462
        %v1479 = vpack.c.bf16 %v1463, %v1463
        %v1480 = vpack.c.bf16 %v1464, %v1464
        %v1481 = vpack.c.bf16 %v1465, %v1465
        %v1482 = vpack.c.bf16 %v1466, %v1466
        %v1483 = vpack.c.bf16 %v1467, %v1467
        %v1484 = vpack.c.bf16 %v1468, %v1468
        %v1485 = vunpack.c.l.bf16 %v1469
        %v1486 = vunpack.c.l.bf16 %v1470
        %v1487 = vunpack.c.l.bf16 %v1471
        %v1488 = vunpack.c.l.bf16 %v1472
        %v1489 = vunpack.c.l.bf16 %v1473
        %v1490 = vunpack.c.l.bf16 %v1474
        %v1491 = vunpack.c.l.bf16 %v1475
        %v1492 = vunpack.c.l.bf16 %v1476
        %v1493 = vunpack.c.l.bf16 %v1477
        %v1494 = vunpack.c.l.bf16 %v1478
        %v1495 = vunpack.c.l.bf16 %v1479
        %v1496 = vunpack.c.l.bf16 %v1480
        %v1497 = vunpack.c.l.bf16 %v1481
        %v1498 = vunpack.c.l.bf16 %v1482
        %v1499 = vunpack.c.l.bf16 %v1483
        %v1500 = vunpack.c.l.bf16 %v1484
        %v1501 = vmul.f32 %v1485, 0.796875
        %v1502 = vmul.f32 %v1486, 0.796875
        %v1503 = vmul.f32 %v1487, 0.796875
        %v1504 = vmul.f32 %v1488, 0.796875
        %v1505 = vmul.f32 %v1489, 0.796875
        %v1506 = vmul.f32 %v1490, 0.796875
        %v1507 = vmul.f32 %v1491, 0.796875
        %v1508 = vmul.f32 %v1492, 0.796875
        %v1509 = vmul.f32 %v1493, 0.796875
        %v1510 = vmul.f32 %v1494, 0.796875
        %v1511 = vmul.f32 %v1495, 0.796875
        %v1512 = vmul.f32 %v1496, 0.796875
        %v1513 = vmul.f32 %v1497, 0.796875
        %v1514 = vmul.f32 %v1498, 0.796875
        %v1515 = vmul.f32 %v1499, 0.796875
        %v1516 = vmul.f32 %v1500, 0.796875
        %v1517 = vpack.c.bf16 %v1501, %v1501
        %v1518 = vpack.c.bf16 %v1502, %v1502
        %v1519 = vpack.c.bf16 %v1503, %v1503
        %v1520 = vpack.c.bf16 %v1504, %v1504
        %v1521 = vpack.c.bf16 %v1505, %v1505
        %v1522 = vpack.c.bf16 %v1506, %v1506
        %v1523 = vpack.c.bf16 %v1507, %v1507
        %v1524 = vpack.c.bf16 %v1508, %v1508
        %v1525 = vpack.c.bf16 %v1509, %v1509
        %v1526 = vpack.c.bf16 %v1510, %v1510
        %v1527 = vpack.c.bf16 %v1511, %v1511
        %v1528 = vpack.c.bf16 %v1512, %v1512
        %v1529 = vpack.c.bf16 %v1513, %v1513
        %v1530 = vpack.c.bf16 %v1514, %v1514
        %v1531 = vpack.c.bf16 %v1515, %v1515
        %v1532 = vpack.c.bf16 %v1516, %v1516
        %v1533 = vunpack.c.l.bf16 %v1517
        %v1534 = vunpack.c.l.bf16 %v1518
        %v1535 = vunpack.c.l.bf16 %v1519
        %v1536 = vunpack.c.l.bf16 %v1520
        %v1537 = vunpack.c.l.bf16 %v1521
        %v1538 = vunpack.c.l.bf16 %v1522
        %v1539 = vunpack.c.l.bf16 %v1523
        %v1540 = vunpack.c.l.bf16 %v1524
        %v1541 = vunpack.c.l.bf16 %v1525
        %v1542 = vunpack.c.l.bf16 %v1526
        %v1543 = vunpack.c.l.bf16 %v1527
        %v1544 = vunpack.c.l.bf16 %v1528
        %v1545 = vunpack.c.l.bf16 %v1529
        %v1546 = vunpack.c.l.bf16 %v1530
        %v1547 = vunpack.c.l.bf16 %v1531
        %v1548 = vunpack.c.l.bf16 %v1532
        %v1549 = vtanh.pop %v1533
        %v1550 = vtanh.pop %v1534
        %v1551 = vtanh.pop %v1535
        %v1552 = vtanh.pop %v1536
        %v1553 = vtanh.pop %v1537
        %v1554 = vtanh.pop %v1538
        %v1555 = vtanh.pop %v1539
        %v1556 = vtanh.pop %v1540
        %v1557 = vtanh.pop %v1541
        %v1558 = vtanh.pop %v1542
        %v1559 = vtanh.pop %v1543
        %v1560 = vtanh.pop %v1544
        %v1561 = vtanh.pop %v1545
        %v1562 = vtanh.pop %v1546
        %v1563 = vtanh.pop %v1547
        %v1564 = vtanh.pop %v1548
        %v1565 = vpack.c.bf16 %v1549, %v1549
        %v1566 = vpack.c.bf16 %v1550, %v1550
        %v1567 = vpack.c.bf16 %v1551, %v1551
        %v1568 = vpack.c.bf16 %v1552, %v1552
        %v1569 = vpack.c.bf16 %v1553, %v1553
        %v1570 = vpack.c.bf16 %v1554, %v1554
        %v1571 = vpack.c.bf16 %v1555, %v1555
        %v1572 = vpack.c.bf16 %v1556, %v1556
        %v1573 = vpack.c.bf16 %v1557, %v1557
        %v1574 = vpack.c.bf16 %v1558, %v1558
        %v1575 = vpack.c.bf16 %v1559, %v1559
        %v1576 = vpack.c.bf16 %v1560, %v1560
        %v1577 = vpack.c.bf16 %v1561, %v1561
        %v1578 = vpack.c.bf16 %v1562, %v1562
        %v1579 = vpack.c.bf16 %v1563, %v1563
        %v1580 = vpack.c.bf16 %v1564, %v1564
        %v1581 = vunpack.c.l.bf16 %v1565
        %v1582 = vunpack.c.l.bf16 %v1566
        %v1583 = vunpack.c.l.bf16 %v1567
        %v1584 = vunpack.c.l.bf16 %v1568
        %v1585 = vunpack.c.l.bf16 %v1569
        %v1586 = vunpack.c.l.bf16 %v1570
        %v1587 = vunpack.c.l.bf16 %v1571
        %v1588 = vunpack.c.l.bf16 %v1572
        %v1589 = vunpack.c.l.bf16 %v1573
        %v1590 = vunpack.c.l.bf16 %v1574
        %v1591 = vunpack.c.l.bf16 %v1575
        %v1592 = vunpack.c.l.bf16 %v1576
        %v1593 = vunpack.c.l.bf16 %v1577
        %v1594 = vunpack.c.l.bf16 %v1578
        %v1595 = vunpack.c.l.bf16 %v1579
        %v1596 = vunpack.c.l.bf16 %v1580
        %v1597 = vadd.f32 %v1581, 1.0
        %v1598 = vadd.f32 %v1582, 1.0
        %v1599 = vadd.f32 %v1583, 1.0
        %v1600 = vadd.f32 %v1584, 1.0
        %v1601 = vadd.f32 %v1585, 1.0
        %v1602 = vadd.f32 %v1586, 1.0
        %v1603 = vadd.f32 %v1587, 1.0
        %v1604 = vadd.f32 %v1588, 1.0
        %v1605 = vadd.f32 %v1589, 1.0
        %v1606 = vadd.f32 %v1590, 1.0
        %v1607 = vadd.f32 %v1591, 1.0
        %v1608 = vadd.f32 %v1592, 1.0
        %v1609 = vadd.f32 %v1593, 1.0
        %v1610 = vadd.f32 %v1594, 1.0
        %v1611 = vadd.f32 %v1595, 1.0
        %v1612 = vadd.f32 %v1596, 1.0
        %v1613 = vpack.c.bf16 %v1597, %v1597
        %v1614 = vpack.c.bf16 %v1598, %v1598
        %v1615 = vpack.c.bf16 %v1599, %v1599
        %v1616 = vpack.c.bf16 %v1600, %v1600
        %v1617 = vpack.c.bf16 %v1601, %v1601
        %v1618 = vpack.c.bf16 %v1602, %v1602
        %v1619 = vpack.c.bf16 %v1603, %v1603
        %v1620 = vpack.c.bf16 %v1604, %v1604
        %v1621 = vpack.c.bf16 %v1605, %v1605
        %v1622 = vpack.c.bf16 %v1606, %v1606
        %v1623 = vpack.c.bf16 %v1607, %v1607
        %v1624 = vpack.c.bf16 %v1608, %v1608
        %v1625 = vpack.c.bf16 %v1609, %v1609
        %v1626 = vpack.c.bf16 %v1610, %v1610
        %v1627 = vpack.c.bf16 %v1611, %v1611
        %v1628 = vpack.c.bf16 %v1612, %v1612
        %v1629 = vunpack.c.l.bf16 %v1293
        %v1630 = vunpack.c.l.bf16 %v1294
        %v1631 = vunpack.c.l.bf16 %v1295
        %v1632 = vunpack.c.l.bf16 %v1296
        %v1633 = vunpack.c.l.bf16 %v1297
        %v1634 = vunpack.c.l.bf16 %v1298
        %v1635 = vunpack.c.l.bf16 %v1299
        %v1636 = vunpack.c.l.bf16 %v1300
        %v1637 = vunpack.c.l.bf16 %v1301
        %v1638 = vunpack.c.l.bf16 %v1302
        %v1639 = vunpack.c.l.bf16 %v1303
        %v1640 = vunpack.c.l.bf16 %v1304
        %v1641 = vunpack.c.l.bf16 %v1305
        %v1642 = vunpack.c.l.bf16 %v1306
        %v1643 = vunpack.c.l.bf16 %v1307
        %v1644 = vunpack.c.l.bf16 %v1308
        %v1645 = vunpack.c.l.bf16 %v1613
        %v1646 = vunpack.c.l.bf16 %v1614
        %v1647 = vunpack.c.l.bf16 %v1615
        %v1648 = vunpack.c.l.bf16 %v1616
        %v1649 = vunpack.c.l.bf16 %v1617
        %v1650 = vunpack.c.l.bf16 %v1618
        %v1651 = vunpack.c.l.bf16 %v1619
        %v1652 = vunpack.c.l.bf16 %v1620
        %v1653 = vunpack.c.l.bf16 %v1621
        %v1654 = vunpack.c.l.bf16 %v1622
        %v1655 = vunpack.c.l.bf16 %v1623
        %v1656 = vunpack.c.l.bf16 %v1624
        %v1657 = vunpack.c.l.bf16 %v1625
        %v1658 = vunpack.c.l.bf16 %v1626
        %v1659 = vunpack.c.l.bf16 %v1627
        %v1660 = vunpack.c.l.bf16 %v1628
        %v1661 = vmul.f32 %v1629, %v1645
        %v1662 = vmul.f32 %v1630, %v1646
        %v1663 = vmul.f32 %v1631, %v1647
        %v1664 = vmul.f32 %v1632, %v1648
        %v1665 = vmul.f32 %v1633, %v1649
        %v1666 = vmul.f32 %v1634, %v1650
        %v1667 = vmul.f32 %v1635, %v1651
        %v1668 = vmul.f32 %v1636, %v1652
        %v1669 = vmul.f32 %v1637, %v1653
        %v1670 = vmul.f32 %v1638, %v1654
        %v1671 = vmul.f32 %v1639, %v1655
        %v1672 = vmul.f32 %v1640, %v1656
        %v1673 = vmul.f32 %v1641, %v1657
        %v1674 = vmul.f32 %v1642, %v1658
        %v1675 = vmul.f32 %v1643, %v1659
        %v1676 = vmul.f32 %v1644, %v1660
        %v1677 = vpack.c.bf16 %v1661, %v1661
        %v1678 = vpack.c.bf16 %v1662, %v1662
        %v1679 = vpack.c.bf16 %v1663, %v1663
        %v1680 = vpack.c.bf16 %v1664, %v1664
        %v1681 = vpack.c.bf16 %v1665, %v1665
        %v1682 = vpack.c.bf16 %v1666, %v1666
        %v1683 = vpack.c.bf16 %v1667, %v1667
        %v1684 = vpack.c.bf16 %v1668, %v1668
        %v1685 = vpack.c.bf16 %v1669, %v1669
        %v1686 = vpack.c.bf16 %v1670, %v1670
        %v1687 = vpack.c.bf16 %v1671, %v1671
        %v1688 = vpack.c.bf16 %v1672, %v1672
        %v1689 = vpack.c.bf16 %v1673, %v1673
        %v1690 = vpack.c.bf16 %v1674, %v1674
        %v1691 = vpack.c.bf16 %v1675, %v1675
        %v1692 = vpack.c.bf16 %v1676, %v1676
        %v1693 = vunpack.c.l.bf16 %v1677
        %v1694 = vunpack.c.l.bf16 %v1678
        %v1695 = vunpack.c.l.bf16 %v1679
        %v1696 = vunpack.c.l.bf16 %v1680
        %v1697 = vunpack.c.l.bf16 %v1681
        %v1698 = vunpack.c.l.bf16 %v1682
        %v1699 = vunpack.c.l.bf16 %v1683
        %v1700 = vunpack.c.l.bf16 %v1684
        %v1701 = vunpack.c.l.bf16 %v1685
        %v1702 = vunpack.c.l.bf16 %v1686
        %v1703 = vunpack.c.l.bf16 %v1687
        %v1704 = vunpack.c.l.bf16 %v1688
        %v1705 = vunpack.c.l.bf16 %v1689
        %v1706 = vunpack.c.l.bf16 %v1690
        %v1707 = vunpack.c.l.bf16 %v1691
        %v1708 = vunpack.c.l.bf16 %v1692
        %v1709 = vunpack.c.l.bf16 %v1014
        %v1710 = vunpack.c.l.bf16 %v1015
        %v1711 = vunpack.c.l.bf16 %v1016
        %v1712 = vunpack.c.l.bf16 %v1017
        %v1713 = vunpack.c.l.bf16 %v1018
        %v1714 = vunpack.c.l.bf16 %v1019
        %v1715 = vunpack.c.l.bf16 %v1020
        %v1716 = vunpack.c.l.bf16 %v1021
        %v1717 = vunpack.c.l.bf16 %v1022
        %v1718 = vunpack.c.l.bf16 %v1023
        %v1719 = vunpack.c.l.bf16 %v1024
        %v1720 = vunpack.c.l.bf16 %v1025
        %v1721 = vunpack.c.l.bf16 %v1026
        %v1722 = vunpack.c.l.bf16 %v1027
        %v1723 = vunpack.c.l.bf16 %v1028
        %v1724 = vunpack.c.l.bf16 %v1029
        %v1725 = vadd.f32 %v1693, %v1709
        %v1726 = vadd.f32 %v1694, %v1710
        %v1727 = vadd.f32 %v1695, %v1711
        %v1728 = vadd.f32 %v1696, %v1712
        %v1729 = vadd.f32 %v1697, %v1713
        %v1730 = vadd.f32 %v1698, %v1714
        %v1731 = vadd.f32 %v1699, %v1715
        %v1732 = vadd.f32 %v1700, %v1716
        %v1733 = vadd.f32 %v1701, %v1717
        %v1734 = vadd.f32 %v1702, %v1718
        %v1735 = vadd.f32 %v1703, %v1719
        %v1736 = vadd.f32 %v1704, %v1720
        %v1737 = vadd.f32 %v1705, %v1721
        %v1738 = vadd.f32 %v1706, %v1722
        %v1739 = vadd.f32 %v1707, %v1723
        %v1740 = vadd.f32 %v1708, %v1724
        %v1741 = vpack.c.bf16 %v1725, %v1725
        %v1742 = vpack.c.bf16 %v1726, %v1726
        %v1743 = vpack.c.bf16 %v1727, %v1727
        %v1744 = vpack.c.bf16 %v1728, %v1728
        %v1745 = vpack.c.bf16 %v1729, %v1729
        %v1746 = vpack.c.bf16 %v1730, %v1730
        %v1747 = vpack.c.bf16 %v1731, %v1731
        %v1748 = vpack.c.bf16 %v1732, %v1732
        %v1749 = vpack.c.bf16 %v1733, %v1733
        %v1750 = vpack.c.bf16 %v1734, %v1734
        %v1751 = vpack.c.bf16 %v1735, %v1735
        %v1752 = vpack.c.bf16 %v1736, %v1736
        %v1753 = vpack.c.bf16 %v1737, %v1737
        %v1754 = vpack.c.bf16 %v1738, %v1738
        %v1755 = vpack.c.bf16 %v1739, %v1739
        %v1756 = vpack.c.bf16 %v1740, %v1740
        %s1757 = scalar_lea.vmem [#allocation7], 64
        %v1758 = vld [vmem:[%s1757] sm:$0xf]
        %v1759 = vld [vmem:[%s1757 + $0x4] sm:$0xf]
        %v1760 = vld [vmem:[%s1757 + $0x8] sm:$0xf]
        %v1761 = vld [vmem:[%s1757 + $0xc] sm:$0xf]
        %v1762 = vld [vmem:[%s1757 + $0x10] sm:$0xf]
        %v1763 = vld [vmem:[%s1757 + $0x14] sm:$0xf]
        %v1764 = vld [vmem:[%s1757 + $0x18] sm:$0xf]
        %v1765 = vld [vmem:[%s1757 + $0x1c] sm:$0xf]
        %v1766 = vld [vmem:[%s1757 + $0x20] sm:$0xf]
        %v1767 = vld [vmem:[%s1757 + $0x24] sm:$0xf]
        %v1768 = vld [vmem:[%s1757 + $0x28] sm:$0xf]
        %v1769 = vld [vmem:[%s1757 + $0x2c] sm:$0xf]
        %v1770 = vld [vmem:[%s1757 + $0x30] sm:$0xf]
        %v1771 = vld [vmem:[%s1757 + $0x34] sm:$0xf]
        %v1772 = vld [vmem:[%s1757 + $0x38] sm:$0xf]
        %v1773 = vld [vmem:[%s1757 + $0x3c] sm:$0xf]
        %s1774 = scalar_lea.vmem %s4, 1
        %v1775 = vld [vmem:[%s1774] sm:$0x1]
        %v1792 = vunpack.c.l.b16 %v1741
        %v1793 = vunpack.c.l.b16 %v1742
        %v1794 = vunpack.c.l.b16 %v1743
        %v1795 = vunpack.c.l.b16 %v1744
        %v1796 = vunpack.c.l.b16 %v1745
        %v1797 = vunpack.c.l.b16 %v1746
        %v1798 = vunpack.c.l.b16 %v1747
        %v1799 = vunpack.c.l.b16 %v1748
        %v1800 = vunpack.c.l.b16 %v1749
        %v1801 = vunpack.c.l.b16 %v1750
        %v1802 = vunpack.c.l.b16 %v1751
        %v1803 = vunpack.c.l.b16 %v1752
        %v1804 = vunpack.c.l.b16 %v1753
        %v1805 = vunpack.c.l.b16 %v1754
        %v1806 = vunpack.c.l.b16 %v1755
        %v1807 = vunpack.c.l.b16 %v1756
        %v1808 = vpack.c.b16 %v1793, %v1792
        %v1809 = vpack.c.b16 %v1795, %v1794
        %v1810 = vpack.c.b16 %v1797, %v1796
        %v1811 = vpack.c.b16 %v1799, %v1798
        %v1812 = vpack.c.b16 %v1801, %v1800
        %v1813 = vpack.c.b16 %v1803, %v1802
        %v1814 = vpack.c.b16 %v1805, %v1804
        %v1815 = vpack.c.b16 %v1807, %v1806
        %v1840 = vunpack.c.l.b16 %v1758
        %v1841 = vunpack.c.l.b16 %v1759
        %v1842 = vunpack.c.l.b16 %v1760
        %v1843 = vunpack.c.l.b16 %v1761
        %v1844 = vunpack.c.l.b16 %v1762
        %v1845 = vunpack.c.l.b16 %v1763
        %v1846 = vunpack.c.l.b16 %v1764
        %v1847 = vunpack.c.l.b16 %v1765
        %v1848 = vunpack.c.l.b16 %v1766
        %v1849 = vunpack.c.l.b16 %v1767
        %v1850 = vunpack.c.l.b16 %v1768
        %v1851 = vunpack.c.l.b16 %v1769
        %v1852 = vunpack.c.l.b16 %v1770
        %v1853 = vunpack.c.l.b16 %v1771
        %v1854 = vunpack.c.l.b16 %v1772
        %v1855 = vunpack.c.l.b16 %v1773
        %v1856 = vpack.c.b16 %v1841, %v1840
        %v1857 = vpack.c.b16 %v1843, %v1842
        %v1858 = vpack.c.b16 %v1845, %v1844
        %v1859 = vpack.c.b16 %v1847, %v1846
        %v1860 = vpack.c.b16 %v1849, %v1848
        %v1861 = vpack.c.b16 %v1851, %v1850
        %v1862 = vpack.c.b16 %v1853, %v1852
        %v1863 = vpack.c.b16 %v1855, %v1854
        %1872 = vmatpush.bf16.msra.mxu0 %v1863
        %1873 = vmatpush.bf16.msra.mxu0 %v1862
        %1874 = vmatpush.bf16.msra.mxu0 %v1861
        %1875 = vmatpush.bf16.msra.mxu0 %v1860
        %1876 = vmatpush.bf16.msra.mxu0 %v1859
        %1877 = vmatpush.bf16.msra.mxu0 %v1858
        %1878 = vmatpush.bf16.msra.mxu0 %v1857
        %1879 = vmatpush.bf16.msra.mxu0 %v1856
        %1880 = vmatmul.bf16.gmra.mxu0 %v1808
        %v1881 = vpop.f32.mrf.mxu0
        %v1882 = vadd.f32 0.0, %v1881
        %v1883 = vpop.f32.mrf.mxu0
        %v1884 = vadd.f32 0.0, %v1883
        %1885 = vmatmul.bf16.gmra.mxu0 %v1809
        %v1886 = vpop.f32.mrf.mxu0
        %v1887 = vadd.f32 0.0, %v1886
        %v1888 = vpop.f32.mrf.mxu0
        %v1889 = vadd.f32 0.0, %v1888
        %1890 = vmatmul.bf16.gmra.mxu0 %v1810
        %v1891 = vpop.f32.mrf.mxu0
        %v1892 = vadd.f32 0.0, %v1891
        %v1893 = vpop.f32.mrf.mxu0
        %v1894 = vadd.f32 0.0, %v1893
        %1895 = vmatmul.bf16.gmra.mxu0 %v1811
        %v1896 = vpop.f32.mrf.mxu0
        %v1897 = vadd.f32 0.0, %v1896
        %v1898 = vpop.f32.mrf.mxu0
        %v1899 = vadd.f32 0.0, %v1898
        %1900 = vmatmul.bf16.gmra.mxu0 %v1812
        %v1901 = vpop.f32.mrf.mxu0
        %v1902 = vadd.f32 0.0, %v1901
        %v1903 = vpop.f32.mrf.mxu0
        %v1904 = vadd.f32 0.0, %v1903
        %1905 = vmatmul.bf16.gmra.mxu0 %v1813
        %v1906 = vpop.f32.mrf.mxu0
        %v1907 = vadd.f32 0.0, %v1906
        %v1908 = vpop.f32.mrf.mxu0
        %v1909 = vadd.f32 0.0, %v1908
        %1910 = vmatmul.bf16.gmra.mxu0 %v1814
        %v1911 = vpop.f32.mrf.mxu0
        %v1912 = vadd.f32 0.0, %v1911
        %v1913 = vpop.f32.mrf.mxu0
        %v1914 = vadd.f32 0.0, %v1913
        %1915 = vmatmul.bf16.gmra.mxu0 %v1815
        %v1916 = vpop.f32.mrf.mxu0
        %v1917 = vadd.f32 0.0, %v1916
        %v1918 = vpop.f32.mrf.mxu0
        %v1919 = vadd.f32 0.0, %v1918
        %1920 = vdwg.mxu0
        %v1921 = vpack.c.bf16 %v1882, %v1882
        %v1922 = vpack.c.bf16 %v1884, %v1884
        %v1923 = vpack.c.bf16 %v1887, %v1887
        %v1924 = vpack.c.bf16 %v1889, %v1889
        %v1925 = vpack.c.bf16 %v1892, %v1892
        %v1926 = vpack.c.bf16 %v1894, %v1894
        %v1927 = vpack.c.bf16 %v1897, %v1897
        %v1928 = vpack.c.bf16 %v1899, %v1899
        %v1929 = vpack.c.bf16 %v1902, %v1902
        %v1930 = vpack.c.bf16 %v1904, %v1904
        %v1931 = vpack.c.bf16 %v1907, %v1907
        %v1932 = vpack.c.bf16 %v1909, %v1909
        %v1933 = vpack.c.bf16 %v1912, %v1912
        %v1934 = vpack.c.bf16 %v1914, %v1914
        %v1935 = vpack.c.bf16 %v1917, %v1917
        %v1936 = vpack.c.bf16 %v1919, %v1919
        %v1938 = vpack.i.b16 %v1775, %v1775
        %v1940 = vperm.slane %v1938, 0
        %v1941 = vunpack.c.l.bf16 %v1921
        %v1942 = vunpack.c.l.bf16 %v1922
        %v1943 = vunpack.c.l.bf16 %v1923
        %v1944 = vunpack.c.l.bf16 %v1924
        %v1945 = vunpack.c.l.bf16 %v1925
        %v1946 = vunpack.c.l.bf16 %v1926
        %v1947 = vunpack.c.l.bf16 %v1927
        %v1948 = vunpack.c.l.bf16 %v1928
        %v1949 = vunpack.c.l.bf16 %v1929
        %v1950 = vunpack.c.l.bf16 %v1930
        %v1951 = vunpack.c.l.bf16 %v1931
        %v1952 = vunpack.c.l.bf16 %v1932
        %v1953 = vunpack.c.l.bf16 %v1933
        %v1954 = vunpack.c.l.bf16 %v1934
        %v1955 = vunpack.c.l.bf16 %v1935
        %v1956 = vunpack.c.l.bf16 %v1936
        %v1957 = vunpack.c.l.bf16 %v1940
        %v1958 = vadd.f32 %v1941, %v1957
        %v1959 = vadd.f32 %v1942, %v1957
        %v1960 = vadd.f32 %v1943, %v1957
        %v1961 = vadd.f32 %v1944, %v1957
        %v1962 = vadd.f32 %v1945, %v1957
        %v1963 = vadd.f32 %v1946, %v1957
        %v1964 = vadd.f32 %v1947, %v1957
        %v1965 = vadd.f32 %v1948, %v1957
        %v1966 = vadd.f32 %v1949, %v1957
        %v1967 = vadd.f32 %v1950, %v1957
        %v1968 = vadd.f32 %v1951, %v1957
        %v1969 = vadd.f32 %v1952, %v1957
        %v1970 = vadd.f32 %v1953, %v1957
        %v1971 = vadd.f32 %v1954, %v1957
        %v1972 = vadd.f32 %v1955, %v1957
        %v1973 = vadd.f32 %v1956, %v1957
        %v1974 = vpack.c.bf16 %v1958, %v1958
        %v1975 = vpack.c.bf16 %v1959, %v1959
        %v1976 = vpack.c.bf16 %v1960, %v1960
        %v1977 = vpack.c.bf16 %v1961, %v1961
        %v1978 = vpack.c.bf16 %v1962, %v1962
        %v1979 = vpack.c.bf16 %v1963, %v1963
        %v1980 = vpack.c.bf16 %v1964, %v1964
        %v1981 = vpack.c.bf16 %v1965, %v1965
        %v1982 = vpack.c.bf16 %v1966, %v1966
        %v1983 = vpack.c.bf16 %v1967, %v1967
        %v1984 = vpack.c.bf16 %v1968, %v1968
        %v1985 = vpack.c.bf16 %v1969, %v1969
        %v1986 = vpack.c.bf16 %v1970, %v1970
        %v1987 = vpack.c.bf16 %v1971, %v1971
        %v1988 = vpack.c.bf16 %v1972, %v1972
        %v1989 = vpack.c.bf16 %v1973, %v1973
        %v1990 = vunpack.c.l.bf16 %v1974
        %v1991 = vunpack.c.l.bf16 %v1975
        %v1992 = vunpack.c.l.bf16 %v1976
        %v1993 = vunpack.c.l.bf16 %v1977
        %v1994 = vunpack.c.l.bf16 %v1978
        %v1995 = vunpack.c.l.bf16 %v1979
        %v1996 = vunpack.c.l.bf16 %v1980
        %v1997 = vunpack.c.l.bf16 %v1981
        %v1998 = vunpack.c.l.bf16 %v1982
        %v1999 = vunpack.c.l.bf16 %v1983
        %v2000 = vunpack.c.l.bf16 %v1984
        %v2001 = vunpack.c.l.bf16 %v1985
        %v2002 = vunpack.c.l.bf16 %v1986
        %v2003 = vunpack.c.l.bf16 %v1987
        %v2004 = vunpack.c.l.bf16 %v1988
        %v2005 = vunpack.c.l.bf16 %v1989
        %v2006 = vmul.f32 %v1990, 0.5
        %v2007 = vmul.f32 %v1991, 0.5
        %v2008 = vmul.f32 %v1992, 0.5
        %v2009 = vmul.f32 %v1993, 0.5
        %v2010 = vmul.f32 %v1994, 0.5
        %v2011 = vmul.f32 %v1995, 0.5
        %v2012 = vmul.f32 %v1996, 0.5
        %v2013 = vmul.f32 %v1997, 0.5
        %v2014 = vmul.f32 %v1998, 0.5
        %v2015 = vmul.f32 %v1999, 0.5
        %v2016 = vmul.f32 %v2000, 0.5
        %v2017 = vmul.f32 %v2001, 0.5
        %v2018 = vmul.f32 %v2002, 0.5
        %v2019 = vmul.f32 %v2003, 0.5
        %v2020 = vmul.f32 %v2004, 0.5
        %v2021 = vmul.f32 %v2005, 0.5
        %v2022 = vpack.c.bf16 %v2006, %v2006
        %v2023 = vpack.c.bf16 %v2007, %v2007
        %v2024 = vpack.c.bf16 %v2008, %v2008
        %v2025 = vpack.c.bf16 %v2009, %v2009
        %v2026 = vpack.c.bf16 %v2010, %v2010
        %v2027 = vpack.c.bf16 %v2011, %v2011
        %v2028 = vpack.c.bf16 %v2012, %v2012
        %v2029 = vpack.c.bf16 %v2013, %v2013
        %v2030 = vpack.c.bf16 %v2014, %v2014
        %v2031 = vpack.c.bf16 %v2015, %v2015
        %v2032 = vpack.c.bf16 %v2016, %v2016
        %v2033 = vpack.c.bf16 %v2017, %v2017
        %v2034 = vpack.c.bf16 %v2018, %v2018
        %v2035 = vpack.c.bf16 %v2019, %v2019
        %v2036 = vpack.c.bf16 %v2020, %v2020
        %v2037 = vpack.c.bf16 %v2021, %v2021
        %v2038 = vmul.f32 %v1990, %v1990
        %v2039 = vmul.f32 %v1991, %v1991
        %v2040 = vmul.f32 %v1992, %v1992
        %v2041 = vmul.f32 %v1993, %v1993
        %v2042 = vmul.f32 %v1994, %v1994
        %v2043 = vmul.f32 %v1995, %v1995
        %v2044 = vmul.f32 %v1996, %v1996
        %v2045 = vmul.f32 %v1997, %v1997
        %v2046 = vmul.f32 %v1998, %v1998
        %v2047 = vmul.f32 %v1999, %v1999
        %v2048 = vmul.f32 %v2000, %v2000
        %v2049 = vmul.f32 %v2001, %v2001
        %v2050 = vmul.f32 %v2002, %v2002
        %v2051 = vmul.f32 %v2003, %v2003
        %v2052 = vmul.f32 %v2004, %v2004
        %v2053 = vmul.f32 %v2005, %v2005
        %v2054 = vpack.c.bf16 %v2038, %v2038
        %v2055 = vpack.c.bf16 %v2039, %v2039
        %v2056 = vpack.c.bf16 %v2040, %v2040
        %v2057 = vpack.c.bf16 %v2041, %v2041
        %v2058 = vpack.c.bf16 %v2042, %v2042
        %v2059 = vpack.c.bf16 %v2043, %v2043
        %v2060 = vpack.c.bf16 %v2044, %v2044
        %v2061 = vpack.c.bf16 %v2045, %v2045
        %v2062 = vpack.c.bf16 %v2046, %v2046
        %v2063 = vpack.c.bf16 %v2047, %v2047
        %v2064 = vpack.c.bf16 %v2048, %v2048
        %v2065 = vpack.c.bf16 %v2049, %v2049
        %v2066 = vpack.c.bf16 %v2050, %v2050
        %v2067 = vpack.c.bf16 %v2051, %v2051
        %v2068 = vpack.c.bf16 %v2052, %v2052
        %v2069 = vpack.c.bf16 %v2053, %v2053
        %v2070 = vunpack.c.l.bf16 %v2054
        %v2071 = vunpack.c.l.bf16 %v2055
        %v2072 = vunpack.c.l.bf16 %v2056
        %v2073 = vunpack.c.l.bf16 %v2057
        %v2074 = vunpack.c.l.bf16 %v2058
        %v2075 = vunpack.c.l.bf16 %v2059
        %v2076 = vunpack.c.l.bf16 %v2060
        %v2077 = vunpack.c.l.bf16 %v2061
        %v2078 = vunpack.c.l.bf16 %v2062
        %v2079 = vunpack.c.l.bf16 %v2063
        %v2080 = vunpack.c.l.bf16 %v2064
        %v2081 = vunpack.c.l.bf16 %v2065
        %v2082 = vunpack.c.l.bf16 %v2066
        %v2083 = vunpack.c.l.bf16 %v2067
        %v2084 = vunpack.c.l.bf16 %v2068
        %v2085 = vunpack.c.l.bf16 %v2069
        %v2086 = vmul.f32 %v2070, %v1990
        %v2087 = vmul.f32 %v2071, %v1991
        %v2088 = vmul.f32 %v2072, %v1992
        %v2089 = vmul.f32 %v2073, %v1993
        %v2090 = vmul.f32 %v2074, %v1994
        %v2091 = vmul.f32 %v2075, %v1995
        %v2092 = vmul.f32 %v2076, %v1996
        %v2093 = vmul.f32 %v2077, %v1997
        %v2094 = vmul.f32 %v2078, %v1998
        %v2095 = vmul.f32 %v2079, %v1999
        %v2096 = vmul.f32 %v2080, %v2000
        %v2097 = vmul.f32 %v2081, %v2001
        %v2098 = vmul.f32 %v2082, %v2002
        %v2099 = vmul.f32 %v2083, %v2003
        %v2100 = vmul.f32 %v2084, %v2004
        %v2101 = vmul.f32 %v2085, %v2005
        %v2102 = vpack.c.bf16 %v2086, %v2086
        %v2103 = vpack.c.bf16 %v2087, %v2087
        %v2104 = vpack.c.bf16 %v2088, %v2088
        %v2105 = vpack.c.bf16 %v2089, %v2089
        %v2106 = vpack.c.bf16 %v2090, %v2090
        %v2107 = vpack.c.bf16 %v2091, %v2091
        %v2108 = vpack.c.bf16 %v2092, %v2092
        %v2109 = vpack.c.bf16 %v2093, %v2093
        %v2110 = vpack.c.bf16 %v2094, %v2094
        %v2111 = vpack.c.bf16 %v2095, %v2095
        %v2112 = vpack.c.bf16 %v2096, %v2096
        %v2113 = vpack.c.bf16 %v2097, %v2097
        %v2114 = vpack.c.bf16 %v2098, %v2098
        %v2115 = vpack.c.bf16 %v2099, %v2099
        %v2116 = vpack.c.bf16 %v2100, %v2100
        %v2117 = vpack.c.bf16 %v2101, %v2101
        %v2118 = vunpack.c.l.bf16 %v2102
        %v2119 = vunpack.c.l.bf16 %v2103
        %v2120 = vunpack.c.l.bf16 %v2104
        %v2121 = vunpack.c.l.bf16 %v2105
        %v2122 = vunpack.c.l.bf16 %v2106
        %v2123 = vunpack.c.l.bf16 %v2107
        %v2124 = vunpack.c.l.bf16 %v2108
        %v2125 = vunpack.c.l.bf16 %v2109
        %v2126 = vunpack.c.l.bf16 %v2110
        %v2127 = vunpack.c.l.bf16 %v2111
        %v2128 = vunpack.c.l.bf16 %v2112
        %v2129 = vunpack.c.l.bf16 %v2113
        %v2130 = vunpack.c.l.bf16 %v2114
        %v2131 = vunpack.c.l.bf16 %v2115
        %v2132 = vunpack.c.l.bf16 %v2116
        %v2133 = vunpack.c.l.bf16 %v2117
        %v2134 = vmul.f32 %v2118, 0.044677734
        %v2135 = vmul.f32 %v2119, 0.044677734
        %v2136 = vmul.f32 %v2120, 0.044677734
        %v2137 = vmul.f32 %v2121, 0.044677734
        %v2138 = vmul.f32 %v2122, 0.044677734
        %v2139 = vmul.f32 %v2123, 0.044677734
        %v2140 = vmul.f32 %v2124, 0.044677734
        %v2141 = vmul.f32 %v2125, 0.044677734
        %v2142 = vmul.f32 %v2126, 0.044677734
        %v2143 = vmul.f32 %v2127, 0.044677734
        %v2144 = vmul.f32 %v2128, 0.044677734
        %v2145 = vmul.f32 %v2129, 0.044677734
        %v2146 = vmul.f32 %v2130, 0.044677734
        %v2147 = vmul.f32 %v2131, 0.044677734
        %v2148 = vmul.f32 %v2132, 0.044677734
        %v2149 = vmul.f32 %v2133, 0.044677734
        %v2150 = vpack.c.bf16 %v2134, %v2134
        %v2151 = vpack.c.bf16 %v2135, %v2135
        %v2152 = vpack.c.bf16 %v2136, %v2136
        %v2153 = vpack.c.bf16 %v2137, %v2137
        %v2154 = vpack.c.bf16 %v2138, %v2138
        %v2155 = vpack.c.bf16 %v2139, %v2139
        %v2156 = vpack.c.bf16 %v2140, %v2140
        %v2157 = vpack.c.bf16 %v2141, %v2141
        %v2158 = vpack.c.bf16 %v2142, %v2142
        %v2159 = vpack.c.bf16 %v2143, %v2143
        %v2160 = vpack.c.bf16 %v2144, %v2144
        %v2161 = vpack.c.bf16 %v2145, %v2145
        %v2162 = vpack.c.bf16 %v2146, %v2146
        %v2163 = vpack.c.bf16 %v2147, %v2147
        %v2164 = vpack.c.bf16 %v2148, %v2148
        %v2165 = vpack.c.bf16 %v2149, %v2149
        %v2166 = vunpack.c.l.bf16 %v2150
        %v2167 = vunpack.c.l.bf16 %v2151
        %v2168 = vunpack.c.l.bf16 %v2152
        %v2169 = vunpack.c.l.bf16 %v2153
        %v2170 = vunpack.c.l.bf16 %v2154
        %v2171 = vunpack.c.l.bf16 %v2155
        %v2172 = vunpack.c.l.bf16 %v2156
        %v2173 = vunpack.c.l.bf16 %v2157
        %v2174 = vunpack.c.l.bf16 %v2158
        %v2175 = vunpack.c.l.bf16 %v2159
        %v2176 = vunpack.c.l.bf16 %v2160
        %v2177 = vunpack.c.l.bf16 %v2161
        %v2178 = vunpack.c.l.bf16 %v2162
        %v2179 = vunpack.c.l.bf16 %v2163
        %v2180 = vunpack.c.l.bf16 %v2164
        %v2181 = vunpack.c.l.bf16 %v2165
        %v2182 = vadd.f32 %v1990, %v2166
        %v2183 = vadd.f32 %v1991, %v2167
        %v2184 = vadd.f32 %v1992, %v2168
        %v2185 = vadd.f32 %v1993, %v2169
        %v2186 = vadd.f32 %v1994, %v2170
        %v2187 = vadd.f32 %v1995, %v2171
        %v2188 = vadd.f32 %v1996, %v2172
        %v2189 = vadd.f32 %v1997, %v2173
        %v2190 = vadd.f32 %v1998, %v2174
        %v2191 = vadd.f32 %v1999, %v2175
        %v2192 = vadd.f32 %v2000, %v2176
        %v2193 = vadd.f32 %v2001, %v2177
        %v2194 = vadd.f32 %v2002, %v2178
        %v2195 = vadd.f32 %v2003, %v2179
        %v2196 = vadd.f32 %v2004, %v2180
        %v2197 = vadd.f32 %v2005, %v2181
        %v2198 = vpack.c.bf16 %v2182, %v2182
        %v2199 = vpack.c.bf16 %v2183, %v2183
        %v2200 = vpack.c.bf16 %v2184, %v2184
        %v2201 = vpack.c.bf16 %v2185, %v2185
        %v2202 = vpack.c.bf16 %v2186, %v2186
        %v2203 = vpack.c.bf16 %v2187, %v2187
        %v2204 = vpack.c.bf16 %v2188, %v2188
        %v2205 = vpack.c.bf16 %v2189, %v2189
        %v2206 = vpack.c.bf16 %v2190, %v2190
        %v2207 = vpack.c.bf16 %v2191, %v2191
        %v2208 = vpack.c.bf16 %v2192, %v2192
        %v2209 = vpack.c.bf16 %v2193, %v2193
        %v2210 = vpack.c.bf16 %v2194, %v2194
        %v2211 = vpack.c.bf16 %v2195, %v2195
        %v2212 = vpack.c.bf16 %v2196, %v2196
        %v2213 = vpack.c.bf16 %v2197, %v2197
        %v2214 = vunpack.c.l.bf16 %v2198
        %v2215 = vunpack.c.l.bf16 %v2199
        %v2216 = vunpack.c.l.bf16 %v2200
        %v2217 = vunpack.c.l.bf16 %v2201
        %v2218 = vunpack.c.l.bf16 %v2202
        %v2219 = vunpack.c.l.bf16 %v2203
        %v2220 = vunpack.c.l.bf16 %v2204
        %v2221 = vunpack.c.l.bf16 %v2205
        %v2222 = vunpack.c.l.bf16 %v2206
        %v2223 = vunpack.c.l.bf16 %v2207
        %v2224 = vunpack.c.l.bf16 %v2208
        %v2225 = vunpack.c.l.bf16 %v2209
        %v2226 = vunpack.c.l.bf16 %v2210
        %v2227 = vunpack.c.l.bf16 %v2211
        %v2228 = vunpack.c.l.bf16 %v2212
        %v2229 = vunpack.c.l.bf16 %v2213
        %v2230 = vmul.f32 %v2214, 0.796875
        %v2231 = vmul.f32 %v2215, 0.796875
        %v2232 = vmul.f32 %v2216, 0.796875
        %v2233 = vmul.f32 %v2217, 0.796875
        %v2234 = vmul.f32 %v2218, 0.796875
        %v2235 = vmul.f32 %v2219, 0.796875
        %v2236 = vmul.f32 %v2220, 0.796875
        %v2237 = vmul.f32 %v2221, 0.796875
        %v2238 = vmul.f32 %v2222, 0.796875
        %v2239 = vmul.f32 %v2223, 0.796875
        %v2240 = vmul.f32 %v2224, 0.796875
        %v2241 = vmul.f32 %v2225, 0.796875
        %v2242 = vmul.f32 %v2226, 0.796875
        %v2243 = vmul.f32 %v2227, 0.796875
        %v2244 = vmul.f32 %v2228, 0.796875
        %v2245 = vmul.f32 %v2229, 0.796875
        %v2246 = vpack.c.bf16 %v2230, %v2230
        %v2247 = vpack.c.bf16 %v2231, %v2231
        %v2248 = vpack.c.bf16 %v2232, %v2232
        %v2249 = vpack.c.bf16 %v2233, %v2233
        %v2250 = vpack.c.bf16 %v2234, %v2234
        %v2251 = vpack.c.bf16 %v2235, %v2235
        %v2252 = vpack.c.bf16 %v2236, %v2236
        %v2253 = vpack.c.bf16 %v2237, %v2237
        %v2254 = vpack.c.bf16 %v2238, %v2238
        %v2255 = vpack.c.bf16 %v2239, %v2239
        %v2256 = vpack.c.bf16 %v2240, %v2240
        %v2257 = vpack.c.bf16 %v2241, %v2241
        %v2258 = vpack.c.bf16 %v2242, %v2242
        %v2259 = vpack.c.bf16 %v2243, %v2243
        %v2260 = vpack.c.bf16 %v2244, %v2244
        %v2261 = vpack.c.bf16 %v2245, %v2245
        %v2262 = vunpack.c.l.bf16 %v2246
        %v2263 = vunpack.c.l.bf16 %v2247
        %v2264 = vunpack.c.l.bf16 %v2248
        %v2265 = vunpack.c.l.bf16 %v2249
        %v2266 = vunpack.c.l.bf16 %v2250
        %v2267 = vunpack.c.l.bf16 %v2251
        %v2268 = vunpack.c.l.bf16 %v2252
        %v2269 = vunpack.c.l.bf16 %v2253
        %v2270 = vunpack.c.l.bf16 %v2254
        %v2271 = vunpack.c.l.bf16 %v2255
        %v2272 = vunpack.c.l.bf16 %v2256
        %v2273 = vunpack.c.l.bf16 %v2257
        %v2274 = vunpack.c.l.bf16 %v2258
        %v2275 = vunpack.c.l.bf16 %v2259
        %v2276 = vunpack.c.l.bf16 %v2260
        %v2277 = vunpack.c.l.bf16 %v2261
        %v2278 = vtanh.pop %v2262
        %v2279 = vtanh.pop %v2263
        %v2280 = vtanh.pop %v2264
        %v2281 = vtanh.pop %v2265
        %v2282 = vtanh.pop %v2266
        %v2283 = vtanh.pop %v2267
        %v2284 = vtanh.pop %v2268
        %v2285 = vtanh.pop %v2269
        %v2286 = vtanh.pop %v2270
        %v2287 = vtanh.pop %v2271
        %v2288 = vtanh.pop %v2272
        %v2289 = vtanh.pop %v2273
        %v2290 = vtanh.pop %v2274
        %v2291 = vtanh.pop %v2275
        %v2292 = vtanh.pop %v2276
        %v2293 = vtanh.pop %v2277
        %v2294 = vpack.c.bf16 %v2278, %v2278
        %v2295 = vpack.c.bf16 %v2279, %v2279
        %v2296 = vpack.c.bf16 %v2280, %v2280
        %v2297 = vpack.c.bf16 %v2281, %v2281
        %v2298 = vpack.c.bf16 %v2282, %v2282
        %v2299 = vpack.c.bf16 %v2283, %v2283
        %v2300 = vpack.c.bf16 %v2284, %v2284
        %v2301 = vpack.c.bf16 %v2285, %v2285
        %v2302 = vpack.c.bf16 %v2286, %v2286
        %v2303 = vpack.c.bf16 %v2287, %v2287
        %v2304 = vpack.c.bf16 %v2288, %v2288
        %v2305 = vpack.c.bf16 %v2289, %v2289
        %v2306 = vpack.c.bf16 %v2290, %v2290
        %v2307 = vpack.c.bf16 %v2291, %v2291
        %v2308 = vpack.c.bf16 %v2292, %v2292
        %v2309 = vpack.c.bf16 %v2293, %v2293
        %v2310 = vunpack.c.l.bf16 %v2294
        %v2311 = vunpack.c.l.bf16 %v2295
        %v2312 = vunpack.c.l.bf16 %v2296
        %v2313 = vunpack.c.l.bf16 %v2297
        %v2314 = vunpack.c.l.bf16 %v2298
        %v2315 = vunpack.c.l.bf16 %v2299
        %v2316 = vunpack.c.l.bf16 %v2300
        %v2317 = vunpack.c.l.bf16 %v2301
        %v2318 = vunpack.c.l.bf16 %v2302
        %v2319 = vunpack.c.l.bf16 %v2303
        %v2320 = vunpack.c.l.bf16 %v2304
        %v2321 = vunpack.c.l.bf16 %v2305
        %v2322 = vunpack.c.l.bf16 %v2306
        %v2323 = vunpack.c.l.bf16 %v2307
        %v2324 = vunpack.c.l.bf16 %v2308
        %v2325 = vunpack.c.l.bf16 %v2309
        %v2326 = vadd.f32 %v2310, 1.0
        %v2327 = vadd.f32 %v2311, 1.0
        %v2328 = vadd.f32 %v2312, 1.0
        %v2329 = vadd.f32 %v2313, 1.0
        %v2330 = vadd.f32 %v2314, 1.0
        %v2331 = vadd.f32 %v2315, 1.0
        %v2332 = vadd.f32 %v2316, 1.0
        %v2333 = vadd.f32 %v2317, 1.0
        %v2334 = vadd.f32 %v2318, 1.0
        %v2335 = vadd.f32 %v2319, 1.0
        %v2336 = vadd.f32 %v2320, 1.0
        %v2337 = vadd.f32 %v2321, 1.0
        %v2338 = vadd.f32 %v2322, 1.0
        %v2339 = vadd.f32 %v2323, 1.0
        %v2340 = vadd.f32 %v2324, 1.0
        %v2341 = vadd.f32 %v2325, 1.0
        %v2342 = vpack.c.bf16 %v2326, %v2326
        %v2343 = vpack.c.bf16 %v2327, %v2327
        %v2344 = vpack.c.bf16 %v2328, %v2328
        %v2345 = vpack.c.bf16 %v2329, %v2329
        %v2346 = vpack.c.bf16 %v2330, %v2330
        %v2347 = vpack.c.bf16 %v2331, %v2331
        %v2348 = vpack.c.bf16 %v2332, %v2332
        %v2349 = vpack.c.bf16 %v2333, %v2333
        %v2350 = vpack.c.bf16 %v2334, %v2334
        %v2351 = vpack.c.bf16 %v2335, %v2335
        %v2352 = vpack.c.bf16 %v2336, %v2336
        %v2353 = vpack.c.bf16 %v2337, %v2337
        %v2354 = vpack.c.bf16 %v2338, %v2338
        %v2355 = vpack.c.bf16 %v2339, %v2339
        %v2356 = vpack.c.bf16 %v2340, %v2340
        %v2357 = vpack.c.bf16 %v2341, %v2341
        %v2358 = vunpack.c.l.bf16 %v2022
        %v2359 = vunpack.c.l.bf16 %v2023
        %v2360 = vunpack.c.l.bf16 %v2024
        %v2361 = vunpack.c.l.bf16 %v2025
        %v2362 = vunpack.c.l.bf16 %v2026
        %v2363 = vunpack.c.l.bf16 %v2027
        %v2364 = vunpack.c.l.bf16 %v2028
        %v2365 = vunpack.c.l.bf16 %v2029
        %v2366 = vunpack.c.l.bf16 %v2030
        %v2367 = vunpack.c.l.bf16 %v2031
        %v2368 = vunpack.c.l.bf16 %v2032
        %v2369 = vunpack.c.l.bf16 %v2033
        %v2370 = vunpack.c.l.bf16 %v2034
        %v2371 = vunpack.c.l.bf16 %v2035
        %v2372 = vunpack.c.l.bf16 %v2036
        %v2373 = vunpack.c.l.bf16 %v2037
        %v2374 = vunpack.c.l.bf16 %v2342
        %v2375 = vunpack.c.l.bf16 %v2343
        %v2376 = vunpack.c.l.bf16 %v2344
        %v2377 = vunpack.c.l.bf16 %v2345
        %v2378 = vunpack.c.l.bf16 %v2346
        %v2379 = vunpack.c.l.bf16 %v2347
        %v2380 = vunpack.c.l.bf16 %v2348
        %v2381 = vunpack.c.l.bf16 %v2349
        %v2382 = vunpack.c.l.bf16 %v2350
        %v2383 = vunpack.c.l.bf16 %v2351
        %v2384 = vunpack.c.l.bf16 %v2352
        %v2385 = vunpack.c.l.bf16 %v2353
        %v2386 = vunpack.c.l.bf16 %v2354
        %v2387 = vunpack.c.l.bf16 %v2355
        %v2388 = vunpack.c.l.bf16 %v2356
        %v2389 = vunpack.c.l.bf16 %v2357
        %v2390 = vmul.f32 %v2358, %v2374
        %v2391 = vmul.f32 %v2359, %v2375
        %v2392 = vmul.f32 %v2360, %v2376
        %v2393 = vmul.f32 %v2361, %v2377
        %v2394 = vmul.f32 %v2362, %v2378
        %v2395 = vmul.f32 %v2363, %v2379
        %v2396 = vmul.f32 %v2364, %v2380
        %v2397 = vmul.f32 %v2365, %v2381
        %v2398 = vmul.f32 %v2366, %v2382
        %v2399 = vmul.f32 %v2367, %v2383
        %v2400 = vmul.f32 %v2368, %v2384
        %v2401 = vmul.f32 %v2369, %v2385
        %v2402 = vmul.f32 %v2370, %v2386
        %v2403 = vmul.f32 %v2371, %v2387
        %v2404 = vmul.f32 %v2372, %v2388
        %v2405 = vmul.f32 %v2373, %v2389
        %v2406 = vpack.c.bf16 %v2390, %v2390
        %v2407 = vpack.c.bf16 %v2391, %v2391
        %v2408 = vpack.c.bf16 %v2392, %v2392
        %v2409 = vpack.c.bf16 %v2393, %v2393
        %v2410 = vpack.c.bf16 %v2394, %v2394
        %v2411 = vpack.c.bf16 %v2395, %v2395
        %v2412 = vpack.c.bf16 %v2396, %v2396
        %v2413 = vpack.c.bf16 %v2397, %v2397
        %v2414 = vpack.c.bf16 %v2398, %v2398
        %v2415 = vpack.c.bf16 %v2399, %v2399
        %v2416 = vpack.c.bf16 %v2400, %v2400
        %v2417 = vpack.c.bf16 %v2401, %v2401
        %v2418 = vpack.c.bf16 %v2402, %v2402
        %v2419 = vpack.c.bf16 %v2403, %v2403
        %v2420 = vpack.c.bf16 %v2404, %v2404
        %v2421 = vpack.c.bf16 %v2405, %v2405
        %v2422 = vunpack.c.l.bf16 %v2406
        %v2423 = vunpack.c.l.bf16 %v2407
        %v2424 = vunpack.c.l.bf16 %v2408
        %v2425 = vunpack.c.l.bf16 %v2409
        %v2426 = vunpack.c.l.bf16 %v2410
        %v2427 = vunpack.c.l.bf16 %v2411
        %v2428 = vunpack.c.l.bf16 %v2412
        %v2429 = vunpack.c.l.bf16 %v2413
        %v2430 = vunpack.c.l.bf16 %v2414
        %v2431 = vunpack.c.l.bf16 %v2415
        %v2432 = vunpack.c.l.bf16 %v2416
        %v2433 = vunpack.c.l.bf16 %v2417
        %v2434 = vunpack.c.l.bf16 %v2418
        %v2435 = vunpack.c.l.bf16 %v2419
        %v2436 = vunpack.c.l.bf16 %v2420
        %v2437 = vunpack.c.l.bf16 %v2421
        %v2438 = vunpack.c.l.bf16 %v1741
        %v2439 = vunpack.c.l.bf16 %v1742
        %v2440 = vunpack.c.l.bf16 %v1743
        %v2441 = vunpack.c.l.bf16 %v1744
        %v2442 = vunpack.c.l.bf16 %v1745
        %v2443 = vunpack.c.l.bf16 %v1746
        %v2444 = vunpack.c.l.bf16 %v1747
        %v2445 = vunpack.c.l.bf16 %v1748
        %v2446 = vunpack.c.l.bf16 %v1749
        %v2447 = vunpack.c.l.bf16 %v1750
        %v2448 = vunpack.c.l.bf16 %v1751
        %v2449 = vunpack.c.l.bf16 %v1752
        %v2450 = vunpack.c.l.bf16 %v1753
        %v2451 = vunpack.c.l.bf16 %v1754
        %v2452 = vunpack.c.l.bf16 %v1755
        %v2453 = vunpack.c.l.bf16 %v1756
        %v2454 = vadd.f32 %v2422, %v2438
        %v2455 = vadd.f32 %v2423, %v2439
        %v2456 = vadd.f32 %v2424, %v2440
        %v2457 = vadd.f32 %v2425, %v2441
        %v2458 = vadd.f32 %v2426, %v2442
        %v2459 = vadd.f32 %v2427, %v2443
        %v2460 = vadd.f32 %v2428, %v2444
        %v2461 = vadd.f32 %v2429, %v2445
        %v2462 = vadd.f32 %v2430, %v2446
        %v2463 = vadd.f32 %v2431, %v2447
        %v2464 = vadd.f32 %v2432, %v2448
        %v2465 = vadd.f32 %v2433, %v2449
        %v2466 = vadd.f32 %v2434, %v2450
        %v2467 = vadd.f32 %v2435, %v2451
        %v2468 = vadd.f32 %v2436, %v2452
        %v2469 = vadd.f32 %v2437, %v2453
        %v2470 = vpack.c.bf16 %v2455, %v2454
        %v2471 = vpack.c.bf16 %v2457, %v2456
        %v2472 = vpack.c.bf16 %v2459, %v2458
        %v2473 = vpack.c.bf16 %v2461, %v2460
        %v2474 = vpack.c.bf16 %v2463, %v2462
        %v2475 = vpack.c.bf16 %v2465, %v2464
        %v2476 = vpack.c.bf16 %v2467, %v2466
        %v2477 = vpack.c.bf16 %v2469, %v2468
        %v2478 = vld [vmem:[#allocation8] sm:$0xf]
        %v2479 = vld [vmem:[#allocation8 + $0x4] sm:$0xf]
        %v2480 = vld [vmem:[#allocation8 + $0x8] sm:$0xf]
        %v2481 = vld [vmem:[#allocation8 + $0xc] sm:$0xf]
        %v2482 = vld [vmem:[#allocation8 + $0x10] sm:$0xf]
        %v2483 = vld [vmem:[#allocation8 + $0x14] sm:$0xf]
        %v2484 = vld [vmem:[#allocation8 + $0x18] sm:$0xf]
        %v2485 = vld [vmem:[#allocation8 + $0x1c] sm:$0xf]
        %v2486 = vld [vmem:[#allocation8 + $0x20] sm:$0xf]
        %v2487 = vld [vmem:[#allocation8 + $0x24] sm:$0xf]
        %v2488 = vld [vmem:[#allocation8 + $0x28] sm:$0xf]
        %v2489 = vld [vmem:[#allocation8 + $0x2c] sm:$0xf]
        %v2490 = vld [vmem:[#allocation8 + $0x30] sm:$0xf]
        %v2491 = vld [vmem:[#allocation8 + $0x34] sm:$0xf]
        %v2492 = vld [vmem:[#allocation8 + $0x38] sm:$0xf]
        %v2493 = vld [vmem:[#allocation8 + $0x3c] sm:$0xf]
        %v2494 = vld [vmem:[%s6] sm:$0x1]
        %v2496 = vperm.slane %v2494, 0
        %v2514 = vunpack.c.l.b16 %v2478
        %v2515 = vunpack.c.l.b16 %v2479
        %v2516 = vunpack.c.l.b16 %v2480
        %v2517 = vunpack.c.l.b16 %v2481
        %v2518 = vunpack.c.l.b16 %v2482
        %v2519 = vunpack.c.l.b16 %v2483
        %v2520 = vunpack.c.l.b16 %v2484
        %v2521 = vunpack.c.l.b16 %v2485
        %v2522 = vunpack.c.l.b16 %v2486
        %v2523 = vunpack.c.l.b16 %v2487
        %v2524 = vunpack.c.l.b16 %v2488
        %v2525 = vunpack.c.l.b16 %v2489
        %v2526 = vunpack.c.l.b16 %v2490
        %v2527 = vunpack.c.l.b16 %v2491
        %v2528 = vunpack.c.l.b16 %v2492
        %v2529 = vunpack.c.l.b16 %v2493
        %v2530 = vpack.c.b16 %v2515, %v2514
        %v2531 = vpack.c.b16 %v2517, %v2516
        %v2532 = vpack.c.b16 %v2519, %v2518
        %v2533 = vpack.c.b16 %v2521, %v2520
        %v2534 = vpack.c.b16 %v2523, %v2522
        %v2535 = vpack.c.b16 %v2525, %v2524
        %v2536 = vpack.c.b16 %v2527, %v2526
        %v2537 = vpack.c.b16 %v2529, %v2528
        %2546 = vmatpush.bf16.msra.mxu0 %v2537
        %2547 = vmatpush.bf16.msra.mxu0 %v2536
        %2548 = vmatpush.bf16.msra.mxu0 %v2535
        %2549 = vmatpush.bf16.msra.mxu0 %v2534
        %2550 = vmatpush.bf16.msra.mxu0 %v2533
        %2551 = vmatpush.bf16.msra.mxu0 %v2532
        %2552 = vmatpush.bf16.msra.mxu0 %v2531
        %2553 = vmatpush.bf16.msra.mxu0 %v2530
        %2554 = vmatmul.bf16.gmra.mxu0 %v2470
        %v2555 = vpop.f32.mrf.mxu0
        %v2556 = vadd.f32 %v2496, %v2555
        %v2557 = vpop.f32.mrf.mxu0
        %v2558 = vadd.f32 %v2496, %v2557
        %2559 = vmatmul.bf16.gmra.mxu0 %v2471
        %v2560 = vpop.f32.mrf.mxu0
        %v2561 = vadd.f32 %v2496, %v2560
        %v2562 = vpop.f32.mrf.mxu0
        %v2563 = vadd.f32 %v2496, %v2562
        %2564 = vmatmul.bf16.gmra.mxu0 %v2472
        %v2565 = vpop.f32.mrf.mxu0
        %v2566 = vadd.f32 %v2496, %v2565
        %v2567 = vpop.f32.mrf.mxu0
        %v2568 = vadd.f32 %v2496, %v2567
        %2569 = vmatmul.bf16.gmra.mxu0 %v2473
        %v2570 = vpop.f32.mrf.mxu0
        %v2571 = vadd.f32 %v2496, %v2570
        %v2572 = vpop.f32.mrf.mxu0
        %v2573 = vadd.f32 %v2496, %v2572
        %2574 = vmatmul.bf16.gmra.mxu0 %v2474
        %v2575 = vpop.f32.mrf.mxu0
        %v2576 = vadd.f32 %v2496, %v2575
        %v2577 = vpop.f32.mrf.mxu0
        %v2578 = vadd.f32 %v2496, %v2577
        %2579 = vmatmul.bf16.gmra.mxu0 %v2475
        %v2580 = vpop.f32.mrf.mxu0
        %v2581 = vadd.f32 %v2496, %v2580
        %v2582 = vpop.f32.mrf.mxu0
        %v2583 = vadd.f32 %v2496, %v2582
        %2584 = vmatmul.bf16.gmra.mxu0 %v2476
        %v2585 = vpop.f32.mrf.mxu0
        %v2586 = vadd.f32 %v2496, %v2585
        %v2587 = vpop.f32.mrf.mxu0
        %v2588 = vadd.f32 %v2496, %v2587
        %2589 = vmatmul.bf16.gmra.mxu0 %v2477
        %v2590 = vpop.f32.mrf.mxu0
        %v2591 = vadd.f32 %v2496, %v2590
        %v2592 = vpop.f32.mrf.mxu0
        %v2593 = vadd.f32 %v2496, %v2592
        %2594 = vdwg.mxu0
        %2595 = vst [vmem:[%s348] sm:$0xff] %v2556
        %2596 = vst [vmem:[%s348 + $0x8] sm:$0xff] %v2558
        %2597 = vst [vmem:[%s348 + $0x10] sm:$0xff] %v2561
        %2598 = vst [vmem:[%s348 + $0x18] sm:$0xff] %v2563
        %2599 = vst [vmem:[%s348 + $0x20] sm:$0xff] %v2566
        %2600 = vst [vmem:[%s348 + $0x28] sm:$0xff] %v2568
        %2601 = vst [vmem:[%s348 + $0x30] sm:$0xff] %v2571
        %2602 = vst [vmem:[%s348 + $0x38] sm:$0xff] %v2573
        %2603 = vst [vmem:[%s348 + $0x40] sm:$0xff] %v2576
        %2604 = vst [vmem:[%s348 + $0x48] sm:$0xff] %v2578
        %2605 = vst [vmem:[%s348 + $0x50] sm:$0xff] %v2581
        %2606 = vst [vmem:[%s348 + $0x58] sm:$0xff] %v2583
        %2607 = vst [vmem:[%s348 + $0x60] sm:$0xff] %v2586
        %2608 = vst [vmem:[%s348 + $0x68] sm:$0xff] %v2588
        %2609 = vst [vmem:[%s348 + $0x70] sm:$0xff] %v2591
        %2610 = vst [vmem:[%s348 + $0x78] sm:$0xff] %v2593
        %s2611 = sand.u32 %s186, 1
        %s2612 = scalar_lea.sflag [#allocation4], %s2611
        %s2613 = sand.u32 %s186, 1
        %s2614 = smul.addr %s2613, 128
        %s2615 = scalar_lea.vmem [#allocation10], %s2614
        // Predicated region
        $region65: #{tpu_custom_call.1} parent=47 // pred_check
          %p2616 = pneg %p196
        $region66: #{tpu_custom_call.1} parent=47 // pred_check_branch
          %2618 = sbr.rel (%p2616) target = $region68
        $region67: #{tpu_custom_call.1} parent=47 // pred_region
          %s2619 = smul.u32 16, %s26
          %2621 = vsyncadd %s2612, 0
          %s2622 = smul.addr %s2619, 8
          %s2623 = scalar_lea.hbm %s7, %s2622
          %s2624 = sshll.u32 %s2615, 4
          %s2625 = int_to_ptr.vmem [resolvable:$true] %s2624
          %s2626 = sshll.u32 %s2623, 4
          %s2627 = int_to_ptr.hbm [resolvable:$true] %s2626
          %2632 = dma.vmem_to_hbm [thread:$0]  %s2625, 2048, %s2627, %s2612, 128, 128, 8
        $region68: #{tpu_custom_call.1} parent=47 // pred_fallthru
          _
      $region48: #{tpu_custom_call.1} parent=5 // pred_fallthru
        _
      %p2633 = scmp.le.s32.totalorder 2, %s21
      // Predicated region
      $region69: #{tpu_custom_call.1} parent=5 // pred_check
        %p2634 = pneg %p2633
      $region70: #{tpu_custom_call.1} parent=5 // pred_check_branch
        %2636 = sbr.rel (%p2634) target = $region72
      $region71: #{tpu_custom_call.1} parent=5 // pred_region
        %s2637 = ssub.s32 %s21, 2
        // Predicated region
        $region73: #{tpu_custom_call.1} parent=71 // pred_check
          %p2638 = pneg %p202
        $region74: #{tpu_custom_call.1} parent=71 // pred_check_branch
          %2640 = sbr.rel (%p2638) target = $region76
        $region75: #{tpu_custom_call.1} parent=71 // pred_region
          %s2641 = sand.u32 %s187, 1
          %s2642 = scalar_lea.sflag [#allocation4], %s2641
          %s2643 = sand.u32 %s187, 1
          %s2644 = smul.addr %s2643, 128
          %s2645 = scalar_lea.vmem [#allocation10], %s2644
          %2647 = dma.done %s2642, 2048
        $region76: #{tpu_custom_call.1} parent=71 // pred_fallthru
          _
      $region72: #{tpu_custom_call.1} parent=5 // pred_fallthru
        _
    $region6: #{tpu_custom_call.1} parent=1 // loop_footer
      %s25 = sadd.s32 1, %s21
    $region7: #{tpu_custom_call.1} parent=1 // loop_footer_branch
      %20 = sbr.rel target = $region3
    $region8: #{tpu_custom_call.1} parent=1 // loop_exit
      _
    %2648 = vsyncpa [#allocation3], 1
    %s2649 = scalar_lea.sflag [#allocation3], 1
    %2650 = vsyncpa %s2649, 1
    %2651 = vsyncpa [#allocation6], 1
    %2652 = vsyncpa [#allocation9], 1
    %2653 = vsyncpa [#allocation4], 1
    %s2654 = scalar_lea.sflag [#allocation4], 1
    %2655 = vsyncpa %s2654, 1

// kernel: tpu_custom_call.1
$region0: #{tpu_custom_call.1}
  #allocation0 [shape = 'u32[]', space=smem, size = 0x4, offset = 0x4, fixed_abs, tag = 'smem constant byte address 0x4 - core index']
  #allocation1 [shape = 'u32[72,128]{1,0:T(1,128)}', space=vmem, size = 0x9000, scoped, tag = 'internal scratch']
  %s0 = inlined_call_operand.hbm [shape: bf16[256,128], index: 0, kind: input, shape index: {}]
  %s1 = inlined_call_operand.hbm [shape: bf16[128,128], index: 1, kind: input, shape index: {}]
  %s2 = inlined_call_operand.vmem [shape: bf16[1,128], index: 2, kind: input, shape index: {}]
  %s3 = inlined_call_operand.hbm [shape: bf16[2,128,128], index: 3, kind: input, shape index: {}]
  %s4 = inlined_call_operand.vmem [shape: bf16[2,1,128], index: 4, kind: input, shape index: {}]
  %s5 = inlined_call_operand.hbm [shape: bf16[128,128], index: 5, kind: input, shape index: {}]
  %s6 = inlined_call_operand.vmem [shape: f32[1,128], index: 6, kind: input, shape index: {}]
  %s7 = inlined_call_operand.hbm [shape: f32[256,128], index: 7, kind: output, shape index: {}]
  %s8 = sld [smem:[#allocation0]]
  $region77: #{tpu_custom_call.1} parent=0
    _
  %s10 = ssub.s32 1, %s8
  %s11 = scalar_select 0, %s10, %s8
  $region1: #{tpu_custom_call.1} parent=0
    #allocation2 [shape = 'u8[65536]{0}', space=vmem, size = 0x10000, scoped, tag = 'input window, operand 0']
    #allocation3 [shape = 's32[2]{0}', space=sflag, size = 0x8, scoped, tag = 'scoped memory for tpu_custom_call.1']
    #allocation4 [shape = 's32[2]{0}', space=sflag, size = 0x8, scoped, tag = 'scoped memory for tpu_custom_call.1']
    #allocation5 [shape = 'u8[32768]{0}', space=vmem, size = 0x8000, scoped, tag = 'input window, operand 1, single buffered']
    #allocation6 [shape = 's32[1]{0}', space=sflag, size = 0x4, scoped, tag = 'scoped memory for tpu_custom_call.1']
    #allocation7 [shape = 'u8[65536]{0}', space=vmem, size = 0x10000, scoped, tag = 'input window, operand 3, single buffered']
    #allocation8 [shape = 'u8[32768]{0}', space=vmem, size = 0x8000, scoped, tag = 'input window, operand 5, single buffered']
    #allocation9 [shape = 's32[1]{0}', space=sflag, size = 0x4, scoped, tag = 'scoped memory for tpu_custom_call.1']
    #allocation10 [shape = 'u8[131072]{0}', space=vmem, size = 0x20000, scoped, tag = 'output window, operand 0']
    %12 = vsyncpa [#allocation3], 0
    %s13 = scalar_lea.sflag [#allocation3], 1
    %14 = vsyncpa %s13, 0
    %15 = vsyncpa [#allocation6], 0
    %16 = vsyncpa [#allocation9], 0
    %17 = vsyncpa [#allocation4], 0
    %s18 = scalar_lea.sflag [#allocation4], 1
    %19 = vsyncpa %s18, 0
    loop: start=0, step=1, limit=4
    $region2: #{tpu_custom_call.1} parent=1 // loop_pre_header
      _
    $region3: #{tpu_custom_call.1} parent=1 // loop_header
      %s21 = sphi 0, %s25
      %p22 = scmp.ge.s32.totalorder %s21, 4
      %s31 = sphi 0, %s33
      %s34 = sphi 0, %s31
      %s35 = sphi 0, %s34
      %s51 = sphi 0, %s35
      %s55 = sphi 0, %s55
      %s57 = sphi 0, %s55
      %s58 = sphi 0, %s57
      %s72 = sphi 0, %s58
      %s76 = sphi 0, %s76
      %s78 = sphi 0, %s76
      %s79 = sphi 0, %s78
      %s93 = sphi 0, %s79
      %s97 = sphi 0, %s97
      %s99 = sphi 0, %s97
      %s100 = sphi 0, %s99
      %s114 = sphi 0, %s100
      %s118 = sphi 0, %s118
      %s120 = sphi 0, %s118
      %s121 = sphi 0, %s120
      %s135 = sphi 0, %s121
      %s139 = sphi 0, %s139
      %s141 = sphi 0, %s139
      %s142 = sphi 0, %s141
      %s156 = sphi 0, %s142
      %s160 = sphi 0, %s160
      %s162 = sphi 0, %s160
      %s163 = sphi 0, %s162
      %s177 = sphi 0, %s163
      %s183 = sphi 0, %s185
      %s186 = sphi 0, %s183
      %s187 = sphi 0, %s186
      %s203 = sphi 0, %s187
    $region4: #{tpu_custom_call.1} parent=1 // loop_header_branch
      %24 = sbr.rel (%p22) target = $region8
    $region5: #{tpu_custom_call.1} parent=1 // loop_body
      %s26 = ssub.s32 %s21, 1
      %s27 = ssub.s32 %s21, 2
      %s28 = sadd.s32 %s21, 1
      %s29 = ssub.s32 %s21, %s28
      %p30 = scmp.eq.s32.totalorder %s29, 0
      %s32 = sadd.s32 %s31, 1
      %s33 = scalar_select %p30, %s31, %s32
      %p36 = pneg %p30
      %p37 = scmp.eq.s32.totalorder %s21, 1
      %p38 = por %p36, %p37
      %p39 = scmp.ne.s32.totalorder %s31, %s34
      %p40 = scmp.eq.s32.totalorder %s21, 0
      %p41 = por %p39, %p40
      %p42 = scmp.ne.s32.totalorder %s31, %s34
      %p43 = scmp.eq.s32.totalorder %s26, 1
      %p44 = por %p42, %p43
      %p45 = scmp.ne.s32.totalorder %s34, %s35
      %p46 = scmp.eq.s32.totalorder %s26, 0
      %p47 = por %p45, %p46
      %p48 = scmp.ne.s32.totalorder %s34, %s35
      %p49 = scmp.eq.s32.totalorder %s27, 1
      %p50 = por %p48, %p49
      %p52 = scmp.ne.s32.totalorder %s35, %s51
      %p53 = scmp.eq.s32.totalorder %s27, 0
      %p54 = por %p52, %p53
      %s56 = sadd.s32 %s55, 1
      %p59 = scmp.eq.s32.totalorder %s21, 1
      %p60 = scmp.ne.s32.totalorder %s55, %s57
      %p61 = scmp.eq.s32.totalorder %s21, 0
      %p62 = por %p60, %p61
      %p63 = scmp.ne.s32.totalorder %s55, %s57
      %p64 = scmp.eq.s32.totalorder %s26, 1
      %p65 = por %p63, %p64
      %p66 = scmp.ne.s32.totalorder %s57, %s58
      %p67 = scmp.eq.s32.totalorder %s26, 0
      %p68 = por %p66, %p67
      %p69 = scmp.ne.s32.totalorder %s57, %s58
      %p70 = scmp.eq.s32.totalorder %s27, 1
      %p71 = por %p69, %p70
      %p73 = scmp.ne.s32.totalorder %s58, %s72
      %p74 = scmp.eq.s32.totalorder %s27, 0
      %p75 = por %p73, %p74
      %s77 = sadd.s32 %s76, 1
      %p80 = scmp.eq.s32.totalorder %s21, 1
      %p81 = scmp.ne.s32.totalorder %s76, %s78
      %p82 = scmp.eq.s32.totalorder %s21, 0
      %p83 = por %p81, %p82
      %p84 = scmp.ne.s32.totalorder %s76, %s78
      %p85 = scmp.eq.s32.totalorder %s26, 1
      %p86 = por %p84, %p85
      %p87 = scmp.ne.s32.totalorder %s78, %s79
      %p88 = scmp.eq.s32.totalorder %s26, 0
      %p89 = por %p87, %p88
      %p90 = scmp.ne.s32.totalorder %s78, %s79
      %p91 = scmp.eq.s32.totalorder %s27, 1
      %p92 = por %p90, %p91
      %p94 = scmp.ne.s32.totalorder %s79, %s93
      %p95 = scmp.eq.s32.totalorder %s27, 0
      %p96 = por %p94, %p95
      %s98 = sadd.s32 %s97, 1
      %p101 = scmp.eq.s32.totalorder %s21, 1
      %p102 = scmp.ne.s32.totalorder %s97, %s99
      %p103 = scmp.eq.s32.totalorder %s21, 0
      %p104 = por %p102, %p103
      %p105 = scmp.ne.s32.totalorder %s97, %s99
      %p106 = scmp.eq.s32.totalorder %s26, 1
      %p107 = por %p105, %p106
      %p108 = scmp.ne.s32.totalorder %s99, %s100
      %p109 = scmp.eq.s32.totalorder %s26, 0
      %p110 = por %p108, %p109
      %p111 = scmp.ne.s32.totalorder %s99, %s100
      %p112 = scmp.eq.s32.totalorder %s27, 1
      %p113 = por %p111, %p112
      %p115 = scmp.ne.s32.totalorder %s100, %s114
      %p116 = scmp.eq.s32.totalorder %s27, 0
      %p117 = por %p115, %p116
      %s119 = sadd.s32 %s118, 1
      %p122 = scmp.eq.s32.totalorder %s21, 1
      %p123 = scmp.ne.s32.totalorder %s118, %s120
      %p124 = scmp.eq.s32.totalorder %s21, 0
      %p125 = por %p123, %p124
      %p126 = scmp.ne.s32.totalorder %s118, %s120
      %p127 = scmp.eq.s32.totalorder %s26, 1
      %p128 = por %p126, %p127
      %p129 = scmp.ne.s32.totalorder %s120, %s121
      %p130 = scmp.eq.s32.totalorder %s26, 0
      %p131 = por %p129, %p130
      %p132 = scmp.ne.s32.totalorder %s120, %s121
      %p133 = scmp.eq.s32.totalorder %s27, 1
      %p134 = por %p132, %p133
      %p136 = scmp.ne.s32.totalorder %s121, %s135
      %p137 = scmp.eq.s32.totalorder %s27, 0
      %p138 = por %p136, %p137
      %s140 = sadd.s32 %s139, 1
      %p143 = scmp.eq.s32.totalorder %s21, 1
      %p144 = scmp.ne.s32.totalorder %s139, %s141
      %p145 = scmp.eq.s32.totalorder %s21, 0
      %p146 = por %p144, %p145
      %p147 = scmp.ne.s32.totalorder %s139, %s141
      %p148 = scmp.eq.s32.totalorder %s26, 1
      %p149 = por %p147, %p148
      %p150 = scmp.ne.s32.totalorder %s141, %s142
      %p151 = scmp.eq.s32.totalorder %s26, 0
      %p152 = por %p150, %p151
      %p153 = scmp.ne.s32.totalorder %s141, %s142
      %p154 = scmp.eq.s32.totalorder %s27, 1
      %p155 = por %p153, %p154
      %p157 = scmp.ne.s32.totalorder %s142, %s156
      %p158 = scmp.eq.s32.totalorder %s27, 0
      %p159 = por %p157, %p158
      %s161 = sadd.s32 %s160, 1
      %p164 = scmp.eq.s32.totalorder %s21, 1
      %p165 = scmp.ne.s32.totalorder %s160, %s162
      %p166 = scmp.eq.s32.totalorder %s21, 0
      %p167 = por %p165, %p166
      %p168 = scmp.ne.s32.totalorder %s160, %s162
      %p169 = scmp.eq.s32.totalorder %s26, 1
      %p170 = por %p168, %p169
      %p171 = scmp.ne.s32.totalorder %s162, %s163
      %p172 = scmp.eq.s32.totalorder %s26, 0
      %p173 = por %p171, %p172
      %p174 = scmp.ne.s32.totalorder %s162, %s163
      %p175 = scmp.eq.s32.totalorder %s27, 1
      %p176 = por %p174, %p175
      %p178 = scmp.ne.s32.totalorder %s163, %s177
      %p179 = scmp.eq.s32.totalorder %s27, 0
      %p180 = por %p178, %p179
      %s181 = ssub.s32 %s21, %s28
      %p182 = scmp.eq.s32.totalorder %s181, 0
      %s184 = sadd.s32 %s183, 1
      %s185 = scalar_select %p182, %s183, %s184
      %p188 = pneg %p182
      %p189 = scmp.eq.s32.totalorder %s21, 1
      %p190 = por %p188, %p189
      %p191 = scmp.ne.s32.totalorder %s183, %s186
      %p192 = scmp.eq.s32.totalorder %s21, 0
      %p193 = por %p191, %p192
      %p194 = scmp.ne.s32.totalorder %s183, %s186
      %p195 = scmp.eq.s32.totalorder %s26, 1
      %p196 = por %p194, %p195
      %p197 = scmp.ne.s32.totalorder %s186, %s187
      %p198 = scmp.eq.s32.totalorder %s26, 0
      %p199 = por %p197, %p198
      %p200 = scmp.ne.s32.totalorder %s186, %s187
      %p201 = scmp.eq.s32.totalorder %s27, 1
      %p202 = por %p200, %p201
      %p204 = scmp.ne.s32.totalorder %s187, %s203
      %p205 = scmp.eq.s32.totalorder %s27, 0
      %p206 = por %p204, %p205
      %p207 = scmp.le.s32.totalorder 1, %s21
      %p208 = scmp.lt.s32.totalorder %s21, 3
      %p209 = pnand %p207, %p208
      %p210 = pneg %p209
      // Predicated region
      $region9: #{tpu_custom_call.1} parent=5 // pred_check
        _
      $region10: #{tpu_custom_call.1} parent=5 // pred_check_branch
        %212 = sbr.rel (%p209) target = $region12
      $region11: #{tpu_custom_call.1} parent=5 // pred_region
        %s213 = ssub.s32 %s21, 1
        // Predicated region
        $region13: #{tpu_custom_call.1} parent=11 // pred_check
          %p214 = pneg %p68
        $region14: #{tpu_custom_call.1} parent=11 // pred_check_branch
          %216 = sbr.rel (%p214) target = $region16
        $region15: #{tpu_custom_call.1} parent=11 // pred_region
          %218 = vsyncadd [#allocation6], 0
          %s219 = sshll.u32 %s1, 4
          %s220 = int_to_ptr.hbm [resolvable:$true] %s219
          %s221 = sshll.u32 [#allocation5], 4
          %s222 = int_to_ptr.vmem [resolvable:$true] %s221
          %227 = dma.hbm_to_vmem [thread:$0]  %s220, 1024, %s222, [#allocation6], 64, 64, 4
        $region16: #{tpu_custom_call.1} parent=11 // pred_fallthru
          _
        // Predicated region
        $region17: #{tpu_custom_call.1} parent=11 // pred_check
          %p228 = pneg %p89
        $region18: #{tpu_custom_call.1} parent=11 // pred_check_branch
          %230 = sbr.rel (%p228) target = $region20
        $region19: #{tpu_custom_call.1} parent=11 // pred_region
          _
        $region20: #{tpu_custom_call.1} parent=11 // pred_fallthru
          _
        // Predicated region
        $region21: #{tpu_custom_call.1} parent=11 // pred_check
          %p231 = pneg %p110
        $region22: #{tpu_custom_call.1} parent=11 // pred_check_branch
          %233 = sbr.rel (%p231) target = $region24
        $region23: #{tpu_custom_call.1} parent=11 // pred_region
          %235 = vsyncadd [#allocation6], 0
          %s236 = sshll.u32 %s3, 4
          %s237 = int_to_ptr.hbm [resolvable:$true] %s236
          %s238 = sshll.u32 [#allocation7], 4
          %s239 = int_to_ptr.vmem [resolvable:$true] %s238
          %244 = dma.hbm_to_vmem [thread:$0]  %s237, 2048, %s239, [#allocation6], 64, 64, 4
        $region24: #{tpu_custom_call.1} parent=11 // pred_fallthru
          _
        // Predicated region
        $region25: #{tpu_custom_call.1} parent=11 // pred_check
          %p245 = pneg %p131
        $region26: #{tpu_custom_call.1} parent=11 // pred_check_branch
          %247 = sbr.rel (%p245) target = $region28
        $region27: #{tpu_custom_call.1} parent=11 // pred_region
          _
        $region28: #{tpu_custom_call.1} parent=11 // pred_fallthru
          _
        // Predicated region
        $region29: #{tpu_custom_call.1} parent=11 // pred_check
          %p248 = pneg %p152
        $region30: #{tpu_custom_call.1} parent=11 // pred_check_branch
          %250 = sbr.rel (%p248) target = $region32
        $region31: #{tpu_custom_call.1} parent=11 // pred_region
          %252 = vsyncadd [#allocation9], 0
          %s253 = sshll.u32 %s5, 4
          %s254 = int_to_ptr.hbm [resolvable:$true] %s253
          %s255 = sshll.u32 [#allocation8], 4
          %s256 = int_to_ptr.vmem [resolvable:$true] %s255
          %261 = dma.hbm_to_vmem [thread:$0]  %s254, 1024, %s256, [#allocation9], 64, 64, 4
        $region32: #{tpu_custom_call.1} parent=11 // pred_fallthru
          _
        // Predicated region
        $region33: #{tpu_custom_call.1} parent=11 // pred_check
          %p262 = pneg %p173
        $region34: #{tpu_custom_call.1} parent=11 // pred_check_branch
          %264 = sbr.rel (%p262) target = $region36
        $region35: #{tpu_custom_call.1} parent=11 // pred_region
          _
        $region36: #{tpu_custom_call.1} parent=11 // pred_fallthru
          _
      $region12: #{tpu_custom_call.1} parent=5 // pred_fallthru
        _
      %p265 = scmp.lt.s32.totalorder %s21, 2
      // Predicated region
      $region37: #{tpu_custom_call.1} parent=5 // pred_check
        %p266 = pneg %p265
      $region38: #{tpu_custom_call.1} parent=5 // pred_check_branch
        %268 = sbr.rel (%p266) target = $region40
      $region39: #{tpu_custom_call.1} parent=5 // pred_region
        // Predicated region
        $region41: #{tpu_custom_call.1} parent=39 // pred_check
          %p269 = pneg %p41
        $region42: #{tpu_custom_call.1} parent=39 // pred_check_branch
          %271 = sbr.rel (%p269) target = $region44
        $region43: #{tpu_custom_call.1} parent=39 // pred_region
          %s272 = sand.u32 %s31, 1
          %s273 = scalar_lea.sflag [#allocation3], %s272
          %s274 = sand.u32 %s31, 1
          %s275 = smul.addr %s274, 64
          %s276 = scalar_lea.vmem [#allocation2], %s275
          %s277 = smul.u32 16, %s21
          %279 = vsyncadd %s273, 0
          %s280 = smul.addr %s277, 4
          %s281 = scalar_lea.hbm %s0, %s280
          %s282 = sshll.u32 %s281, 4
          %s283 = int_to_ptr.hbm [resolvable:$true] %s282
          %s284 = sshll.u32 %s276, 4
          %s285 = int_to_ptr.vmem [resolvable:$true] %s284
          %290 = dma.hbm_to_vmem [thread:$0]  %s283, 1024, %s285, %s273, 64, 64, 4
        $region44: #{tpu_custom_call.1} parent=39 // pred_fallthru
          _
      $region40: #{tpu_custom_call.1} parent=5 // pred_fallthru
        _
      %p291 = scmp.le.s32.totalorder 1, %s21
      %p292 = scmp.lt.s32.totalorder %s21, 3
      %p293 = pnand %p291, %p292
      %p294 = pneg %p293
      // Predicated region
      $region45: #{tpu_custom_call.1} parent=5 // pred_check
        _
      $region46: #{tpu_custom_call.1} parent=5 // pred_check_branch
        %296 = sbr.rel (%p293) target = $region48
      $region47: #{tpu_custom_call.1} parent=5 // pred_region
        %s297 = ssub.s32 %s21, 1
        %s298 = sand.u32 %s34, 1
        %s299 = scalar_lea.sflag [#allocation3], %s298
        %s300 = sand.u32 %s34, 1
        %s301 = smul.addr %s300, 64
        %s302 = scalar_lea.vmem [#allocation2], %s301
        // Predicated region
        $region49: #{tpu_custom_call.1} parent=47 // pred_check
          %p303 = pneg %p47
        $region50: #{tpu_custom_call.1} parent=47 // pred_check_branch
          %305 = sbr.rel (%p303) target = $region52
        $region51: #{tpu_custom_call.1} parent=47 // pred_region
          %307 = dma.done %s299, 1024
        $region52: #{tpu_custom_call.1} parent=47 // pred_fallthru
          _
        // Predicated region
        $region53: #{tpu_custom_call.1} parent=47 // pred_check
          %p308 = pneg %p68
        $region54: #{tpu_custom_call.1} parent=47 // pred_check_branch
          %310 = sbr.rel (%p308) target = $region56
        $region55: #{tpu_custom_call.1} parent=47 // pred_region
          %312 = dma.done [#allocation6], 1024
        $region56: #{tpu_custom_call.1} parent=47 // pred_fallthru
          _
        // Predicated region
        $region57: #{tpu_custom_call.1} parent=47 // pred_check
          %p313 = pneg %p110
        $region58: #{tpu_custom_call.1} parent=47 // pred_check_branch
          %315 = sbr.rel (%p313) target = $region60
        $region59: #{tpu_custom_call.1} parent=47 // pred_region
          %317 = dma.done [#allocation6], 2048
        $region60: #{tpu_custom_call.1} parent=47 // pred_fallthru
          _
        // Predicated region
        $region61: #{tpu_custom_call.1} parent=47 // pred_check
          %p318 = pneg %p152
        $region62: #{tpu_custom_call.1} parent=47 // pred_check_branch
          %320 = sbr.rel (%p318) target = $region64
        $region63: #{tpu_custom_call.1} parent=47 // pred_region
          %322 = dma.done [#allocation9], 1024
        $region64: #{tpu_custom_call.1} parent=47 // pred_fallthru
          _
        %s323 = sand.u32 %s34, 1
        %s324 = scalar_lea.sflag [#allocation3], %s323
        %s325 = sand.u32 %s34, 1
        %s326 = smul.addr %s325, 64
        %s327 = scalar_lea.vmem [#allocation2], %s326
        %p328 = pneg %p47
        %p329 = pneg %p44
        %p330 = pneg %p68
        %p331 = pneg %p65
        %p332 = pneg %p89
        %p333 = pneg %p86
        %p334 = pneg %p110
        %p335 = pneg %p107
        %p336 = pneg %p131
        %p337 = pneg %p128
        %p338 = pneg %p152
        %p339 = pneg %p149
        %p340 = pneg %p173
        %p341 = pneg %p170
        %p342 = pneg %p199
        %p343 = pneg %p196
        %s344 = sand.u32 %s186, 1
        %s345 = scalar_lea.sflag [#allocation4], %s344
        %s346 = sand.u32 %s186, 1
        %s347 = smul.addr %s346, 128
        %s348 = scalar_lea.vmem [#allocation10], %s347
        %s349 = smul.u32 16, %s26
        %s350 = smul.u32 16, %s26
        %v351 = vld [vmem:[%s302] sm:$0xf]
        %v352 = vld [vmem:[%s302 + $0x4] sm:$0xf]
        %v353 = vld [vmem:[%s302 + $0x8] sm:$0xf]
        %v354 = vld [vmem:[%s302 + $0xc] sm:$0xf]
        %v355 = vld [vmem:[%s302 + $0x10] sm:$0xf]
        %v356 = vld [vmem:[%s302 + $0x14] sm:$0xf]
        %v357 = vld [vmem:[%s302 + $0x18] sm:$0xf]
        %v358 = vld [vmem:[%s302 + $0x1c] sm:$0xf]
        %v359 = vld [vmem:[%s302 + $0x20] sm:$0xf]
        %v360 = vld [vmem:[%s302 + $0x24] sm:$0xf]
        %v361 = vld [vmem:[%s302 + $0x28] sm:$0xf]
        %v362 = vld [vmem:[%s302 + $0x2c] sm:$0xf]
        %v363 = vld [vmem:[%s302 + $0x30] sm:$0xf]
        %v364 = vld [vmem:[%s302 + $0x34] sm:$0xf]
        %v365 = vld [vmem:[%s302 + $0x38] sm:$0xf]
        %v366 = vld [vmem:[%s302 + $0x3c] sm:$0xf]
        %v367 = vld [vmem:[#allocation5] sm:$0xf]
        %v368 = vld [vmem:[#allocation5 + $0x4] sm:$0xf]
        %v369 = vld [vmem:[#allocation5 + $0x8] sm:$0xf]
        %v370 = vld [vmem:[#allocation5 + $0xc] sm:$0xf]
        %v371 = vld [vmem:[#allocation5 + $0x10] sm:$0xf]
        %v372 = vld [vmem:[#allocation5 + $0x14] sm:$0xf]
        %v373 = vld [vmem:[#allocation5 + $0x18] sm:$0xf]
        %v374 = vld [vmem:[#allocation5 + $0x1c] sm:$0xf]
        %v375 = vld [vmem:[#allocation5 + $0x20] sm:$0xf]
        %v376 = vld [vmem:[#allocation5 + $0x24] sm:$0xf]
        %v377 = vld [vmem:[#allocation5 + $0x28] sm:$0xf]
        %v378 = vld [vmem:[#allocation5 + $0x2c] sm:$0xf]
        %v379 = vld [vmem:[#allocation5 + $0x30] sm:$0xf]
        %v380 = vld [vmem:[#allocation5 + $0x34] sm:$0xf]
        %v381 = vld [vmem:[#allocation5 + $0x38] sm:$0xf]
        %v382 = vld [vmem:[#allocation5 + $0x3c] sm:$0xf]
        %v399 = vunpack.c.l.b16 %v351
        %v400 = vunpack.c.l.b16 %v352
        %v401 = vunpack.c.l.b16 %v353
        %v402 = vunpack.c.l.b16 %v354
        %v403 = vunpack.c.l.b16 %v355
        %v404 = vunpack.c.l.b16 %v356
        %v405 = vunpack.c.l.b16 %v357
        %v406 = vunpack.c.l.b16 %v358
        %v407 = vunpack.c.l.b16 %v359
        %v408 = vunpack.c.l.b16 %v360
        %v409 = vunpack.c.l.b16 %v361
        %v410 = vunpack.c.l.b16 %v362
        %v411 = vunpack.c.l.b16 %v363
        %v412 = vunpack.c.l.b16 %v364
        %v413 = vunpack.c.l.b16 %v365
        %v414 = vunpack.c.l.b16 %v366
        %v415 = vpack.c.b16 %v400, %v399
        %v416 = vpack.c.b16 %v402, %v401
        %v417 = vpack.c.b16 %v404, %v403
        %v418 = vpack.c.b16 %v406, %v405
        %v419 = vpack.c.b16 %v408, %v407
        %v420 = vpack.c.b16 %v410, %v409
        %v421 = vpack.c.b16 %v412, %v411
        %v422 = vpack.c.b16 %v414, %v413
        %v447 = vunpack.c.l.b16 %v367
        %v448 = vunpack.c.l.b16 %v368
        %v449 = vunpack.c.l.b16 %v369
        %v450 = vunpack.c.l.b16 %v370
        %v451 = vunpack.c.l.b16 %v371
        %v452 = vunpack.c.l.b16 %v372
        %v453 = vunpack.c.l.b16 %v373
        %v454 = vunpack.c.l.b16 %v374
        %v455 = vunpack.c.l.b16 %v375
        %v456 = vunpack.c.l.b16 %v376
        %v457 = vunpack.c.l.b16 %v377
        %v458 = vunpack.c.l.b16 %v378
        %v459 = vunpack.c.l.b16 %v379
        %v460 = vunpack.c.l.b16 %v380
        %v461 = vunpack.c.l.b16 %v381
        %v462 = vunpack.c.l.b16 %v382
        %v463 = vpack.c.b16 %v448, %v447
        %v464 = vpack.c.b16 %v450, %v449
        %v465 = vpack.c.b16 %v452, %v451
        %v466 = vpack.c.b16 %v454, %v453
        %v467 = vpack.c.b16 %v456, %v455
        %v468 = vpack.c.b16 %v458, %v457
        %v469 = vpack.c.b16 %v460, %v459
        %v470 = vpack.c.b16 %v462, %v461
        %479 = vmatpush.bf16.msra.mxu0 %v470
        %480 = vmatpush.bf16.msra.mxu0 %v469
        %481 = vmatpush.bf16.msra.mxu0 %v468
        %482 = vmatpush.bf16.msra.mxu0 %v467
        %483 = vmatpush.bf16.msra.mxu0 %v466
        %484 = vmatpush.bf16.msra.mxu0 %v465
        %485 = vmatpush.bf16.msra.mxu0 %v464
        %486 = vmatpush.bf16.msra.mxu0 %v463
        %487 = vmatmul.bf16.gmra.mxu0 %v415
        %v488 = vpop.f32.mrf.mxu0
        %v489 = vadd.f32 0.0, %v488
        %v490 = vpop.f32.mrf.mxu0
        %v491 = vadd.f32 0.0, %v490
        %492 = vmatmul.bf16.gmra.mxu0 %v416
        %v493 = vpop.f32.mrf.mxu0
        %v494 = vadd.f32 0.0, %v493
        %v495 = vpop.f32.mrf.mxu0
        %v496 = vadd.f32 0.0, %v495
        %497 = vmatmul.bf16.gmra.mxu0 %v417
        %v498 = vpop.f32.mrf.mxu0
        %v499 = vadd.f32 0.0, %v498
        %v500 = vpop.f32.mrf.mxu0
        %v501 = vadd.f32 0.0, %v500
        %502 = vmatmul.bf16.gmra.mxu0 %v418
        %v503 = vpop.f32.mrf.mxu0
        %v504 = vadd.f32 0.0, %v503
        %v505 = vpop.f32.mrf.mxu0
        %v506 = vadd.f32 0.0, %v505
        %507 = vmatmul.bf16.gmra.mxu0 %v419
        %v508 = vpop.f32.mrf.mxu0
        %v509 = vadd.f32 0.0, %v508
        %v510 = vpop.f32.mrf.mxu0
        %v511 = vadd.f32 0.0, %v510
        %512 = vmatmul.bf16.gmra.mxu0 %v420
        %v513 = vpop.f32.mrf.mxu0
        %v514 = vadd.f32 0.0, %v513
        %v515 = vpop.f32.mrf.mxu0
        %v516 = vadd.f32 0.0, %v515
        %517 = vmatmul.bf16.gmra.mxu0 %v421
        %v518 = vpop.f32.mrf.mxu0
        %v519 = vadd.f32 0.0, %v518
        %v520 = vpop.f32.mrf.mxu0
        %v521 = vadd.f32 0.0, %v520
        %522 = vmatmul.bf16.gmra.mxu0 %v422
        %v523 = vpop.f32.mrf.mxu0
        %v524 = vadd.f32 0.0, %v523
        %v525 = vpop.f32.mrf.mxu0
        %v526 = vadd.f32 0.0, %v525
        %527 = vdwg.mxu0
        %v528 = vpack.c.bf16 %v489, %v489
        %v529 = vpack.c.bf16 %v491, %v491
        %v530 = vpack.c.bf16 %v494, %v494
        %v531 = vpack.c.bf16 %v496, %v496
        %v532 = vpack.c.bf16 %v499, %v499
        %v533 = vpack.c.bf16 %v501, %v501
        %v534 = vpack.c.bf16 %v504, %v504
        %v535 = vpack.c.bf16 %v506, %v506
        %v536 = vpack.c.bf16 %v509, %v509
        %v537 = vpack.c.bf16 %v511, %v511
        %v538 = vpack.c.bf16 %v514, %v514
        %v539 = vpack.c.bf16 %v516, %v516
        %v540 = vpack.c.bf16 %v519, %v519
        %v541 = vpack.c.bf16 %v521, %v521
        %v542 = vpack.c.bf16 %v524, %v524
        %v543 = vpack.c.bf16 %v526, %v526
        %v544 = vld [vmem:[%s2] sm:$0x1]
        %v546 = vpack.i.b16 %v544, %v544
        %v548 = vperm.slane %v546, 0
        %v549 = vunpack.c.l.bf16 %v528
        %v550 = vunpack.c.l.bf16 %v529
        %v551 = vunpack.c.l.bf16 %v530
        %v552 = vunpack.c.l.bf16 %v531
        %v553 = vunpack.c.l.bf16 %v532
        %v554 = vunpack.c.l.bf16 %v533
        %v555 = vunpack.c.l.bf16 %v534
        %v556 = vunpack.c.l.bf16 %v535
        %v557 = vunpack.c.l.bf16 %v536
        %v558 = vunpack.c.l.bf16 %v537
        %v559 = vunpack.c.l.bf16 %v538
        %v560 = vunpack.c.l.bf16 %v539
        %v561 = vunpack.c.l.bf16 %v540
        %v562 = vunpack.c.l.bf16 %v541
        %v563 = vunpack.c.l.bf16 %v542
        %v564 = vunpack.c.l.bf16 %v543
        %v565 = vunpack.c.l.bf16 %v548
        %v566 = vadd.f32 %v549, %v565
        %v567 = vadd.f32 %v550, %v565
        %v568 = vadd.f32 %v551, %v565
        %v569 = vadd.f32 %v552, %v565
        %v570 = vadd.f32 %v553, %v565
        %v571 = vadd.f32 %v554, %v565
        %v572 = vadd.f32 %v555, %v565
        %v573 = vadd.f32 %v556, %v565
        %v574 = vadd.f32 %v557, %v565
        %v575 = vadd.f32 %v558, %v565
        %v576 = vadd.f32 %v559, %v565
        %v577 = vadd.f32 %v560, %v565
        %v578 = vadd.f32 %v561, %v565
        %v579 = vadd.f32 %v562, %v565
        %v580 = vadd.f32 %v563, %v565
        %v581 = vadd.f32 %v564, %v565
        %v582 = vpack.c.bf16 %v566, %v566
        %v583 = vpack.c.bf16 %v567, %v567
        %v584 = vpack.c.bf16 %v568, %v568
        %v585 = vpack.c.bf16 %v569, %v569
        %v586 = vpack.c.bf16 %v570, %v570
        %v587 = vpack.c.bf16 %v571, %v571
        %v588 = vpack.c.bf16 %v572, %v572
        %v589 = vpack.c.bf16 %v573, %v573
        %v590 = vpack.c.bf16 %v574, %v574
        %v591 = vpack.c.bf16 %v575, %v575
        %v592 = vpack.c.bf16 %v576, %v576
        %v593 = vpack.c.bf16 %v577, %v577
        %v594 = vpack.c.bf16 %v578, %v578
        %v595 = vpack.c.bf16 %v579, %v579
        %v596 = vpack.c.bf16 %v580, %v580
        %v597 = vpack.c.bf16 %v581, %v581
        %v598 = vunpack.c.l.bf16 %v582
        %v599 = vunpack.c.l.bf16 %v583
        %v600 = vunpack.c.l.bf16 %v584
        %v601 = vunpack.c.l.bf16 %v585
        %v602 = vunpack.c.l.bf16 %v586
        %v603 = vunpack.c.l.bf16 %v587
        %v604 = vunpack.c.l.bf16 %v588
        %v605 = vunpack.c.l.bf16 %v589
        %v606 = vunpack.c.l.bf16 %v590
        %v607 = vunpack.c.l.bf16 %v591
        %v608 = vunpack.c.l.bf16 %v592
        %v609 = vunpack.c.l.bf16 %v593
        %v610 = vunpack.c.l.bf16 %v594
        %v611 = vunpack.c.l.bf16 %v595
        %v612 = vunpack.c.l.bf16 %v596
        %v613 = vunpack.c.l.bf16 %v597
        %v614 = vmul.f32 %v598, 0.5
        %v615 = vmul.f32 %v599, 0.5
        %v616 = vmul.f32 %v600, 0.5
        %v617 = vmul.f32 %v601, 0.5
        %v618 = vmul.f32 %v602, 0.5
        %v619 = vmul.f32 %v603, 0.5
        %v620 = vmul.f32 %v604, 0.5
        %v621 = vmul.f32 %v605, 0.5
        %v622 = vmul.f32 %v606, 0.5
        %v623 = vmul.f32 %v607, 0.5
        %v624 = vmul.f32 %v608, 0.5
        %v625 = vmul.f32 %v609, 0.5
        %v626 = vmul.f32 %v610, 0.5
        %v627 = vmul.f32 %v611, 0.5
        %v628 = vmul.f32 %v612, 0.5
        %v629 = vmul.f32 %v613, 0.5
        %v630 = vpack.c.bf16 %v614, %v614
        %v631 = vpack.c.bf16 %v615, %v615
        %v632 = vpack.c.bf16 %v616, %v616
        %v633 = vpack.c.bf16 %v617, %v617
        %v634 = vpack.c.bf16 %v618, %v618
        %v635 = vpack.c.bf16 %v619, %v619
        %v636 = vpack.c.bf16 %v620, %v620
        %v637 = vpack.c.bf16 %v621, %v621
        %v638 = vpack.c.bf16 %v622, %v622
        %v639 = vpack.c.bf16 %v623, %v623
        %v640 = vpack.c.bf16 %v624, %v624
        %v641 = vpack.c.bf16 %v625, %v625
        %v642 = vpack.c.bf16 %v626, %v626
        %v643 = vpack.c.bf16 %v627, %v627
        %v644 = vpack.c.bf16 %v628, %v628
        %v645 = vpack.c.bf16 %v629, %v629
        %v646 = vmul.f32 %v598, %v598
        %v647 = vmul.f32 %v599, %v599
        %v648 = vmul.f32 %v600, %v600
        %v649 = vmul.f32 %v601, %v601
        %v650 = vmul.f32 %v602, %v602
        %v651 = vmul.f32 %v603, %v603
        %v652 = vmul.f32 %v604, %v604
        %v653 = vmul.f32 %v605, %v605
        %v654 = vmul.f32 %v606, %v606
        %v655 = vmul.f32 %v607, %v607
        %v656 = vmul.f32 %v608, %v608
        %v657 = vmul.f32 %v609, %v609
        %v658 = vmul.f32 %v610, %v610
        %v659 = vmul.f32 %v611, %v611
        %v660 = vmul.f32 %v612, %v612
        %v661 = vmul.f32 %v613, %v613
        %v662 = vpack.c.bf16 %v646, %v646
        %v663 = vpack.c.bf16 %v647, %v647
        %v664 = vpack.c.bf16 %v648, %v648
        %v665 = vpack.c.bf16 %v649, %v649
        %v666 = vpack.c.bf16 %v650, %v650
        %v667 = vpack.c.bf16 %v651, %v651
        %v668 = vpack.c.bf16 %v652, %v652
        %v669 = vpack.c.bf16 %v653, %v653
        %v670 = vpack.c.bf16 %v654, %v654
        %v671 = vpack.c.bf16 %v655, %v655
        %v672 = vpack.c.bf16 %v656, %v656
        %v673 = vpack.c.bf16 %v657, %v657
        %v674 = vpack.c.bf16 %v658, %v658
        %v675 = vpack.c.bf16 %v659, %v659
        %v676 = vpack.c.bf16 %v660, %v660
        %v677 = vpack.c.bf16 %v661, %v661
        %v678 = vunpack.c.l.bf16 %v662
        %v679 = vunpack.c.l.bf16 %v663
        %v680 = vunpack.c.l.bf16 %v664
        %v681 = vunpack.c.l.bf16 %v665
        %v682 = vunpack.c.l.bf16 %v666
        %v683 = vunpack.c.l.bf16 %v667
        %v684 = vunpack.c.l.bf16 %v668
        %v685 = vunpack.c.l.bf16 %v669
        %v686 = vunpack.c.l.bf16 %v670
        %v687 = vunpack.c.l.bf16 %v671
        %v688 = vunpack.c.l.bf16 %v672
        %v689 = vunpack.c.l.bf16 %v673
        %v690 = vunpack.c.l.bf16 %v674
        %v691 = vunpack.c.l.bf16 %v675
        %v692 = vunpack.c.l.bf16 %v676
        %v693 = vunpack.c.l.bf16 %v677
        %v694 = vmul.f32 %v678, %v598
        %v695 = vmul.f32 %v679, %v599
        %v696 = vmul.f32 %v680, %v600
        %v697 = vmul.f32 %v681, %v601
        %v698 = vmul.f32 %v682, %v602
        %v699 = vmul.f32 %v683, %v603
        %v700 = vmul.f32 %v684, %v604
        %v701 = vmul.f32 %v685, %v605
        %v702 = vmul.f32 %v686, %v606
        %v703 = vmul.f32 %v687, %v607
        %v704 = vmul.f32 %v688, %v608
        %v705 = vmul.f32 %v689, %v609
        %v706 = vmul.f32 %v690, %v610
        %v707 = vmul.f32 %v691, %v611
        %v708 = vmul.f32 %v692, %v612
        %v709 = vmul.f32 %v693, %v613
        %v710 = vpack.c.bf16 %v694, %v694
        %v711 = vpack.c.bf16 %v695, %v695
        %v712 = vpack.c.bf16 %v696, %v696
        %v713 = vpack.c.bf16 %v697, %v697
        %v714 = vpack.c.bf16 %v698, %v698
        %v715 = vpack.c.bf16 %v699, %v699
        %v716 = vpack.c.bf16 %v700, %v700
        %v717 = vpack.c.bf16 %v701, %v701
        %v718 = vpack.c.bf16 %v702, %v702
        %v719 = vpack.c.bf16 %v703, %v703
        %v720 = vpack.c.bf16 %v704, %v704
        %v721 = vpack.c.bf16 %v705, %v705
        %v722 = vpack.c.bf16 %v706, %v706
        %v723 = vpack.c.bf16 %v707, %v707
        %v724 = vpack.c.bf16 %v708, %v708
        %v725 = vpack.c.bf16 %v709, %v709
        %v726 = vunpack.c.l.bf16 %v710
        %v727 = vunpack.c.l.bf16 %v711
        %v728 = vunpack.c.l.bf16 %v712
        %v729 = vunpack.c.l.bf16 %v713
        %v730 = vunpack.c.l.bf16 %v714
        %v731 = vunpack.c.l.bf16 %v715
        %v732 = vunpack.c.l.bf16 %v716
        %v733 = vunpack.c.l.bf16 %v717
        %v734 = vunpack.c.l.bf16 %v718
        %v735 = vunpack.c.l.bf16 %v719
        %v736 = vunpack.c.l.bf16 %v720
        %v737 = vunpack.c.l.bf16 %v721
        %v738 = vunpack.c.l.bf16 %v722
        %v739 = vunpack.c.l.bf16 %v723
        %v740 = vunpack.c.l.bf16 %v724
        %v741 = vunpack.c.l.bf16 %v725
        %v742 = vmul.f32 %v726, 0.044677734
        %v743 = vmul.f32 %v727, 0.044677734
        %v744 = vmul.f32 %v728, 0.044677734
        %v745 = vmul.f32 %v729, 0.044677734
        %v746 = vmul.f32 %v730, 0.044677734
        %v747 = vmul.f32 %v731, 0.044677734
        %v748 = vmul.f32 %v732, 0.044677734
        %v749 = vmul.f32 %v733, 0.044677734
        %v750 = vmul.f32 %v734, 0.044677734
        %v751 = vmul.f32 %v735, 0.044677734
        %v752 = vmul.f32 %v736, 0.044677734
        %v753 = vmul.f32 %v737, 0.044677734
        %v754 = vmul.f32 %v738, 0.044677734
        %v755 = vmul.f32 %v739, 0.044677734
        %v756 = vmul.f32 %v740, 0.044677734
        %v757 = vmul.f32 %v741, 0.044677734
        %v758 = vpack.c.bf16 %v742, %v742
        %v759 = vpack.c.bf16 %v743, %v743
        %v760 = vpack.c.bf16 %v744, %v744
        %v761 = vpack.c.bf16 %v745, %v745
        %v762 = vpack.c.bf16 %v746, %v746
        %v763 = vpack.c.bf16 %v747, %v747
        %v764 = vpack.c.bf16 %v748, %v748
        %v765 = vpack.c.bf16 %v749, %v749
        %v766 = vpack.c.bf16 %v750, %v750
        %v767 = vpack.c.bf16 %v751, %v751
        %v768 = vpack.c.bf16 %v752, %v752
        %v769 = vpack.c.bf16 %v753, %v753
        %v770 = vpack.c.bf16 %v754, %v754
        %v771 = vpack.c.bf16 %v755, %v755
        %v772 = vpack.c.bf16 %v756, %v756
        %v773 = vpack.c.bf16 %v757, %v757
        %v774 = vunpack.c.l.bf16 %v758
        %v775 = vunpack.c.l.bf16 %v759
        %v776 = vunpack.c.l.bf16 %v760
        %v777 = vunpack.c.l.bf16 %v761
        %v778 = vunpack.c.l.bf16 %v762
        %v779 = vunpack.c.l.bf16 %v763
        %v780 = vunpack.c.l.bf16 %v764
        %v781 = vunpack.c.l.bf16 %v765
        %v782 = vunpack.c.l.bf16 %v766
        %v783 = vunpack.c.l.bf16 %v767
        %v784 = vunpack.c.l.bf16 %v768
        %v785 = vunpack.c.l.bf16 %v769
        %v786 = vunpack.c.l.bf16 %v770
        %v787 = vunpack.c.l.bf16 %v771
        %v788 = vunpack.c.l.bf16 %v772
        %v789 = vunpack.c.l.bf16 %v773
        %v790 = vadd.f32 %v598, %v774
        %v791 = vadd.f32 %v599, %v775
        %v792 = vadd.f32 %v600, %v776
        %v793 = vadd.f32 %v601, %v777
        %v794 = vadd.f32 %v602, %v778
        %v795 = vadd.f32 %v603, %v779
        %v796 = vadd.f32 %v604, %v780
        %v797 = vadd.f32 %v605, %v781
        %v798 = vadd.f32 %v606, %v782
        %v799 = vadd.f32 %v607, %v783
        %v800 = vadd.f32 %v608, %v784
        %v801 = vadd.f32 %v609, %v785
        %v802 = vadd.f32 %v610, %v786
        %v803 = vadd.f32 %v611, %v787
        %v804 = vadd.f32 %v612, %v788
        %v805 = vadd.f32 %v613, %v789
        %v806 = vpack.c.bf16 %v790, %v790
        %v807 = vpack.c.bf16 %v791, %v791
        %v808 = vpack.c.bf16 %v792, %v792
        %v809 = vpack.c.bf16 %v793, %v793
        %v810 = vpack.c.bf16 %v794, %v794
        %v811 = vpack.c.bf16 %v795, %v795
        %v812 = vpack.c.bf16 %v796, %v796
        %v813 = vpack.c.bf16 %v797, %v797
        %v814 = vpack.c.bf16 %v798, %v798
        %v815 = vpack.c.bf16 %v799, %v799
        %v816 = vpack.c.bf16 %v800, %v800
        %v817 = vpack.c.bf16 %v801, %v801
        %v818 = vpack.c.bf16 %v802, %v802
        %v819 = vpack.c.bf16 %v803, %v803
        %v820 = vpack.c.bf16 %v804, %v804
        %v821 = vpack.c.bf16 %v805, %v805
        %v822 = vunpack.c.l.bf16 %v806
        %v823 = vunpack.c.l.bf16 %v807
        %v824 = vunpack.c.l.bf16 %v808
        %v825 = vunpack.c.l.bf16 %v809
        %v826 = vunpack.c.l.bf16 %v810
        %v827 = vunpack.c.l.bf16 %v811
        %v828 = vunpack.c.l.bf16 %v812
        %v829 = vunpack.c.l.bf16 %v813
        %v830 = vunpack.c.l.bf16 %v814
        %v831 = vunpack.c.l.bf16 %v815
        %v832 = vunpack.c.l.bf16 %v816
        %v833 = vunpack.c.l.bf16 %v817
        %v834 = vunpack.c.l.bf16 %v818
        %v835 = vunpack.c.l.bf16 %v819
        %v836 = vunpack.c.l.bf16 %v820
        %v837 = vunpack.c.l.bf16 %v821
        %v838 = vmul.f32 %v822, 0.796875
        %v839 = vmul.f32 %v823, 0.796875
        %v840 = vmul.f32 %v824, 0.796875
        %v841 = vmul.f32 %v825, 0.796875
        %v842 = vmul.f32 %v826, 0.796875
        %v843 = vmul.f32 %v827, 0.796875
        %v844 = vmul.f32 %v828, 0.796875
        %v845 = vmul.f32 %v829, 0.796875
        %v846 = vmul.f32 %v830, 0.796875
        %v847 = vmul.f32 %v831, 0.796875
        %v848 = vmul.f32 %v832, 0.796875
        %v849 = vmul.f32 %v833, 0.796875
        %v850 = vmul.f32 %v834, 0.796875
        %v851 = vmul.f32 %v835, 0.796875
        %v852 = vmul.f32 %v836, 0.796875
        %v853 = vmul.f32 %v837, 0.796875
        %v854 = vpack.c.bf16 %v838, %v838
        %v855 = vpack.c.bf16 %v839, %v839
        %v856 = vpack.c.bf16 %v840, %v840
        %v857 = vpack.c.bf16 %v841, %v841
        %v858 = vpack.c.bf16 %v842, %v842
        %v859 = vpack.c.bf16 %v843, %v843
        %v860 = vpack.c.bf16 %v844, %v844
        %v861 = vpack.c.bf16 %v845, %v845
        %v862 = vpack.c.bf16 %v846, %v846
        %v863 = vpack.c.bf16 %v847, %v847
        %v864 = vpack.c.bf16 %v848, %v848
        %v865 = vpack.c.bf16 %v849, %v849
        %v866 = vpack.c.bf16 %v850, %v850
        %v867 = vpack.c.bf16 %v851, %v851
        %v868 = vpack.c.bf16 %v852, %v852
        %v869 = vpack.c.bf16 %v853, %v853
        %v870 = vunpack.c.l.bf16 %v854
        %v871 = vunpack.c.l.bf16 %v855
        %v872 = vunpack.c.l.bf16 %v856
        %v873 = vunpack.c.l.bf16 %v857
        %v874 = vunpack.c.l.bf16 %v858
        %v875 = vunpack.c.l.bf16 %v859
        %v876 = vunpack.c.l.bf16 %v860
        %v877 = vunpack.c.l.bf16 %v861
        %v878 = vunpack.c.l.bf16 %v862
        %v879 = vunpack.c.l.bf16 %v863
        %v880 = vunpack.c.l.bf16 %v864
        %v881 = vunpack.c.l.bf16 %v865
        %v882 = vunpack.c.l.bf16 %v866
        %v883 = vunpack.c.l.bf16 %v867
        %v884 = vunpack.c.l.bf16 %v868
        %v885 = vunpack.c.l.bf16 %v869
        %v886 = vtanh.pop %v870
        %v887 = vtanh.pop %v871
        %v888 = vtanh.pop %v872
        %v889 = vtanh.pop %v873
        %v890 = vtanh.pop %v874
        %v891 = vtanh.pop %v875
        %v892 = vtanh.pop %v876
        %v893 = vtanh.pop %v877
        %v894 = vtanh.pop %v878
        %v895 = vtanh.pop %v879
        %v896 = vtanh.pop %v880
        %v897 = vtanh.pop %v881
        %v898 = vtanh.pop %v882
        %v899 = vtanh.pop %v883
        %v900 = vtanh.pop %v884
        %v901 = vtanh.pop %v885
        %v902 = vpack.c.bf16 %v886, %v886
        %v903 = vpack.c.bf16 %v887, %v887
        %v904 = vpack.c.bf16 %v888, %v888
        %v905 = vpack.c.bf16 %v889, %v889
        %v906 = vpack.c.bf16 %v890, %v890
        %v907 = vpack.c.bf16 %v891, %v891
        %v908 = vpack.c.bf16 %v892, %v892
        %v909 = vpack.c.bf16 %v893, %v893
        %v910 = vpack.c.bf16 %v894, %v894
        %v911 = vpack.c.bf16 %v895, %v895
        %v912 = vpack.c.bf16 %v896, %v896
        %v913 = vpack.c.bf16 %v897, %v897
        %v914 = vpack.c.bf16 %v898, %v898
        %v915 = vpack.c.bf16 %v899, %v899
        %v916 = vpack.c.bf16 %v900, %v900
        %v917 = vpack.c.bf16 %v901, %v901
        %v918 = vunpack.c.l.bf16 %v902
        %v919 = vunpack.c.l.bf16 %v903
        %v920 = vunpack.c.l.bf16 %v904
        %v921 = vunpack.c.l.bf16 %v905
        %v922 = vunpack.c.l.bf16 %v906
        %v923 = vunpack.c.l.bf16 %v907
        %v924 = vunpack.c.l.bf16 %v908
        %v925 = vunpack.c.l.bf16 %v909
        %v926 = vunpack.c.l.bf16 %v910
        %v927 = vunpack.c.l.bf16 %v911
        %v928 = vunpack.c.l.bf16 %v912
        %v929 = vunpack.c.l.bf16 %v913
        %v930 = vunpack.c.l.bf16 %v914
        %v931 = vunpack.c.l.bf16 %v915
        %v932 = vunpack.c.l.bf16 %v916
        %v933 = vunpack.c.l.bf16 %v917
        %v934 = vadd.f32 %v918, 1.0
        %v935 = vadd.f32 %v919, 1.0
        %v936 = vadd.f32 %v920, 1.0
        %v937 = vadd.f32 %v921, 1.0
        %v938 = vadd.f32 %v922, 1.0
        %v939 = vadd.f32 %v923, 1.0
        %v940 = vadd.f32 %v924, 1.0
        %v941 = vadd.f32 %v925, 1.0
        %v942 = vadd.f32 %v926, 1.0
        %v943 = vadd.f32 %v927, 1.0
        %v944 = vadd.f32 %v928, 1.0
        %v945 = vadd.f32 %v929, 1.0
        %v946 = vadd.f32 %v930, 1.0
        %v947 = vadd.f32 %v931, 1.0
        %v948 = vadd.f32 %v932, 1.0
        %v949 = vadd.f32 %v933, 1.0
        %v950 = vpack.c.bf16 %v934, %v934
        %v951 = vpack.c.bf16 %v935, %v935
        %v952 = vpack.c.bf16 %v936, %v936
        %v953 = vpack.c.bf16 %v937, %v937
        %v954 = vpack.c.bf16 %v938, %v938
        %v955 = vpack.c.bf16 %v939, %v939
        %v956 = vpack.c.bf16 %v940, %v940
        %v957 = vpack.c.bf16 %v941, %v941
        %v958 = vpack.c.bf16 %v942, %v942
        %v959 = vpack.c.bf16 %v943, %v943
        %v960 = vpack.c.bf16 %v944, %v944
        %v961 = vpack.c.bf16 %v945, %v945
        %v962 = vpack.c.bf16 %v946, %v946
        %v963 = vpack.c.bf16 %v947, %v947
        %v964 = vpack.c.bf16 %v948, %v948
        %v965 = vpack.c.bf16 %v949, %v949
        %v966 = vunpack.c.l.bf16 %v630
        %v967 = vunpack.c.l.bf16 %v631
        %v968 = vunpack.c.l.bf16 %v632
        %v969 = vunpack.c.l.bf16 %v633
        %v970 = vunpack.c.l.bf16 %v634
        %v971 = vunpack.c.l.bf16 %v635
        %v972 = vunpack.c.l.bf16 %v636
        %v973 = vunpack.c.l.bf16 %v637
        %v974 = vunpack.c.l.bf16 %v638
        %v975 = vunpack.c.l.bf16 %v639
        %v976 = vunpack.c.l.bf16 %v640
        %v977 = vunpack.c.l.bf16 %v641
        %v978 = vunpack.c.l.bf16 %v642
        %v979 = vunpack.c.l.bf16 %v643
        %v980 = vunpack.c.l.bf16 %v644
        %v981 = vunpack.c.l.bf16 %v645
        %v982 = vunpack.c.l.bf16 %v950
        %v983 = vunpack.c.l.bf16 %v951
        %v984 = vunpack.c.l.bf16 %v952
        %v985 = vunpack.c.l.bf16 %v953
        %v986 = vunpack.c.l.bf16 %v954
        %v987 = vunpack.c.l.bf16 %v955
        %v988 = vunpack.c.l.bf16 %v956
        %v989 = vunpack.c.l.bf16 %v957
        %v990 = vunpack.c.l.bf16 %v958
        %v991 = vunpack.c.l.bf16 %v959
        %v992 = vunpack.c.l.bf16 %v960
        %v993 = vunpack.c.l.bf16 %v961
        %v994 = vunpack.c.l.bf16 %v962
        %v995 = vunpack.c.l.bf16 %v963
        %v996 = vunpack.c.l.bf16 %v964
        %v997 = vunpack.c.l.bf16 %v965
        %v998 = vmul.f32 %v966, %v982
        %v999 = vmul.f32 %v967, %v983
        %v1000 = vmul.f32 %v968, %v984
        %v1001 = vmul.f32 %v969, %v985
        %v1002 = vmul.f32 %v970, %v986
        %v1003 = vmul.f32 %v971, %v987
        %v1004 = vmul.f32 %v972, %v988
        %v1005 = vmul.f32 %v973, %v989
        %v1006 = vmul.f32 %v974, %v990
        %v1007 = vmul.f32 %v975, %v991
        %v1008 = vmul.f32 %v976, %v992
        %v1009 = vmul.f32 %v977, %v993
        %v1010 = vmul.f32 %v978, %v994
        %v1011 = vmul.f32 %v979, %v995
        %v1012 = vmul.f32 %v980, %v996
        %v1013 = vmul.f32 %v981, %v997
        %v1014 = vpack.c.bf16 %v998, %v998
        %v1015 = vpack.c.bf16 %v999, %v999
        %v1016 = vpack.c.bf16 %v1000, %v1000
        %v1017 = vpack.c.bf16 %v1001, %v1001
        %v1018 = vpack.c.bf16 %v1002, %v1002
        %v1019 = vpack.c.bf16 %v1003, %v1003
        %v1020 = vpack.c.bf16 %v1004, %v1004
        %v1021 = vpack.c.bf16 %v1005, %v1005
        %v1022 = vpack.c.bf16 %v1006, %v1006
        %v1023 = vpack.c.bf16 %v1007, %v1007
        %v1024 = vpack.c.bf16 %v1008, %v1008
        %v1025 = vpack.c.bf16 %v1009, %v1009
        %v1026 = vpack.c.bf16 %v1010, %v1010
        %v1027 = vpack.c.bf16 %v1011, %v1011
        %v1028 = vpack.c.bf16 %v1012, %v1012
        %v1029 = vpack.c.bf16 %v1013, %v1013
        %v1030 = vld [vmem:[#allocation7] sm:$0xf]
        %v1031 = vld [vmem:[#allocation7 + $0x4] sm:$0xf]
        %v1032 = vld [vmem:[#allocation7 + $0x8] sm:$0xf]
        %v1033 = vld [vmem:[#allocation7 + $0xc] sm:$0xf]
        %v1034 = vld [vmem:[#allocation7 + $0x10] sm:$0xf]
        %v1035 = vld [vmem:[#allocation7 + $0x14] sm:$0xf]
        %v1036 = vld [vmem:[#allocation7 + $0x18] sm:$0xf]
        %v1037 = vld [vmem:[#allocation7 + $0x1c] sm:$0xf]
        %v1038 = vld [vmem:[#allocation7 + $0x20] sm:$0xf]
        %v1039 = vld [vmem:[#allocation7 + $0x24] sm:$0xf]
        %v1040 = vld [vmem:[#allocation7 + $0x28] sm:$0xf]
        %v1041 = vld [vmem:[#allocation7 + $0x2c] sm:$0xf]
        %v1042 = vld [vmem:[#allocation7 + $0x30] sm:$0xf]
        %v1043 = vld [vmem:[#allocation7 + $0x34] sm:$0xf]
        %v1044 = vld [vmem:[#allocation7 + $0x38] sm:$0xf]
        %v1045 = vld [vmem:[#allocation7 + $0x3c] sm:$0xf]
        %v1046 = vld [vmem:[%s4] sm:$0x1]
        %v1063 = vunpack.c.l.b16 %v1014
        %v1064 = vunpack.c.l.b16 %v1015
        %v1065 = vunpack.c.l.b16 %v1016
        %v1066 = vunpack.c.l.b16 %v1017
        %v1067 = vunpack.c.l.b16 %v1018
        %v1068 = vunpack.c.l.b16 %v1019
        %v1069 = vunpack.c.l.b16 %v1020
        %v1070 = vunpack.c.l.b16 %v1021
        %v1071 = vunpack.c.l.b16 %v1022
        %v1072 = vunpack.c.l.b16 %v1023
        %v1073 = vunpack.c.l.b16 %v1024
        %v1074 = vunpack.c.l.b16 %v1025
        %v1075 = vunpack.c.l.b16 %v1026
        %v1076 = vunpack.c.l.b16 %v1027
        %v1077 = vunpack.c.l.b16 %v1028
        %v1078 = vunpack.c.l.b16 %v1029
        %v1079 = vpack.c.b16 %v1064, %v1063
        %v1080 = vpack.c.b16 %v1066, %v1065
        %v1081 = vpack.c.b16 %v1068, %v1067
        %v1082 = vpack.c.b16 %v1070, %v1069
        %v1083 = vpack.c.b16 %v1072, %v1071
        %v1084 = vpack.c.b16 %v1074, %v1073
        %v1085 = vpack.c.b16 %v1076, %v1075
        %v1086 = vpack.c.b16 %v1078, %v1077
        %v1111 = vunpack.c.l.b16 %v1030
        %v1112 = vunpack.c.l.b16 %v1031
        %v1113 = vunpack.c.l.b16 %v1032
        %v1114 = vunpack.c.l.b16 %v1033
        %v1115 = vunpack.c.l.b16 %v1034
        %v1116 = vunpack.c.l.b16 %v1035
        %v1117 = vunpack.c.l.b16 %v1036
        %v1118 = vunpack.c.l.b16 %v1037
        %v1119 = vunpack.c.l.b16 %v1038
        %v1120 = vunpack.c.l.b16 %v1039
        %v1121 = vunpack.c.l.b16 %v1040
        %v1122 = vunpack.c.l.b16 %v1041
        %v1123 = vunpack.c.l.b16 %v1042
        %v1124 = vunpack.c.l.b16 %v1043
        %v1125 = vunpack.c.l.b16 %v1044
        %v1126 = vunpack.c.l.b16 %v1045
        %v1127 = vpack.c.b16 %v1112, %v1111
        %v1128 = vpack.c.b16 %v1114, %v1113
        %v1129 = vpack.c.b16 %v1116, %v1115
        %v1130 = vpack.c.b16 %v1118, %v1117
        %v1131 = vpack.c.b16 %v1120, %v1119
        %v1132 = vpack.c.b16 %v1122, %v1121
        %v1133 = vpack.c.b16 %v1124, %v1123
        %v1134 = vpack.c.b16 %v1126, %v1125
        %1143 = vmatpush.bf16.msra.mxu0 %v1134
        %1144 = vmatpush.bf16.msra.mxu0 %v1133
        %1145 = vmatpush.bf16.msra.mxu0 %v1132
        %1146 = vmatpush.bf16.msra.mxu0 %v1131
        %1147 = vmatpush.bf16.msra.mxu0 %v1130
        %1148 = vmatpush.bf16.msra.mxu0 %v1129
        %1149 = vmatpush.bf16.msra.mxu0 %v1128
        %1150 = vmatpush.bf16.msra.mxu0 %v1127
        %1151 = vmatmul.bf16.gmra.mxu0 %v1079
        %v1152 = vpop.f32.mrf.mxu0
        %v1153 = vadd.f32 0.0, %v1152
        %v1154 = vpop.f32.mrf.mxu0
        %v1155 = vadd.f32 0.0, %v1154
        %1156 = vmatmul.bf16.gmra.mxu0 %v1080
        %v1157 = vpop.f32.mrf.mxu0
        %v1158 = vadd.f32 0.0, %v1157
        %v1159 = vpop.f32.mrf.mxu0
        %v1160 = vadd.f32 0.0, %v1159
        %1161 = vmatmul.bf16.gmra.mxu0 %v1081
        %v1162 = vpop.f32.mrf.mxu0
        %v1163 = vadd.f32 0.0, %v1162
        %v1164 = vpop.f32.mrf.mxu0
        %v1165 = vadd.f32 0.0, %v1164
        %1166 = vmatmul.bf16.gmra.mxu0 %v1082
        %v1167 = vpop.f32.mrf.mxu0
        %v1168 = vadd.f32 0.0, %v1167
        %v1169 = vpop.f32.mrf.mxu0
        %v1170 = vadd.f32 0.0, %v1169
        %1171 = vmatmul.bf16.gmra.mxu0 %v1083
        %v1172 = vpop.f32.mrf.mxu0
        %v1173 = vadd.f32 0.0, %v1172
        %v1174 = vpop.f32.mrf.mxu0
        %v1175 = vadd.f32 0.0, %v1174
        %1176 = vmatmul.bf16.gmra.mxu0 %v1084
        %v1177 = vpop.f32.mrf.mxu0
        %v1178 = vadd.f32 0.0, %v1177
        %v1179 = vpop.f32.mrf.mxu0
        %v1180 = vadd.f32 0.0, %v1179
        %1181 = vmatmul.bf16.gmra.mxu0 %v1085
        %v1182 = vpop.f32.mrf.mxu0
        %v1183 = vadd.f32 0.0, %v1182
        %v1184 = vpop.f32.mrf.mxu0
        %v1185 = vadd.f32 0.0, %v1184
        %1186 = vmatmul.bf16.gmra.mxu0 %v1086
        %v1187 = vpop.f32.mrf.mxu0
        %v1188 = vadd.f32 0.0, %v1187
        %v1189 = vpop.f32.mrf.mxu0
        %v1190 = vadd.f32 0.0, %v1189
        %1191 = vdwg.mxu0
        %v1192 = vpack.c.bf16 %v1153, %v1153
        %v1193 = vpack.c.bf16 %v1155, %v1155
        %v1194 = vpack.c.bf16 %v1158, %v1158
        %v1195 = vpack.c.bf16 %v1160, %v1160
        %v1196 = vpack.c.bf16 %v1163, %v1163
        %v1197 = vpack.c.bf16 %v1165, %v1165
        %v1198 = vpack.c.bf16 %v1168, %v1168
        %v1199 = vpack.c.bf16 %v1170, %v1170
        %v1200 = vpack.c.bf16 %v1173, %v1173
        %v1201 = vpack.c.bf16 %v1175, %v1175
        %v1202 = vpack.c.bf16 %v1178, %v1178
        %v1203 = vpack.c.bf16 %v1180, %v1180
        %v1204 = vpack.c.bf16 %v1183, %v1183
        %v1205 = vpack.c.bf16 %v1185, %v1185
        %v1206 = vpack.c.bf16 %v1188, %v1188
        %v1207 = vpack.c.bf16 %v1190, %v1190
        %v1209 = vpack.i.b16 %v1046, %v1046
        %v1211 = vperm.slane %v1209, 0
        %v1212 = vunpack.c.l.bf16 %v1192
        %v1213 = vunpack.c.l.bf16 %v1193
        %v1214 = vunpack.c.l.bf16 %v1194
        %v1215 = vunpack.c.l.bf16 %v1195
        %v1216 = vunpack.c.l.bf16 %v1196
        %v1217 = vunpack.c.l.bf16 %v1197
        %v1218 = vunpack.c.l.bf16 %v1198
        %v1219 = vunpack.c.l.bf16 %v1199
        %v1220 = vunpack.c.l.bf16 %v1200
        %v1221 = vunpack.c.l.bf16 %v1201
        %v1222 = vunpack.c.l.bf16 %v1202
        %v1223 = vunpack.c.l.bf16 %v1203
        %v1224 = vunpack.c.l.bf16 %v1204
        %v1225 = vunpack.c.l.bf16 %v1205
        %v1226 = vunpack.c.l.bf16 %v1206
        %v1227 = vunpack.c.l.bf16 %v1207
        %v1228 = vunpack.c.l.bf16 %v1211
        %v1229 = vadd.f32 %v1212, %v1228
        %v1230 = vadd.f32 %v1213, %v1228
        %v1231 = vadd.f32 %v1214, %v1228
        %v1232 = vadd.f32 %v1215, %v1228
        %v1233 = vadd.f32 %v1216, %v1228
        %v1234 = vadd.f32 %v1217, %v1228
        %v1235 = vadd.f32 %v1218, %v1228
        %v1236 = vadd.f32 %v1219, %v1228
        %v1237 = vadd.f32 %v1220, %v1228
        %v1238 = vadd.f32 %v1221, %v1228
        %v1239 = vadd.f32 %v1222, %v1228
        %v1240 = vadd.f32 %v1223, %v1228
        %v1241 = vadd.f32 %v1224, %v1228
        %v1242 = vadd.f32 %v1225, %v1228
        %v1243 = vadd.f32 %v1226, %v1228
        %v1244 = vadd.f32 %v1227, %v1228
        %v1245 = vpack.c.bf16 %v1229, %v1229
        %v1246 = vpack.c.bf16 %v1230, %v1230
        %v1247 = vpack.c.bf16 %v1231, %v1231
        %v1248 = vpack.c.bf16 %v1232, %v1232
        %v1249 = vpack.c.bf16 %v1233, %v1233
        %v1250 = vpack.c.bf16 %v1234, %v1234
        %v1251 = vpack.c.bf16 %v1235, %v1235
        %v1252 = vpack.c.bf16 %v1236, %v1236
        %v1253 = vpack.c.bf16 %v1237, %v1237
        %v1254 = vpack.c.bf16 %v1238, %v1238
        %v1255 = vpack.c.bf16 %v1239, %v1239
        %v1256 = vpack.c.bf16 %v1240, %v1240
        %v1257 = vpack.c.bf16 %v1241, %v1241
        %v1258 = vpack.c.bf16 %v1242, %v1242
        %v1259 = vpack.c.bf16 %v1243, %v1243
        %v1260 = vpack.c.bf16 %v1244, %v1244
        %v1261 = vunpack.c.l.bf16 %v1245
        %v1262 = vunpack.c.l.bf16 %v1246
        %v1263 = vunpack.c.l.bf16 %v1247
        %v1264 = vunpack.c.l.bf16 %v1248
        %v1265 = vunpack.c.l.bf16 %v1249
        %v1266 = vunpack.c.l.bf16 %v1250
        %v1267 = vunpack.c.l.bf16 %v1251
        %v1268 = vunpack.c.l.bf16 %v1252
        %v1269 = vunpack.c.l.bf16 %v1253
        %v1270 = vunpack.c.l.bf16 %v1254
        %v1271 = vunpack.c.l.bf16 %v1255
        %v1272 = vunpack.c.l.bf16 %v1256
        %v1273 = vunpack.c.l.bf16 %v1257
        %v1274 = vunpack.c.l.bf16 %v1258
        %v1275 = vunpack.c.l.bf16 %v1259
        %v1276 = vunpack.c.l.bf16 %v1260
        %v1277 = vmul.f32 %v1261, 0.5
        %v1278 = vmul.f32 %v1262, 0.5
        %v1279 = vmul.f32 %v1263, 0.5
        %v1280 = vmul.f32 %v1264, 0.5
        %v1281 = vmul.f32 %v1265, 0.5
        %v1282 = vmul.f32 %v1266, 0.5
        %v1283 = vmul.f32 %v1267, 0.5
        %v1284 = vmul.f32 %v1268, 0.5
        %v1285 = vmul.f32 %v1269, 0.5
        %v1286 = vmul.f32 %v1270, 0.5
        %v1287 = vmul.f32 %v1271, 0.5
        %v1288 = vmul.f32 %v1272, 0.5
        %v1289 = vmul.f32 %v1273, 0.5
        %v1290 = vmul.f32 %v1274, 0.5
        %v1291 = vmul.f32 %v1275, 0.5
        %v1292 = vmul.f32 %v1276, 0.5
        %v1293 = vpack.c.bf16 %v1277, %v1277
        %v1294 = vpack.c.bf16 %v1278, %v1278
        %v1295 = vpack.c.bf16 %v1279, %v1279
        %v1296 = vpack.c.bf16 %v1280, %v1280
        %v1297 = vpack.c.bf16 %v1281, %v1281
        %v1298 = vpack.c.bf16 %v1282, %v1282
        %v1299 = vpack.c.bf16 %v1283, %v1283
        %v1300 = vpack.c.bf16 %v1284, %v1284
        %v1301 = vpack.c.bf16 %v1285, %v1285
        %v1302 = vpack.c.bf16 %v1286, %v1286
        %v1303 = vpack.c.bf16 %v1287, %v1287
        %v1304 = vpack.c.bf16 %v1288, %v1288
        %v1305 = vpack.c.bf16 %v1289, %v1289
        %v1306 = vpack.c.bf16 %v1290, %v1290
        %v1307 = vpack.c.bf16 %v1291, %v1291
        %v1308 = vpack.c.bf16 %v1292, %v1292
        %v1309 = vmul.f32 %v1261, %v1261
        %v1310 = vmul.f32 %v1262, %v1262
        %v1311 = vmul.f32 %v1263, %v1263
        %v1312 = vmul.f32 %v1264, %v1264
        %v1313 = vmul.f32 %v1265, %v1265
        %v1314 = vmul.f32 %v1266, %v1266
        %v1315 = vmul.f32 %v1267, %v1267
        %v1316 = vmul.f32 %v1268, %v1268
        %v1317 = vmul.f32 %v1269, %v1269
        %v1318 = vmul.f32 %v1270, %v1270
        %v1319 = vmul.f32 %v1271, %v1271
        %v1320 = vmul.f32 %v1272, %v1272
        %v1321 = vmul.f32 %v1273, %v1273
        %v1322 = vmul.f32 %v1274, %v1274
        %v1323 = vmul.f32 %v1275, %v1275
        %v1324 = vmul.f32 %v1276, %v1276
        %v1325 = vpack.c.bf16 %v1309, %v1309
        %v1326 = vpack.c.bf16 %v1310, %v1310
        %v1327 = vpack.c.bf16 %v1311, %v1311
        %v1328 = vpack.c.bf16 %v1312, %v1312
        %v1329 = vpack.c.bf16 %v1313, %v1313
        %v1330 = vpack.c.bf16 %v1314, %v1314
        %v1331 = vpack.c.bf16 %v1315, %v1315
        %v1332 = vpack.c.bf16 %v1316, %v1316
        %v1333 = vpack.c.bf16 %v1317, %v1317
        %v1334 = vpack.c.bf16 %v1318, %v1318
        %v1335 = vpack.c.bf16 %v1319, %v1319
        %v1336 = vpack.c.bf16 %v1320, %v1320
        %v1337 = vpack.c.bf16 %v1321, %v1321
        %v1338 = vpack.c.bf16 %v1322, %v1322
        %v1339 = vpack.c.bf16 %v1323, %v1323
        %v1340 = vpack.c.bf16 %v1324, %v1324
        %v1341 = vunpack.c.l.bf16 %v1325
        %v1342 = vunpack.c.l.bf16 %v1326
        %v1343 = vunpack.c.l.bf16 %v1327
        %v1344 = vunpack.c.l.bf16 %v1328
        %v1345 = vunpack.c.l.bf16 %v1329
        %v1346 = vunpack.c.l.bf16 %v1330
        %v1347 = vunpack.c.l.bf16 %v1331
        %v1348 = vunpack.c.l.bf16 %v1332
        %v1349 = vunpack.c.l.bf16 %v1333
        %v1350 = vunpack.c.l.bf16 %v1334
        %v1351 = vunpack.c.l.bf16 %v1335
        %v1352 = vunpack.c.l.bf16 %v1336
        %v1353 = vunpack.c.l.bf16 %v1337
        %v1354 = vunpack.c.l.bf16 %v1338
        %v1355 = vunpack.c.l.bf16 %v1339
        %v1356 = vunpack.c.l.bf16 %v1340
        %v1357 = vmul.f32 %v1341, %v1261
        %v1358 = vmul.f32 %v1342, %v1262
        %v1359 = vmul.f32 %v1343, %v1263
        %v1360 = vmul.f32 %v1344, %v1264
        %v1361 = vmul.f32 %v1345, %v1265
        %v1362 = vmul.f32 %v1346, %v1266
        %v1363 = vmul.f32 %v1347, %v1267
        %v1364 = vmul.f32 %v1348, %v1268
        %v1365 = vmul.f32 %v1349, %v1269
        %v1366 = vmul.f32 %v1350, %v1270
        %v1367 = vmul.f32 %v1351, %v1271
        %v1368 = vmul.f32 %v1352, %v1272
        %v1369 = vmul.f32 %v1353, %v1273
        %v1370 = vmul.f32 %v1354, %v1274
        %v1371 = vmul.f32 %v1355, %v1275
        %v1372 = vmul.f32 %v1356, %v1276
        %v1373 = vpack.c.bf16 %v1357, %v1357
        %v1374 = vpack.c.bf16 %v1358, %v1358
        %v1375 = vpack.c.bf16 %v1359, %v1359
        %v1376 = vpack.c.bf16 %v1360, %v1360
        %v1377 = vpack.c.bf16 %v1361, %v1361
        %v1378 = vpack.c.bf16 %v1362, %v1362
        %v1379 = vpack.c.bf16 %v1363, %v1363
        %v1380 = vpack.c.bf16 %v1364, %v1364
        %v1381 = vpack.c.bf16 %v1365, %v1365
        %v1382 = vpack.c.bf16 %v1366, %v1366
        %v1383 = vpack.c.bf16 %v1367, %v1367
        %v1384 = vpack.c.bf16 %v1368, %v1368
        %v1385 = vpack.c.bf16 %v1369, %v1369
        %v1386 = vpack.c.bf16 %v1370, %v1370
        %v1387 = vpack.c.bf16 %v1371, %v1371
        %v1388 = vpack.c.bf16 %v1372, %v1372
        %v1389 = vunpack.c.l.bf16 %v1373
        %v1390 = vunpack.c.l.bf16 %v1374
        %v1391 = vunpack.c.l.bf16 %v1375
        %v1392 = vunpack.c.l.bf16 %v1376
        %v1393 = vunpack.c.l.bf16 %v1377
        %v1394 = vunpack.c.l.bf16 %v1378
        %v1395 = vunpack.c.l.bf16 %v1379
        %v1396 = vunpack.c.l.bf16 %v1380
        %v1397 = vunpack.c.l.bf16 %v1381
        %v1398 = vunpack.c.l.bf16 %v1382
        %v1399 = vunpack.c.l.bf16 %v1383
        %v1400 = vunpack.c.l.bf16 %v1384
        %v1401 = vunpack.c.l.bf16 %v1385
        %v1402 = vunpack.c.l.bf16 %v1386
        %v1403 = vunpack.c.l.bf16 %v1387
        %v1404 = vunpack.c.l.bf16 %v1388
        %v1405 = vmul.f32 %v1389, 0.044677734
        %v1406 = vmul.f32 %v1390, 0.044677734
        %v1407 = vmul.f32 %v1391, 0.044677734
        %v1408 = vmul.f32 %v1392, 0.044677734
        %v1409 = vmul.f32 %v1393, 0.044677734
        %v1410 = vmul.f32 %v1394, 0.044677734
        %v1411 = vmul.f32 %v1395, 0.044677734
        %v1412 = vmul.f32 %v1396, 0.044677734
        %v1413 = vmul.f32 %v1397, 0.044677734
        %v1414 = vmul.f32 %v1398, 0.044677734
        %v1415 = vmul.f32 %v1399, 0.044677734
        %v1416 = vmul.f32 %v1400, 0.044677734
        %v1417 = vmul.f32 %v1401, 0.044677734
        %v1418 = vmul.f32 %v1402, 0.044677734
        %v1419 = vmul.f32 %v1403, 0.044677734
        %v1420 = vmul.f32 %v1404, 0.044677734
        %v1421 = vpack.c.bf16 %v1405, %v1405
        %v1422 = vpack.c.bf16 %v1406, %v1406
        %v1423 = vpack.c.bf16 %v1407, %v1407
        %v1424 = vpack.c.bf16 %v1408, %v1408
        %v1425 = vpack.c.bf16 %v1409, %v1409
        %v1426 = vpack.c.bf16 %v1410, %v1410
        %v1427 = vpack.c.bf16 %v1411, %v1411
        %v1428 = vpack.c.bf16 %v1412, %v1412
        %v1429 = vpack.c.bf16 %v1413, %v1413
        %v1430 = vpack.c.bf16 %v1414, %v1414
        %v1431 = vpack.c.bf16 %v1415, %v1415
        %v1432 = vpack.c.bf16 %v1416, %v1416
        %v1433 = vpack.c.bf16 %v1417, %v1417
        %v1434 = vpack.c.bf16 %v1418, %v1418
        %v1435 = vpack.c.bf16 %v1419, %v1419
        %v1436 = vpack.c.bf16 %v1420, %v1420
        %v1437 = vunpack.c.l.bf16 %v1421
        %v1438 = vunpack.c.l.bf16 %v1422
        %v1439 = vunpack.c.l.bf16 %v1423
        %v1440 = vunpack.c.l.bf16 %v1424
        %v1441 = vunpack.c.l.bf16 %v1425
        %v1442 = vunpack.c.l.bf16 %v1426
        %v1443 = vunpack.c.l.bf16 %v1427
        %v1444 = vunpack.c.l.bf16 %v1428
        %v1445 = vunpack.c.l.bf16 %v1429
        %v1446 = vunpack.c.l.bf16 %v1430
        %v1447 = vunpack.c.l.bf16 %v1431
        %v1448 = vunpack.c.l.bf16 %v1432
        %v1449 = vunpack.c.l.bf16 %v1433
        %v1450 = vunpack.c.l.bf16 %v1434
        %v1451 = vunpack.c.l.bf16 %v1435
        %v1452 = vunpack.c.l.bf16 %v1436
        %v1453 = vadd.f32 %v1261, %v1437
        %v1454 = vadd.f32 %v1262, %v1438
        %v1455 = vadd.f32 %v1263, %v1439
        %v1456 = vadd.f32 %v1264, %v1440
        %v1457 = vadd.f32 %v1265, %v1441
        %v1458 = vadd.f32 %v1266, %v1442
        %v1459 = vadd.f32 %v1267, %v1443
        %v1460 = vadd.f32 %v1268, %v1444
        %v1461 = vadd.f32 %v1269, %v1445
        %v1462 = vadd.f32 %v1270, %v1446
        %v1463 = vadd.f32 %v1271, %v1447
        %v1464 = vadd.f32 %v1272, %v1448
        %v1465 = vadd.f32 %v1273, %v1449
        %v1466 = vadd.f32 %v1274, %v1450
        %v1467 = vadd.f32 %v1275, %v1451
        %v1468 = vadd.f32 %v1276, %v1452
        %v1469 = vpack.c.bf16 %v1453, %v1453
        %v1470 = vpack.c.bf16 %v1454, %v1454
        %v1471 = vpack.c.bf16 %v1455, %v1455
        %v1472 = vpack.c.bf16 %v1456, %v1456
        %v1473 = vpack.c.bf16 %v1457, %v1457
        %v1474 = vpack.c.bf16 %v1458, %v1458
        %v1475 = vpack.c.bf16 %v1459, %v1459
        %v1476 = vpack.c.bf16 %v1460, %v1460
        %v1477 = vpack.c.bf16 %v1461, %v1461
        %v1478 = vpack.c.bf16 %v1462, %v1462
        %v1479 = vpack.c.bf16 %v1463, %v1463
        %v1480 = vpack.c.bf16 %v1464, %v1464
        %v1481 = vpack.c.bf16 %v1465, %v1465
        %v1482 = vpack.c.bf16 %v1466, %v1466
        %v1483 = vpack.c.bf16 %v1467, %v1467
        %v1484 = vpack.c.bf16 %v1468, %v1468
        %v1485 = vunpack.c.l.bf16 %v1469
        %v1486 = vunpack.c.l.bf16 %v1470
        %v1487 = vunpack.c.l.bf16 %v1471
        %v1488 = vunpack.c.l.bf16 %v1472
        %v1489 = vunpack.c.l.bf16 %v1473
        %v1490 = vunpack.c.l.bf16 %v1474
        %v1491 = vunpack.c.l.bf16 %v1475
        %v1492 = vunpack.c.l.bf16 %v1476
        %v1493 = vunpack.c.l.bf16 %v1477
        %v1494 = vunpack.c.l.bf16 %v1478
        %v1495 = vunpack.c.l.bf16 %v1479
        %v1496 = vunpack.c.l.bf16 %v1480
        %v1497 = vunpack.c.l.bf16 %v1481
        %v1498 = vunpack.c.l.bf16 %v1482
        %v1499 = vunpack.c.l.bf16 %v1483
        %v1500 = vunpack.c.l.bf16 %v1484
        %v1501 = vmul.f32 %v1485, 0.796875
        %v1502 = vmul.f32 %v1486, 0.796875
        %v1503 = vmul.f32 %v1487, 0.796875
        %v1504 = vmul.f32 %v1488, 0.796875
        %v1505 = vmul.f32 %v1489, 0.796875
        %v1506 = vmul.f32 %v1490, 0.796875
        %v1507 = vmul.f32 %v1491, 0.796875
        %v1508 = vmul.f32 %v1492, 0.796875
        %v1509 = vmul.f32 %v1493, 0.796875
        %v1510 = vmul.f32 %v1494, 0.796875
        %v1511 = vmul.f32 %v1495, 0.796875
        %v1512 = vmul.f32 %v1496, 0.796875
        %v1513 = vmul.f32 %v1497, 0.796875
        %v1514 = vmul.f32 %v1498, 0.796875
        %v1515 = vmul.f32 %v1499, 0.796875
        %v1516 = vmul.f32 %v1500, 0.796875
        %v1517 = vpack.c.bf16 %v1501, %v1501
        %v1518 = vpack.c.bf16 %v1502, %v1502
        %v1519 = vpack.c.bf16 %v1503, %v1503
        %v1520 = vpack.c.bf16 %v1504, %v1504
        %v1521 = vpack.c.bf16 %v1505, %v1505
        %v1522 = vpack.c.bf16 %v1506, %v1506
        %v1523 = vpack.c.bf16 %v1507, %v1507
        %v1524 = vpack.c.bf16 %v1508, %v1508
        %v1525 = vpack.c.bf16 %v1509, %v1509
        %v1526 = vpack.c.bf16 %v1510, %v1510
        %v1527 = vpack.c.bf16 %v1511, %v1511
        %v1528 = vpack.c.bf16 %v1512, %v1512
        %v1529 = vpack.c.bf16 %v1513, %v1513
        %v1530 = vpack.c.bf16 %v1514, %v1514
        %v1531 = vpack.c.bf16 %v1515, %v1515
        %v1532 = vpack.c.bf16 %v1516, %v1516
        %v1533 = vunpack.c.l.bf16 %v1517
        %v1534 = vunpack.c.l.bf16 %v1518
        %v1535 = vunpack.c.l.bf16 %v1519
        %v1536 = vunpack.c.l.bf16 %v1520
        %v1537 = vunpack.c.l.bf16 %v1521
        %v1538 = vunpack.c.l.bf16 %v1522
        %v1539 = vunpack.c.l.bf16 %v1523
        %v1540 = vunpack.c.l.bf16 %v1524
        %v1541 = vunpack.c.l.bf16 %v1525
        %v1542 = vunpack.c.l.bf16 %v1526
        %v1543 = vunpack.c.l.bf16 %v1527
        %v1544 = vunpack.c.l.bf16 %v1528
        %v1545 = vunpack.c.l.bf16 %v1529
        %v1546 = vunpack.c.l.bf16 %v1530
        %v1547 = vunpack.c.l.bf16 %v1531
        %v1548 = vunpack.c.l.bf16 %v1532
        %v1549 = vtanh.pop %v1533
        %v1550 = vtanh.pop %v1534
        %v1551 = vtanh.pop %v1535
        %v1552 = vtanh.pop %v1536
        %v1553 = vtanh.pop %v1537
        %v1554 = vtanh.pop %v1538
        %v1555 = vtanh.pop %v1539
        %v1556 = vtanh.pop %v1540
        %v1557 = vtanh.pop %v1541
        %v1558 = vtanh.pop %v1542
        %v1559 = vtanh.pop %v1543
        %v1560 = vtanh.pop %v1544
        %v1561 = vtanh.pop %v1545
        %v1562 = vtanh.pop %v1546
        %v1563 = vtanh.pop %v1547
        %v1564 = vtanh.pop %v1548
        %v1565 = vpack.c.bf16 %v1549, %v1549
        %v1566 = vpack.c.bf16 %v1550, %v1550
        %v1567 = vpack.c.bf16 %v1551, %v1551
        %v1568 = vpack.c.bf16 %v1552, %v1552
        %v1569 = vpack.c.bf16 %v1553, %v1553
        %v1570 = vpack.c.bf16 %v1554, %v1554
        %v1571 = vpack.c.bf16 %v1555, %v1555
        %v1572 = vpack.c.bf16 %v1556, %v1556
        %v1573 = vpack.c.bf16 %v1557, %v1557
        %v1574 = vpack.c.bf16 %v1558, %v1558
        %v1575 = vpack.c.bf16 %v1559, %v1559
        %v1576 = vpack.c.bf16 %v1560, %v1560
        %v1577 = vpack.c.bf16 %v1561, %v1561
        %v1578 = vpack.c.bf16 %v1562, %v1562
        %v1579 = vpack.c.bf16 %v1563, %v1563
        %v1580 = vpack.c.bf16 %v1564, %v1564
        %v1581 = vunpack.c.l.bf16 %v1565
        %v1582 = vunpack.c.l.bf16 %v1566
        %v1583 = vunpack.c.l.bf16 %v1567
        %v1584 = vunpack.c.l.bf16 %v1568
        %v1585 = vunpack.c.l.bf16 %v1569
        %v1586 = vunpack.c.l.bf16 %v1570
        %v1587 = vunpack.c.l.bf16 %v1571
        %v1588 = vunpack.c.l.bf16 %v1572
        %v1589 = vunpack.c.l.bf16 %v1573
        %v1590 = vunpack.c.l.bf16 %v1574
        %v1591 = vunpack.c.l.bf16 %v1575
        %v1592 = vunpack.c.l.bf16 %v1576
        %v1593 = vunpack.c.l.bf16 %v1577
        %v1594 = vunpack.c.l.bf16 %v1578
        %v1595 = vunpack.c.l.bf16 %v1579
        %v1596 = vunpack.c.l.bf16 %v1580
        %v1597 = vadd.f32 %v1581, 1.0
        %v1598 = vadd.f32 %v1582, 1.0
        %v1599 = vadd.f32 %v1583, 1.0
        %v1600 = vadd.f32 %v1584, 1.0
        %v1601 = vadd.f32 %v1585, 1.0
        %v1602 = vadd.f32 %v1586, 1.0
        %v1603 = vadd.f32 %v1587, 1.0
        %v1604 = vadd.f32 %v1588, 1.0
        %v1605 = vadd.f32 %v1589, 1.0
        %v1606 = vadd.f32 %v1590, 1.0
        %v1607 = vadd.f32 %v1591, 1.0
        %v1608 = vadd.f32 %v1592, 1.0
        %v1609 = vadd.f32 %v1593, 1.0
        %v1610 = vadd.f32 %v1594, 1.0
        %v1611 = vadd.f32 %v1595, 1.0
        %v1612 = vadd.f32 %v1596, 1.0
        %v1613 = vpack.c.bf16 %v1597, %v1597
        %v1614 = vpack.c.bf16 %v1598, %v1598
        %v1615 = vpack.c.bf16 %v1599, %v1599
        %v1616 = vpack.c.bf16 %v1600, %v1600
        %v1617 = vpack.c.bf16 %v1601, %v1601
        %v1618 = vpack.c.bf16 %v1602, %v1602
        %v1619 = vpack.c.bf16 %v1603, %v1603
        %v1620 = vpack.c.bf16 %v1604, %v1604
        %v1621 = vpack.c.bf16 %v1605, %v1605
        %v1622 = vpack.c.bf16 %v1606, %v1606
        %v1623 = vpack.c.bf16 %v1607, %v1607
        %v1624 = vpack.c.bf16 %v1608, %v1608
        %v1625 = vpack.c.bf16 %v1609, %v1609
        %v1626 = vpack.c.bf16 %v1610, %v1610
        %v1627 = vpack.c.bf16 %v1611, %v1611
        %v1628 = vpack.c.bf16 %v1612, %v1612
        %v1629 = vunpack.c.l.bf16 %v1293
        %v1630 = vunpack.c.l.bf16 %v1294
        %v1631 = vunpack.c.l.bf16 %v1295
        %v1632 = vunpack.c.l.bf16 %v1296
        %v1633 = vunpack.c.l.bf16 %v1297
        %v1634 = vunpack.c.l.bf16 %v1298
        %v1635 = vunpack.c.l.bf16 %v1299
        %v1636 = vunpack.c.l.bf16 %v1300
        %v1637 = vunpack.c.l.bf16 %v1301
        %v1638 = vunpack.c.l.bf16 %v1302
        %v1639 = vunpack.c.l.bf16 %v1303
        %v1640 = vunpack.c.l.bf16 %v1304
        %v1641 = vunpack.c.l.bf16 %v1305
        %v1642 = vunpack.c.l.bf16 %v1306
        %v1643 = vunpack.c.l.bf16 %v1307
        %v1644 = vunpack.c.l.bf16 %v1308
        %v1645 = vunpack.c.l.bf16 %v1613
        %v1646 = vunpack.c.l.bf16 %v1614
        %v1647 = vunpack.c.l.bf16 %v1615
        %v1648 = vunpack.c.l.bf16 %v1616
        %v1649 = vunpack.c.l.bf16 %v1617
        %v1650 = vunpack.c.l.bf16 %v1618
        %v1651 = vunpack.c.l.bf16 %v1619
        %v1652 = vunpack.c.l.bf16 %v1620
        %v1653 = vunpack.c.l.bf16 %v1621
        %v1654 = vunpack.c.l.bf16 %v1622
        %v1655 = vunpack.c.l.bf16 %v1623
        %v1656 = vunpack.c.l.bf16 %v1624
        %v1657 = vunpack.c.l.bf16 %v1625
        %v1658 = vunpack.c.l.bf16 %v1626
        %v1659 = vunpack.c.l.bf16 %v1627
        %v1660 = vunpack.c.l.bf16 %v1628
        %v1661 = vmul.f32 %v1629, %v1645
        %v1662 = vmul.f32 %v1630, %v1646
        %v1663 = vmul.f32 %v1631, %v1647
        %v1664 = vmul.f32 %v1632, %v1648
        %v1665 = vmul.f32 %v1633, %v1649
        %v1666 = vmul.f32 %v1634, %v1650
        %v1667 = vmul.f32 %v1635, %v1651
        %v1668 = vmul.f32 %v1636, %v1652
        %v1669 = vmul.f32 %v1637, %v1653
        %v1670 = vmul.f32 %v1638, %v1654
        %v1671 = vmul.f32 %v1639, %v1655
        %v1672 = vmul.f32 %v1640, %v1656
        %v1673 = vmul.f32 %v1641, %v1657
        %v1674 = vmul.f32 %v1642, %v1658
        %v1675 = vmul.f32 %v1643, %v1659
        %v1676 = vmul.f32 %v1644, %v1660
        %v1677 = vpack.c.bf16 %v1661, %v1661
        %v1678 = vpack.c.bf16 %v1662, %v1662
        %v1679 = vpack.c.bf16 %v1663, %v1663
        %v1680 = vpack.c.bf16 %v1664, %v1664
        %v1681 = vpack.c.bf16 %v1665, %v1665
        %v1682 = vpack.c.bf16 %v1666, %v1666
        %v1683 = vpack.c.bf16 %v1667, %v1667
        %v1684 = vpack.c.bf16 %v1668, %v1668
        %v1685 = vpack.c.bf16 %v1669, %v1669
        %v1686 = vpack.c.bf16 %v1670, %v1670
        %v1687 = vpack.c.bf16 %v1671, %v1671
        %v1688 = vpack.c.bf16 %v1672, %v1672
        %v1689 = vpack.c.bf16 %v1673, %v1673
        %v1690 = vpack.c.bf16 %v1674, %v1674
        %v1691 = vpack.c.bf16 %v1675, %v1675
        %v1692 = vpack.c.bf16 %v1676, %v1676
        %v1693 = vunpack.c.l.bf16 %v1677
        %v1694 = vunpack.c.l.bf16 %v1678
        %v1695 = vunpack.c.l.bf16 %v1679
        %v1696 = vunpack.c.l.bf16 %v1680
        %v1697 = vunpack.c.l.bf16 %v1681
        %v1698 = vunpack.c.l.bf16 %v1682
        %v1699 = vunpack.c.l.bf16 %v1683
        %v1700 = vunpack.c.l.bf16 %v1684
        %v1701 = vunpack.c.l.bf16 %v1685
        %v1702 = vunpack.c.l.bf16 %v1686
        %v1703 = vunpack.c.l.bf16 %v1687
        %v1704 = vunpack.c.l.bf16 %v1688
        %v1705 = vunpack.c.l.bf16 %v1689
        %v1706 = vunpack.c.l.bf16 %v1690
        %v1707 = vunpack.c.l.bf16 %v1691
        %v1708 = vunpack.c.l.bf16 %v1692
        %v1709 = vunpack.c.l.bf16 %v1014
        %v1710 = vunpack.c.l.bf16 %v1015
        %v1711 = vunpack.c.l.bf16 %v1016
        %v1712 = vunpack.c.l.bf16 %v1017
        %v1713 = vunpack.c.l.bf16 %v1018
        %v1714 = vunpack.c.l.bf16 %v1019
        %v1715 = vunpack.c.l.bf16 %v1020
        %v1716 = vunpack.c.l.bf16 %v1021
        %v1717 = vunpack.c.l.bf16 %v1022
        %v1718 = vunpack.c.l.bf16 %v1023
        %v1719 = vunpack.c.l.bf16 %v1024
        %v1720 = vunpack.c.l.bf16 %v1025
        %v1721 = vunpack.c.l.bf16 %v1026
        %v1722 = vunpack.c.l.bf16 %v1027
        %v1723 = vunpack.c.l.bf16 %v1028
        %v1724 = vunpack.c.l.bf16 %v1029
        %v1725 = vadd.f32 %v1693, %v1709
        %v1726 = vadd.f32 %v1694, %v1710
        %v1727 = vadd.f32 %v1695, %v1711
        %v1728 = vadd.f32 %v1696, %v1712
        %v1729 = vadd.f32 %v1697, %v1713
        %v1730 = vadd.f32 %v1698, %v1714
        %v1731 = vadd.f32 %v1699, %v1715
        %v1732 = vadd.f32 %v1700, %v1716
        %v1733 = vadd.f32 %v1701, %v1717
        %v1734 = vadd.f32 %v1702, %v1718
        %v1735 = vadd.f32 %v1703, %v1719
        %v1736 = vadd.f32 %v1704, %v1720
        %v1737 = vadd.f32 %v1705, %v1721
        %v1738 = vadd.f32 %v1706, %v1722
        %v1739 = vadd.f32 %v1707, %v1723
        %v1740 = vadd.f32 %v1708, %v1724
        %v1741 = vpack.c.bf16 %v1725, %v1725
        %v1742 = vpack.c.bf16 %v1726, %v1726
        %v1743 = vpack.c.bf16 %v1727, %v1727
        %v1744 = vpack.c.bf16 %v1728, %v1728
        %v1745 = vpack.c.bf16 %v1729, %v1729
        %v1746 = vpack.c.bf16 %v1730, %v1730
        %v1747 = vpack.c.bf16 %v1731, %v1731
        %v1748 = vpack.c.bf16 %v1732, %v1732
        %v1749 = vpack.c.bf16 %v1733, %v1733
        %v1750 = vpack.c.bf16 %v1734, %v1734
        %v1751 = vpack.c.bf16 %v1735, %v1735
        %v1752 = vpack.c.bf16 %v1736, %v1736
        %v1753 = vpack.c.bf16 %v1737, %v1737
        %v1754 = vpack.c.bf16 %v1738, %v1738
        %v1755 = vpack.c.bf16 %v1739, %v1739
        %v1756 = vpack.c.bf16 %v1740, %v1740
        %s1757 = scalar_lea.vmem [#allocation7], 64
        %v1758 = vld [vmem:[%s1757] sm:$0xf]
        %v1759 = vld [vmem:[%s1757 + $0x4] sm:$0xf]
        %v1760 = vld [vmem:[%s1757 + $0x8] sm:$0xf]
        %v1761 = vld [vmem:[%s1757 + $0xc] sm:$0xf]
        %v1762 = vld [vmem:[%s1757 + $0x10] sm:$0xf]
        %v1763 = vld [vmem:[%s1757 + $0x14] sm:$0xf]
        %v1764 = vld [vmem:[%s1757 + $0x18] sm:$0xf]
        %v1765 = vld [vmem:[%s1757 + $0x1c] sm:$0xf]
        %v1766 = vld [vmem:[%s1757 + $0x20] sm:$0xf]
        %v1767 = vld [vmem:[%s1757 + $0x24] sm:$0xf]
        %v1768 = vld [vmem:[%s1757 + $0x28] sm:$0xf]
        %v1769 = vld [vmem:[%s1757 + $0x2c] sm:$0xf]
        %v1770 = vld [vmem:[%s1757 + $0x30] sm:$0xf]
        %v1771 = vld [vmem:[%s1757 + $0x34] sm:$0xf]
        %v1772 = vld [vmem:[%s1757 + $0x38] sm:$0xf]
        %v1773 = vld [vmem:[%s1757 + $0x3c] sm:$0xf]
        %s1774 = scalar_lea.vmem %s4, 1
        %v1775 = vld [vmem:[%s1774] sm:$0x1]
        %v1792 = vunpack.c.l.b16 %v1741
        %v1793 = vunpack.c.l.b16 %v1742
        %v1794 = vunpack.c.l.b16 %v1743
        %v1795 = vunpack.c.l.b16 %v1744
        %v1796 = vunpack.c.l.b16 %v1745
        %v1797 = vunpack.c.l.b16 %v1746
        %v1798 = vunpack.c.l.b16 %v1747
        %v1799 = vunpack.c.l.b16 %v1748
        %v1800 = vunpack.c.l.b16 %v1749
        %v1801 = vunpack.c.l.b16 %v1750
        %v1802 = vunpack.c.l.b16 %v1751
        %v1803 = vunpack.c.l.b16 %v1752
        %v1804 = vunpack.c.l.b16 %v1753
        %v1805 = vunpack.c.l.b16 %v1754
        %v1806 = vunpack.c.l.b16 %v1755
        %v1807 = vunpack.c.l.b16 %v1756
        %v1808 = vpack.c.b16 %v1793, %v1792
        %v1809 = vpack.c.b16 %v1795, %v1794
        %v1810 = vpack.c.b16 %v1797, %v1796
        %v1811 = vpack.c.b16 %v1799, %v1798
        %v1812 = vpack.c.b16 %v1801, %v1800
        %v1813 = vpack.c.b16 %v1803, %v1802
        %v1814 = vpack.c.b16 %v1805, %v1804
        %v1815 = vpack.c.b16 %v1807, %v1806
        %v1840 = vunpack.c.l.b16 %v1758
        %v1841 = vunpack.c.l.b16 %v1759
        %v1842 = vunpack.c.l.b16 %v1760
        %v1843 = vunpack.c.l.b16 %v1761
        %v1844 = vunpack.c.l.b16 %v1762
        %v1845 = vunpack.c.l.b16 %v1763
        %v1846 = vunpack.c.l.b16 %v1764
        %v1847 = vunpack.c.l.b16 %v1765
        %v1848 = vunpack.c.l.b16 %v1766
        %v1849 = vunpack.c.l.b16 %v1767
        %v1850 = vunpack.c.l.b16 %v1768
        %v1851 = vunpack.c.l.b16 %v1769
        %v1852 = vunpack.c.l.b16 %v1770
        %v1853 = vunpack.c.l.b16 %v1771
        %v1854 = vunpack.c.l.b16 %v1772
        %v1855 = vunpack.c.l.b16 %v1773
        %v1856 = vpack.c.b16 %v1841, %v1840
        %v1857 = vpack.c.b16 %v1843, %v1842
        %v1858 = vpack.c.b16 %v1845, %v1844
        %v1859 = vpack.c.b16 %v1847, %v1846
        %v1860 = vpack.c.b16 %v1849, %v1848
        %v1861 = vpack.c.b16 %v1851, %v1850
        %v1862 = vpack.c.b16 %v1853, %v1852
        %v1863 = vpack.c.b16 %v1855, %v1854
        %1872 = vmatpush.bf16.msra.mxu0 %v1863
        %1873 = vmatpush.bf16.msra.mxu0 %v1862
        %1874 = vmatpush.bf16.msra.mxu0 %v1861
        %1875 = vmatpush.bf16.msra.mxu0 %v1860
        %1876 = vmatpush.bf16.msra.mxu0 %v1859
        %1877 = vmatpush.bf16.msra.mxu0 %v1858
        %1878 = vmatpush.bf16.msra.mxu0 %v1857
        %1879 = vmatpush.bf16.msra.mxu0 %v1856
        %1880 = vmatmul.bf16.gmra.mxu0 %v1808
        %v1881 = vpop.f32.mrf.mxu0
        %v1882 = vadd.f32 0.0, %v1881
        %v1883 = vpop.f32.mrf.mxu0
        %v1884 = vadd.f32 0.0, %v1883
        %1885 = vmatmul.bf16.gmra.mxu0 %v1809
        %v1886 = vpop.f32.mrf.mxu0
        %v1887 = vadd.f32 0.0, %v1886
        %v1888 = vpop.f32.mrf.mxu0
        %v1889 = vadd.f32 0.0, %v1888
        %1890 = vmatmul.bf16.gmra.mxu0 %v1810
        %v1891 = vpop.f32.mrf.mxu0
        %v1892 = vadd.f32 0.0, %v1891
        %v1893 = vpop.f32.mrf.mxu0
        %v1894 = vadd.f32 0.0, %v1893
        %1895 = vmatmul.bf16.gmra.mxu0 %v1811
        %v1896 = vpop.f32.mrf.mxu0
        %v1897 = vadd.f32 0.0, %v1896
        %v1898 = vpop.f32.mrf.mxu0
        %v1899 = vadd.f32 0.0, %v1898
        %1900 = vmatmul.bf16.gmra.mxu0 %v1812
        %v1901 = vpop.f32.mrf.mxu0
        %v1902 = vadd.f32 0.0, %v1901
        %v1903 = vpop.f32.mrf.mxu0
        %v1904 = vadd.f32 0.0, %v1903
        %1905 = vmatmul.bf16.gmra.mxu0 %v1813
        %v1906 = vpop.f32.mrf.mxu0
        %v1907 = vadd.f32 0.0, %v1906
        %v1908 = vpop.f32.mrf.mxu0
        %v1909 = vadd.f32 0.0, %v1908
        %1910 = vmatmul.bf16.gmra.mxu0 %v1814
        %v1911 = vpop.f32.mrf.mxu0
        %v1912 = vadd.f32 0.0, %v1911
        %v1913 = vpop.f32.mrf.mxu0
        %v1914 = vadd.f32 0.0, %v1913
        %1915 = vmatmul.bf16.gmra.mxu0 %v1815
        %v1916 = vpop.f32.mrf.mxu0
        %v1917 = vadd.f32 0.0, %v1916
        %v1918 = vpop.f32.mrf.mxu0
        %v1919 = vadd.f32 0.0, %v1918
        %1920 = vdwg.mxu0
        %v1921 = vpack.c.bf16 %v1882, %v1882
        %v1922 = vpack.c.bf16 %v1884, %v1884
        %v1923 = vpack.c.bf16 %v1887, %v1887
        %v1924 = vpack.c.bf16 %v1889, %v1889
        %v1925 = vpack.c.bf16 %v1892, %v1892
        %v1926 = vpack.c.bf16 %v1894, %v1894
        %v1927 = vpack.c.bf16 %v1897, %v1897
        %v1928 = vpack.c.bf16 %v1899, %v1899
        %v1929 = vpack.c.bf16 %v1902, %v1902
        %v1930 = vpack.c.bf16 %v1904, %v1904
        %v1931 = vpack.c.bf16 %v1907, %v1907
        %v1932 = vpack.c.bf16 %v1909, %v1909
        %v1933 = vpack.c.bf16 %v1912, %v1912
        %v1934 = vpack.c.bf16 %v1914, %v1914
        %v1935 = vpack.c.bf16 %v1917, %v1917
        %v1936 = vpack.c.bf16 %v1919, %v1919
        %v1938 = vpack.i.b16 %v1775, %v1775
        %v1940 = vperm.slane %v1938, 0
        %v1941 = vunpack.c.l.bf16 %v1921
        %v1942 = vunpack.c.l.bf16 %v1922
        %v1943 = vunpack.c.l.bf16 %v1923
        %v1944 = vunpack.c.l.bf16 %v1924
        %v1945 = vunpack.c.l.bf16 %v1925
        %v1946 = vunpack.c.l.bf16 %v1926
        %v1947 = vunpack.c.l.bf16 %v1927
        %v1948 = vunpack.c.l.bf16 %v1928
        %v1949 = vunpack.c.l.bf16 %v1929
        %v1950 = vunpack.c.l.bf16 %v1930
        %v1951 = vunpack.c.l.bf16 %v1931
        %v1952 = vunpack.c.l.bf16 %v1932
        %v1953 = vunpack.c.l.bf16 %v1933
        %v1954 = vunpack.c.l.bf16 %v1934
        %v1955 = vunpack.c.l.bf16 %v1935
        %v1956 = vunpack.c.l.bf16 %v1936
        %v1957 = vunpack.c.l.bf16 %v1940
        %v1958 = vadd.f32 %v1941, %v1957
        %v1959 = vadd.f32 %v1942, %v1957
        %v1960 = vadd.f32 %v1943, %v1957
        %v1961 = vadd.f32 %v1944, %v1957
        %v1962 = vadd.f32 %v1945, %v1957
        %v1963 = vadd.f32 %v1946, %v1957
        %v1964 = vadd.f32 %v1947, %v1957
        %v1965 = vadd.f32 %v1948, %v1957
        %v1966 = vadd.f32 %v1949, %v1957
        %v1967 = vadd.f32 %v1950, %v1957
        %v1968 = vadd.f32 %v1951, %v1957
        %v1969 = vadd.f32 %v1952, %v1957
        %v1970 = vadd.f32 %v1953, %v1957
        %v1971 = vadd.f32 %v1954, %v1957
        %v1972 = vadd.f32 %v1955, %v1957
        %v1973 = vadd.f32 %v1956, %v1957
        %v1974 = vpack.c.bf16 %v1958, %v1958
        %v1975 = vpack.c.bf16 %v1959, %v1959
        %v1976 = vpack.c.bf16 %v1960, %v1960
        %v1977 = vpack.c.bf16 %v1961, %v1961
        %v1978 = vpack.c.bf16 %v1962, %v1962
        %v1979 = vpack.c.bf16 %v1963, %v1963
        %v1980 = vpack.c.bf16 %v1964, %v1964
        %v1981 = vpack.c.bf16 %v1965, %v1965
        %v1982 = vpack.c.bf16 %v1966, %v1966
        %v1983 = vpack.c.bf16 %v1967, %v1967
        %v1984 = vpack.c.bf16 %v1968, %v1968
        %v1985 = vpack.c.bf16 %v1969, %v1969
        %v1986 = vpack.c.bf16 %v1970, %v1970
        %v1987 = vpack.c.bf16 %v1971, %v1971
        %v1988 = vpack.c.bf16 %v1972, %v1972
        %v1989 = vpack.c.bf16 %v1973, %v1973
        %v1990 = vunpack.c.l.bf16 %v1974
        %v1991 = vunpack.c.l.bf16 %v1975
        %v1992 = vunpack.c.l.bf16 %v1976
        %v1993 = vunpack.c.l.bf16 %v1977
        %v1994 = vunpack.c.l.bf16 %v1978
        %v1995 = vunpack.c.l.bf16 %v1979
        %v1996 = vunpack.c.l.bf16 %v1980
        %v1997 = vunpack.c.l.bf16 %v1981
        %v1998 = vunpack.c.l.bf16 %v1982
        %v1999 = vunpack.c.l.bf16 %v1983
        %v2000 = vunpack.c.l.bf16 %v1984
        %v2001 = vunpack.c.l.bf16 %v1985
        %v2002 = vunpack.c.l.bf16 %v1986
        %v2003 = vunpack.c.l.bf16 %v1987
        %v2004 = vunpack.c.l.bf16 %v1988
        %v2005 = vunpack.c.l.bf16 %v1989
        %v2006 = vmul.f32 %v1990, 0.5
        %v2007 = vmul.f32 %v1991, 0.5
        %v2008 = vmul.f32 %v1992, 0.5
        %v2009 = vmul.f32 %v1993, 0.5
        %v2010 = vmul.f32 %v1994, 0.5
        %v2011 = vmul.f32 %v1995, 0.5
        %v2012 = vmul.f32 %v1996, 0.5
        %v2013 = vmul.f32 %v1997, 0.5
        %v2014 = vmul.f32 %v1998, 0.5
        %v2015 = vmul.f32 %v1999, 0.5
        %v2016 = vmul.f32 %v2000, 0.5
        %v2017 = vmul.f32 %v2001, 0.5
        %v2018 = vmul.f32 %v2002, 0.5
        %v2019 = vmul.f32 %v2003, 0.5
        %v2020 = vmul.f32 %v2004, 0.5
        %v2021 = vmul.f32 %v2005, 0.5
        %v2022 = vpack.c.bf16 %v2006, %v2006
        %v2023 = vpack.c.bf16 %v2007, %v2007
        %v2024 = vpack.c.bf16 %v2008, %v2008
        %v2025 = vpack.c.bf16 %v2009, %v2009
        %v2026 = vpack.c.bf16 %v2010, %v2010
        %v2027 = vpack.c.bf16 %v2011, %v2011
        %v2028 = vpack.c.bf16 %v2012, %v2012
        %v2029 = vpack.c.bf16 %v2013, %v2013
        %v2030 = vpack.c.bf16 %v2014, %v2014
        %v2031 = vpack.c.bf16 %v2015, %v2015
        %v2032 = vpack.c.bf16 %v2016, %v2016
        %v2033 = vpack.c.bf16 %v2017, %v2017
        %v2034 = vpack.c.bf16 %v2018, %v2018
        %v2035 = vpack.c.bf16 %v2019, %v2019
        %v2036 = vpack.c.bf16 %v2020, %v2020
        %v2037 = vpack.c.bf16 %v2021, %v2021
        %v2038 = vmul.f32 %v1990, %v1990
        %v2039 = vmul.f32 %v1991, %v1991
        %v2040 = vmul.f32 %v1992, %v1992
        %v2041 = vmul.f32 %v1993, %v1993
        %v2042 = vmul.f32 %v1994, %v1994
        %v2043 = vmul.f32 %v1995, %v1995
        %v2044 = vmul.f32 %v1996, %v1996
        %v2045 = vmul.f32 %v1997, %v1997
        %v2046 = vmul.f32 %v1998, %v1998
        %v2047 = vmul.f32 %v1999, %v1999
        %v2048 = vmul.f32 %v2000, %v2000
        %v2049 = vmul.f32 %v2001, %v2001
        %v2050 = vmul.f32 %v2002, %v2002
        %v2051 = vmul.f32 %v2003, %v2003
        %v2052 = vmul.f32 %v2004, %v2004
        %v2053 = vmul.f32 %v2005, %v2005
        %v2054 = vpack.c.bf16 %v2038, %v2038
        %v2055 = vpack.c.bf16 %v2039, %v2039
        %v2056 = vpack.c.bf16 %v2040, %v2040
        %v2057 = vpack.c.bf16 %v2041, %v2041
        %v2058 = vpack.c.bf16 %v2042, %v2042
        %v2059 = vpack.c.bf16 %v2043, %v2043
        %v2060 = vpack.c.bf16 %v2044, %v2044
        %v2061 = vpack.c.bf16 %v2045, %v2045
        %v2062 = vpack.c.bf16 %v2046, %v2046
        %v2063 = vpack.c.bf16 %v2047, %v2047
        %v2064 = vpack.c.bf16 %v2048, %v2048
        %v2065 = vpack.c.bf16 %v2049, %v2049
        %v2066 = vpack.c.bf16 %v2050, %v2050
        %v2067 = vpack.c.bf16 %v2051, %v2051
        %v2068 = vpack.c.bf16 %v2052, %v2052
        %v2069 = vpack.c.bf16 %v2053, %v2053
        %v2070 = vunpack.c.l.bf16 %v2054
        %v2071 = vunpack.c.l.bf16 %v2055
        %v2072 = vunpack.c.l.bf16 %v2056
        %v2073 = vunpack.c.l.bf16 %v2057
        %v2074 = vunpack.c.l.bf16 %v2058
        %v2075 = vunpack.c.l.bf16 %v2059
        %v2076 = vunpack.c.l.bf16 %v2060
        %v2077 = vunpack.c.l.bf16 %v2061
        %v2078 = vunpack.c.l.bf16 %v2062
        %v2079 = vunpack.c.l.bf16 %v2063
        %v2080 = vunpack.c.l.bf16 %v2064
        %v2081 = vunpack.c.l.bf16 %v2065
        %v2082 = vunpack.c.l.bf16 %v2066
        %v2083 = vunpack.c.l.bf16 %v2067
        %v2084 = vunpack.c.l.bf16 %v2068
        %v2085 = vunpack.c.l.bf16 %v2069
        %v2086 = vmul.f32 %v2070, %v1990
        %v2087 = vmul.f32 %v2071, %v1991
        %v2088 = vmul.f32 %v2072, %v1992
        %v2089 = vmul.f32 %v2073, %v1993
        %v2090 = vmul.f32 %v2074, %v1994
        %v2091 = vmul.f32 %v2075, %v1995
        %v2092 = vmul.f32 %v2076, %v1996
        %v2093 = vmul.f32 %v2077, %v1997
        %v2094 = vmul.f32 %v2078, %v1998
        %v2095 = vmul.f32 %v2079, %v1999
        %v2096 = vmul.f32 %v2080, %v2000
        %v2097 = vmul.f32 %v2081, %v2001
        %v2098 = vmul.f32 %v2082, %v2002
        %v2099 = vmul.f32 %v2083, %v2003
        %v2100 = vmul.f32 %v2084, %v2004
        %v2101 = vmul.f32 %v2085, %v2005
        %v2102 = vpack.c.bf16 %v2086, %v2086
        %v2103 = vpack.c.bf16 %v2087, %v2087
        %v2104 = vpack.c.bf16 %v2088, %v2088
        %v2105 = vpack.c.bf16 %v2089, %v2089
        %v2106 = vpack.c.bf16 %v2090, %v2090
        %v2107 = vpack.c.bf16 %v2091, %v2091
        %v2108 = vpack.c.bf16 %v2092, %v2092
        %v2109 = vpack.c.bf16 %v2093, %v2093
        %v2110 = vpack.c.bf16 %v2094, %v2094
        %v2111 = vpack.c.bf16 %v2095, %v2095
        %v2112 = vpack.c.bf16 %v2096, %v2096
        %v2113 = vpack.c.bf16 %v2097, %v2097
        %v2114 = vpack.c.bf16 %v2098, %v2098
        %v2115 = vpack.c.bf16 %v2099, %v2099
        %v2116 = vpack.c.bf16 %v2100, %v2100
        %v2117 = vpack.c.bf16 %v2101, %v2101
        %v2118 = vunpack.c.l.bf16 %v2102
        %v2119 = vunpack.c.l.bf16 %v2103
        %v2120 = vunpack.c.l.bf16 %v2104
        %v2121 = vunpack.c.l.bf16 %v2105
        %v2122 = vunpack.c.l.bf16 %v2106
        %v2123 = vunpack.c.l.bf16 %v2107
        %v2124 = vunpack.c.l.bf16 %v2108
        %v2125 = vunpack.c.l.bf16 %v2109
        %v2126 = vunpack.c.l.bf16 %v2110
        %v2127 = vunpack.c.l.bf16 %v2111
        %v2128 = vunpack.c.l.bf16 %v2112
        %v2129 = vunpack.c.l.bf16 %v2113
        %v2130 = vunpack.c.l.bf16 %v2114
        %v2131 = vunpack.c.l.bf16 %v2115
        %v2132 = vunpack.c.l.bf16 %v2116
        %v2133 = vunpack.c.l.bf16 %v2117
        %v2134 = vmul.f32 %v2118, 0.044677734
        %v2135 = vmul.f32 %v2119, 0.044677734
        %v2136 = vmul.f32 %v2120, 0.044677734
        %v2137 = vmul.f32 %v2121, 0.044677734
        %v2138 = vmul.f32 %v2122, 0.044677734
        %v2139 = vmul.f32 %v2123, 0.044677734
        %v2140 = vmul.f32 %v2124, 0.044677734
        %v2141 = vmul.f32 %v2125, 0.044677734
        %v2142 = vmul.f32 %v2126, 0.044677734
        %v2143 = vmul.f32 %v2127, 0.044677734
        %v2144 = vmul.f32 %v2128, 0.044677734
        %v2145 = vmul.f32 %v2129, 0.044677734
        %v2146 = vmul.f32 %v2130, 0.044677734
        %v2147 = vmul.f32 %v2131, 0.044677734
        %v2148 = vmul.f32 %v2132, 0.044677734
        %v2149 = vmul.f32 %v2133, 0.044677734
        %v2150 = vpack.c.bf16 %v2134, %v2134
        %v2151 = vpack.c.bf16 %v2135, %v2135
        %v2152 = vpack.c.bf16 %v2136, %v2136
        %v2153 = vpack.c.bf16 %v2137, %v2137
        %v2154 = vpack.c.bf16 %v2138, %v2138
        %v2155 = vpack.c.bf16 %v2139, %v2139
        %v2156 = vpack.c.bf16 %v2140, %v2140
        %v2157 = vpack.c.bf16 %v2141, %v2141
        %v2158 = vpack.c.bf16 %v2142, %v2142
        %v2159 = vpack.c.bf16 %v2143, %v2143
        %v2160 = vpack.c.bf16 %v2144, %v2144
        %v2161 = vpack.c.bf16 %v2145, %v2145
        %v2162 = vpack.c.bf16 %v2146, %v2146
        %v2163 = vpack.c.bf16 %v2147, %v2147
        %v2164 = vpack.c.bf16 %v2148, %v2148
        %v2165 = vpack.c.bf16 %v2149, %v2149
        %v2166 = vunpack.c.l.bf16 %v2150
        %v2167 = vunpack.c.l.bf16 %v2151
        %v2168 = vunpack.c.l.bf16 %v2152
        %v2169 = vunpack.c.l.bf16 %v2153
        %v2170 = vunpack.c.l.bf16 %v2154
        %v2171 = vunpack.c.l.bf16 %v2155
        %v2172 = vunpack.c.l.bf16 %v2156
        %v2173 = vunpack.c.l.bf16 %v2157
        %v2174 = vunpack.c.l.bf16 %v2158
        %v2175 = vunpack.c.l.bf16 %v2159
        %v2176 = vunpack.c.l.bf16 %v2160
        %v2177 = vunpack.c.l.bf16 %v2161
        %v2178 = vunpack.c.l.bf16 %v2162
        %v2179 = vunpack.c.l.bf16 %v2163
        %v2180 = vunpack.c.l.bf16 %v2164
        %v2181 = vunpack.c.l.bf16 %v2165
        %v2182 = vadd.f32 %v1990, %v2166
        %v2183 = vadd.f32 %v1991, %v2167
        %v2184 = vadd.f32 %v1992, %v2168
        %v2185 = vadd.f32 %v1993, %v2169
        %v2186 = vadd.f32 %v1994, %v2170
        %v2187 = vadd.f32 %v1995, %v2171
        %v2188 = vadd.f32 %v1996, %v2172
        %v2189 = vadd.f32 %v1997, %v2173
        %v2190 = vadd.f32 %v1998, %v2174
        %v2191 = vadd.f32 %v1999, %v2175
        %v2192 = vadd.f32 %v2000, %v2176
        %v2193 = vadd.f32 %v2001, %v2177
        %v2194 = vadd.f32 %v2002, %v2178
        %v2195 = vadd.f32 %v2003, %v2179
        %v2196 = vadd.f32 %v2004, %v2180
        %v2197 = vadd.f32 %v2005, %v2181
        %v2198 = vpack.c.bf16 %v2182, %v2182
        %v2199 = vpack.c.bf16 %v2183, %v2183
        %v2200 = vpack.c.bf16 %v2184, %v2184
        %v2201 = vpack.c.bf16 %v2185, %v2185
        %v2202 = vpack.c.bf16 %v2186, %v2186
        %v2203 = vpack.c.bf16 %v2187, %v2187
        %v2204 = vpack.c.bf16 %v2188, %v2188
        %v2205 = vpack.c.bf16 %v2189, %v2189
        %v2206 = vpack.c.bf16 %v2190, %v2190
        %v2207 = vpack.c.bf16 %v2191, %v2191
        %v2208 = vpack.c.bf16 %v2192, %v2192
        %v2209 = vpack.c.bf16 %v2193, %v2193
        %v2210 = vpack.c.bf16 %v2194, %v2194
        %v2211 = vpack.c.bf16 %v2195, %v2195
        %v2212 = vpack.c.bf16 %v2196, %v2196
        %v2213 = vpack.c.bf16 %v2197, %v2197
        %v2214 = vunpack.c.l.bf16 %v2198
        %v2215 = vunpack.c.l.bf16 %v2199
        %v2216 = vunpack.c.l.bf16 %v2200
        %v2217 = vunpack.c.l.bf16 %v2201
        %v2218 = vunpack.c.l.bf16 %v2202
        %v2219 = vunpack.c.l.bf16 %v2203
        %v2220 = vunpack.c.l.bf16 %v2204
        %v2221 = vunpack.c.l.bf16 %v2205
        %v2222 = vunpack.c.l.bf16 %v2206
        %v2223 = vunpack.c.l.bf16 %v2207
        %v2224 = vunpack.c.l.bf16 %v2208
        %v2225 = vunpack.c.l.bf16 %v2209
        %v2226 = vunpack.c.l.bf16 %v2210
        %v2227 = vunpack.c.l.bf16 %v2211
        %v2228 = vunpack.c.l.bf16 %v2212
        %v2229 = vunpack.c.l.bf16 %v2213
        %v2230 = vmul.f32 %v2214, 0.796875
        %v2231 = vmul.f32 %v2215, 0.796875
        %v2232 = vmul.f32 %v2216, 0.796875
        %v2233 = vmul.f32 %v2217, 0.796875
        %v2234 = vmul.f32 %v2218, 0.796875
        %v2235 = vmul.f32 %v2219, 0.796875
        %v2236 = vmul.f32 %v2220, 0.796875
        %v2237 = vmul.f32 %v2221, 0.796875
        %v2238 = vmul.f32 %v2222, 0.796875
        %v2239 = vmul.f32 %v2223, 0.796875
        %v2240 = vmul.f32 %v2224, 0.796875
        %v2241 = vmul.f32 %v2225, 0.796875
        %v2242 = vmul.f32 %v2226, 0.796875
        %v2243 = vmul.f32 %v2227, 0.796875
        %v2244 = vmul.f32 %v2228, 0.796875
        %v2245 = vmul.f32 %v2229, 0.796875
        %v2246 = vpack.c.bf16 %v2230, %v2230
        %v2247 = vpack.c.bf16 %v2231, %v2231
        %v2248 = vpack.c.bf16 %v2232, %v2232
        %v2249 = vpack.c.bf16 %v2233, %v2233
        %v2250 = vpack.c.bf16 %v2234, %v2234
        %v2251 = vpack.c.bf16 %v2235, %v2235
        %v2252 = vpack.c.bf16 %v2236, %v2236
        %v2253 = vpack.c.bf16 %v2237, %v2237
        %v2254 = vpack.c.bf16 %v2238, %v2238
        %v2255 = vpack.c.bf16 %v2239, %v2239
        %v2256 = vpack.c.bf16 %v2240, %v2240
        %v2257 = vpack.c.bf16 %v2241, %v2241
        %v2258 = vpack.c.bf16 %v2242, %v2242
        %v2259 = vpack.c.bf16 %v2243, %v2243
        %v2260 = vpack.c.bf16 %v2244, %v2244
        %v2261 = vpack.c.bf16 %v2245, %v2245
        %v2262 = vunpack.c.l.bf16 %v2246
        %v2263 = vunpack.c.l.bf16 %v2247
        %v2264 = vunpack.c.l.bf16 %v2248
        %v2265 = vunpack.c.l.bf16 %v2249
        %v2266 = vunpack.c.l.bf16 %v2250
        %v2267 = vunpack.c.l.bf16 %v2251
        %v2268 = vunpack.c.l.bf16 %v2252
        %v2269 = vunpack.c.l.bf16 %v2253
        %v2270 = vunpack.c.l.bf16 %v2254
        %v2271 = vunpack.c.l.bf16 %v2255
        %v2272 = vunpack.c.l.bf16 %v2256
        %v2273 = vunpack.c.l.bf16 %v2257
        %v2274 = vunpack.c.l.bf16 %v2258
        %v2275 = vunpack.c.l.bf16 %v2259
        %v2276 = vunpack.c.l.bf16 %v2260
        %v2277 = vunpack.c.l.bf16 %v2261
        %v2278 = vtanh.pop %v2262
        %v2279 = vtanh.pop %v2263
        %v2280 = vtanh.pop %v2264
        %v2281 = vtanh.pop %v2265
        %v2282 = vtanh.pop %v2266
        %v2283 = vtanh.pop %v2267
        %v2284 = vtanh.pop %v2268
        %v2285 = vtanh.pop %v2269
        %v2286 = vtanh.pop %v2270
        %v2287 = vtanh.pop %v2271
        %v2288 = vtanh.pop %v2272
        %v2289 = vtanh.pop %v2273
        %v2290 = vtanh.pop %v2274
        %v2291 = vtanh.pop %v2275
        %v2292 = vtanh.pop %v2276
        %v2293 = vtanh.pop %v2277
        %v2294 = vpack.c.bf16 %v2278, %v2278
        %v2295 = vpack.c.bf16 %v2279, %v2279
        %v2296 = vpack.c.bf16 %v2280, %v2280
        %v2297 = vpack.c.bf16 %v2281, %v2281
        %v2298 = vpack.c.bf16 %v2282, %v2282
        %v2299 = vpack.c.bf16 %v2283, %v2283
        %v2300 = vpack.c.bf16 %v2284, %v2284
        %v2301 = vpack.c.bf16 %v2285, %v2285
        %v2302 = vpack.c.bf16 %v2286, %v2286
        %v2303 = vpack.c.bf16 %v2287, %v2287
        %v2304 = vpack.c.bf16 %v2288, %v2288
        %v2305 = vpack.c.bf16 %v2289, %v2289
        %v2306 = vpack.c.bf16 %v2290, %v2290
        %v2307 = vpack.c.bf16 %v2291, %v2291
        %v2308 = vpack.c.bf16 %v2292, %v2292
        %v2309 = vpack.c.bf16 %v2293, %v2293
        %v2310 = vunpack.c.l.bf16 %v2294
        %v2311 = vunpack.c.l.bf16 %v2295
        %v2312 = vunpack.c.l.bf16 %v2296
        %v2313 = vunpack.c.l.bf16 %v2297
        %v2314 = vunpack.c.l.bf16 %v2298
        %v2315 = vunpack.c.l.bf16 %v2299
        %v2316 = vunpack.c.l.bf16 %v2300
        %v2317 = vunpack.c.l.bf16 %v2301
        %v2318 = vunpack.c.l.bf16 %v2302
        %v2319 = vunpack.c.l.bf16 %v2303
        %v2320 = vunpack.c.l.bf16 %v2304
        %v2321 = vunpack.c.l.bf16 %v2305
        %v2322 = vunpack.c.l.bf16 %v2306
        %v2323 = vunpack.c.l.bf16 %v2307
        %v2324 = vunpack.c.l.bf16 %v2308
        %v2325 = vunpack.c.l.bf16 %v2309
        %v2326 = vadd.f32 %v2310, 1.0
        %v2327 = vadd.f32 %v2311, 1.0
        %v2328 = vadd.f32 %v2312, 1.0
        %v2329 = vadd.f32 %v2313, 1.0
        %v2330 = vadd.f32 %v2314, 1.0
        %v2331 = vadd.f32 %v2315, 1.0
        %v2332 = vadd.f32 %v2316, 1.0
        %v2333 = vadd.f32 %v2317, 1.0
        %v2334 = vadd.f32 %v2318, 1.0
        %v2335 = vadd.f32 %v2319, 1.0
        %v2336 = vadd.f32 %v2320, 1.0
        %v2337 = vadd.f32 %v2321, 1.0
        %v2338 = vadd.f32 %v2322, 1.0
        %v2339 = vadd.f32 %v2323, 1.0
        %v2340 = vadd.f32 %v2324, 1.0
        %v2341 = vadd.f32 %v2325, 1.0
        %v2342 = vpack.c.bf16 %v2326, %v2326
        %v2343 = vpack.c.bf16 %v2327, %v2327
        %v2344 = vpack.c.bf16 %v2328, %v2328
        %v2345 = vpack.c.bf16 %v2329, %v2329
        %v2346 = vpack.c.bf16 %v2330, %v2330
        %v2347 = vpack.c.bf16 %v2331, %v2331
        %v2348 = vpack.c.bf16 %v2332, %v2332
        %v2349 = vpack.c.bf16 %v2333, %v2333
        %v2350 = vpack.c.bf16 %v2334, %v2334
        %v2351 = vpack.c.bf16 %v2335, %v2335
        %v2352 = vpack.c.bf16 %v2336, %v2336
        %v2353 = vpack.c.bf16 %v2337, %v2337
        %v2354 = vpack.c.bf16 %v2338, %v2338
        %v2355 = vpack.c.bf16 %v2339, %v2339
        %v2356 = vpack.c.bf16 %v2340, %v2340
        %v2357 = vpack.c.bf16 %v2341, %v2341
        %v2358 = vunpack.c.l.bf16 %v2022
        %v2359 = vunpack.c.l.bf16 %v2023
        %v2360 = vunpack.c.l.bf16 %v2024
        %v2361 = vunpack.c.l.bf16 %v2025
        %v2362 = vunpack.c.l.bf16 %v2026
        %v2363 = vunpack.c.l.bf16 %v2027
        %v2364 = vunpack.c.l.bf16 %v2028
        %v2365 = vunpack.c.l.bf16 %v2029
        %v2366 = vunpack.c.l.bf16 %v2030
        %v2367 = vunpack.c.l.bf16 %v2031
        %v2368 = vunpack.c.l.bf16 %v2032
        %v2369 = vunpack.c.l.bf16 %v2033
        %v2370 = vunpack.c.l.bf16 %v2034
        %v2371 = vunpack.c.l.bf16 %v2035
        %v2372 = vunpack.c.l.bf16 %v2036
        %v2373 = vunpack.c.l.bf16 %v2037
        %v2374 = vunpack.c.l.bf16 %v2342
        %v2375 = vunpack.c.l.bf16 %v2343
        %v2376 = vunpack.c.l.bf16 %v2344
        %v2377 = vunpack.c.l.bf16 %v2345
        %v2378 = vunpack.c.l.bf16 %v2346
        %v2379 = vunpack.c.l.bf16 %v2347
        %v2380 = vunpack.c.l.bf16 %v2348
        %v2381 = vunpack.c.l.bf16 %v2349
        %v2382 = vunpack.c.l.bf16 %v2350
        %v2383 = vunpack.c.l.bf16 %v2351
        %v2384 = vunpack.c.l.bf16 %v2352
        %v2385 = vunpack.c.l.bf16 %v2353
        %v2386 = vunpack.c.l.bf16 %v2354
        %v2387 = vunpack.c.l.bf16 %v2355
        %v2388 = vunpack.c.l.bf16 %v2356
        %v2389 = vunpack.c.l.bf16 %v2357
        %v2390 = vmul.f32 %v2358, %v2374
        %v2391 = vmul.f32 %v2359, %v2375
        %v2392 = vmul.f32 %v2360, %v2376
        %v2393 = vmul.f32 %v2361, %v2377
        %v2394 = vmul.f32 %v2362, %v2378
        %v2395 = vmul.f32 %v2363, %v2379
        %v2396 = vmul.f32 %v2364, %v2380
        %v2397 = vmul.f32 %v2365, %v2381
        %v2398 = vmul.f32 %v2366, %v2382
        %v2399 = vmul.f32 %v2367, %v2383
        %v2400 = vmul.f32 %v2368, %v2384
        %v2401 = vmul.f32 %v2369, %v2385
        %v2402 = vmul.f32 %v2370, %v2386
        %v2403 = vmul.f32 %v2371, %v2387
        %v2404 = vmul.f32 %v2372, %v2388
        %v2405 = vmul.f32 %v2373, %v2389
        %v2406 = vpack.c.bf16 %v2390, %v2390
        %v2407 = vpack.c.bf16 %v2391, %v2391
        %v2408 = vpack.c.bf16 %v2392, %v2392
        %v2409 = vpack.c.bf16 %v2393, %v2393
        %v2410 = vpack.c.bf16 %v2394, %v2394
        %v2411 = vpack.c.bf16 %v2395, %v2395
        %v2412 = vpack.c.bf16 %v2396, %v2396
        %v2413 = vpack.c.bf16 %v2397, %v2397
        %v2414 = vpack.c.bf16 %v2398, %v2398
        %v2415 = vpack.c.bf16 %v2399, %v2399
        %v2416 = vpack.c.bf16 %v2400, %v2400
        %v2417 = vpack.c.bf16 %v2401, %v2401
        %v2418 = vpack.c.bf16 %v2402, %v2402
        %v2419 = vpack.c.bf16 %v2403, %v2403
        %v2420 = vpack.c.bf16 %v2404, %v2404
        %v2421 = vpack.c.bf16 %v2405, %v2405
        %v2422 = vunpack.c.l.bf16 %v2406
        %v2423 = vunpack.c.l.bf16 %v2407
        %v2424 = vunpack.c.l.bf16 %v2408
        %v2425 = vunpack.c.l.bf16 %v2409
        %v2426 = vunpack.c.l.bf16 %v2410
        %v2427 = vunpack.c.l.bf16 %v2411
        %v2428 = vunpack.c.l.bf16 %v2412
        %v2429 = vunpack.c.l.bf16 %v2413
        %v2430 = vunpack.c.l.bf16 %v2414
        %v2431 = vunpack.c.l.bf16 %v2415
        %v2432 = vunpack.c.l.bf16 %v2416
        %v2433 = vunpack.c.l.bf16 %v2417
        %v2434 = vunpack.c.l.bf16 %v2418
        %v2435 = vunpack.c.l.bf16 %v2419
        %v2436 = vunpack.c.l.bf16 %v2420
        %v2437 = vunpack.c.l.bf16 %v2421
        %v2438 = vunpack.c.l.bf16 %v1741
        %v2439 = vunpack.c.l.bf16 %v1742
        %v2440 = vunpack.c.l.bf16 %v1743
        %v2441 = vunpack.c.l.bf16 %v1744
        %v2442 = vunpack.c.l.bf16 %v1745
        %v2443 = vunpack.c.l.bf16 %v1746
        %v2444 = vunpack.c.l.bf16 %v1747
        %v2445 = vunpack.c.l.bf16 %v1748
        %v2446 = vunpack.c.l.bf16 %v1749
        %v2447 = vunpack.c.l.bf16 %v1750
        %v2448 = vunpack.c.l.bf16 %v1751
        %v2449 = vunpack.c.l.bf16 %v1752
        %v2450 = vunpack.c.l.bf16 %v1753
        %v2451 = vunpack.c.l.bf16 %v1754
        %v2452 = vunpack.c.l.bf16 %v1755
        %v2453 = vunpack.c.l.bf16 %v1756
        %v2454 = vadd.f32 %v2422, %v2438
        %v2455 = vadd.f32 %v2423, %v2439
        %v2456 = vadd.f32 %v2424, %v2440
        %v2457 = vadd.f32 %v2425, %v2441
        %v2458 = vadd.f32 %v2426, %v2442
        %v2459 = vadd.f32 %v2427, %v2443
        %v2460 = vadd.f32 %v2428, %v2444
        %v2461 = vadd.f32 %v2429, %v2445
        %v2462 = vadd.f32 %v2430, %v2446
        %v2463 = vadd.f32 %v2431, %v2447
        %v2464 = vadd.f32 %v2432, %v2448
        %v2465 = vadd.f32 %v2433, %v2449
        %v2466 = vadd.f32 %v2434, %v2450
        %v2467 = vadd.f32 %v2435, %v2451
        %v2468 = vadd.f32 %v2436, %v2452
        %v2469 = vadd.f32 %v2437, %v2453
        %v2470 = vpack.c.bf16 %v2455, %v2454
        %v2471 = vpack.c.bf16 %v2457, %v2456
        %v2472 = vpack.c.bf16 %v2459, %v2458
        %v2473 = vpack.c.bf16 %v2461, %v2460
        %v2474 = vpack.c.bf16 %v2463, %v2462
        %v2475 = vpack.c.bf16 %v2465, %v2464
        %v2476 = vpack.c.bf16 %v2467, %v2466
        %v2477 = vpack.c.bf16 %v2469, %v2468
        %v2478 = vld [vmem:[#allocation8] sm:$0xf]
        %v2479 = vld [vmem:[#allocation8 + $0x4] sm:$0xf]
        %v2480 = vld [vmem:[#allocation8 + $0x8] sm:$0xf]
        %v2481 = vld [vmem:[#allocation8 + $0xc] sm:$0xf]
        %v2482 = vld [vmem:[#allocation8 + $0x10] sm:$0xf]
        %v2483 = vld [vmem:[#allocation8 + $0x14] sm:$0xf]
        %v2484 = vld [vmem:[#allocation8 + $0x18] sm:$0xf]
        %v2485 = vld [vmem:[#allocation8 + $0x1c] sm:$0xf]
        %v2486 = vld [vmem:[#allocation8 + $0x20] sm:$0xf]
        %v2487 = vld [vmem:[#allocation8 + $0x24] sm:$0xf]
        %v2488 = vld [vmem:[#allocation8 + $0x28] sm:$0xf]
        %v2489 = vld [vmem:[#allocation8 + $0x2c] sm:$0xf]
        %v2490 = vld [vmem:[#allocation8 + $0x30] sm:$0xf]
        %v2491 = vld [vmem:[#allocation8 + $0x34] sm:$0xf]
        %v2492 = vld [vmem:[#allocation8 + $0x38] sm:$0xf]
        %v2493 = vld [vmem:[#allocation8 + $0x3c] sm:$0xf]
        %v2494 = vld [vmem:[%s6] sm:$0x1]
        %v2496 = vperm.slane %v2494, 0
        %v2514 = vunpack.c.l.b16 %v2478
        %v2515 = vunpack.c.l.b16 %v2479
        %v2516 = vunpack.c.l.b16 %v2480
        %v2517 = vunpack.c.l.b16 %v2481
        %v2518 = vunpack.c.l.b16 %v2482
        %v2519 = vunpack.c.l.b16 %v2483
        %v2520 = vunpack.c.l.b16 %v2484
        %v2521 = vunpack.c.l.b16 %v2485
        %v2522 = vunpack.c.l.b16 %v2486
        %v2523 = vunpack.c.l.b16 %v2487
        %v2524 = vunpack.c.l.b16 %v2488
        %v2525 = vunpack.c.l.b16 %v2489
        %v2526 = vunpack.c.l.b16 %v2490
        %v2527 = vunpack.c.l.b16 %v2491
        %v2528 = vunpack.c.l.b16 %v2492
        %v2529 = vunpack.c.l.b16 %v2493
        %v2530 = vpack.c.b16 %v2515, %v2514
        %v2531 = vpack.c.b16 %v2517, %v2516
        %v2532 = vpack.c.b16 %v2519, %v2518
        %v2533 = vpack.c.b16 %v2521, %v2520
        %v2534 = vpack.c.b16 %v2523, %v2522
        %v2535 = vpack.c.b16 %v2525, %v2524
        %v2536 = vpack.c.b16 %v2527, %v2526
        %v2537 = vpack.c.b16 %v2529, %v2528
        %2546 = vmatpush.bf16.msra.mxu0 %v2537
        %2547 = vmatpush.bf16.msra.mxu0 %v2536
        %2548 = vmatpush.bf16.msra.mxu0 %v2535
        %2549 = vmatpush.bf16.msra.mxu0 %v2534
        %2550 = vmatpush.bf16.msra.mxu0 %v2533
        %2551 = vmatpush.bf16.msra.mxu0 %v2532
        %2552 = vmatpush.bf16.msra.mxu0 %v2531
        %2553 = vmatpush.bf16.msra.mxu0 %v2530
        %2554 = vmatmul.bf16.gmra.mxu0 %v2470
        %v2555 = vpop.f32.mrf.mxu0
        %v2556 = vadd.f32 %v2496, %v2555
        %v2557 = vpop.f32.mrf.mxu0
        %v2558 = vadd.f32 %v2496, %v2557
        %2559 = vmatmul.bf16.gmra.mxu0 %v2471
        %v2560 = vpop.f32.mrf.mxu0
        %v2561 = vadd.f32 %v2496, %v2560
        %v2562 = vpop.f32.mrf.mxu0
        %v2563 = vadd.f32 %v2496, %v2562
        %2564 = vmatmul.bf16.gmra.mxu0 %v2472
        %v2565 = vpop.f32.mrf.mxu0
        %v2566 = vadd.f32 %v2496, %v2565
        %v2567 = vpop.f32.mrf.mxu0
        %v2568 = vadd.f32 %v2496, %v2567
        %2569 = vmatmul.bf16.gmra.mxu0 %v2473
        %v2570 = vpop.f32.mrf.mxu0
        %v2571 = vadd.f32 %v2496, %v2570
        %v2572 = vpop.f32.mrf.mxu0
        %v2573 = vadd.f32 %v2496, %v2572
        %2574 = vmatmul.bf16.gmra.mxu0 %v2474
        %v2575 = vpop.f32.mrf.mxu0
        %v2576 = vadd.f32 %v2496, %v2575
        %v2577 = vpop.f32.mrf.mxu0
        %v2578 = vadd.f32 %v2496, %v2577
        %2579 = vmatmul.bf16.gmra.mxu0 %v2475
        %v2580 = vpop.f32.mrf.mxu0
        %v2581 = vadd.f32 %v2496, %v2580
        %v2582 = vpop.f32.mrf.mxu0
        %v2583 = vadd.f32 %v2496, %v2582
        %2584 = vmatmul.bf16.gmra.mxu0 %v2476
        %v2585 = vpop.f32.mrf.mxu0
        %v2586 = vadd.f32 %v2496, %v2585
        %v2587 = vpop.f32.mrf.mxu0
        %v2588 = vadd.f32 %v2496, %v2587
        %2589 = vmatmul.bf16.gmra.mxu0 %v2477
        %v2590 = vpop.f32.mrf.mxu0
        %v2591 = vadd.f32 %v2496, %v2590
        %v2592 = vpop.f32.mrf.mxu0
        %v2593 = vadd.f32 %v2496, %v2592
        %2594 = vdwg.mxu0
        %2595 = vst [vmem:[%s348] sm:$0xff] %v2556
        %2596 = vst [vmem:[%s348 + $0x8] sm:$0xff] %v2558
        %2597 = vst [vmem:[%s348 + $0x10] sm:$0xff] %v2561
        %2598 = vst [vmem:[%s348 + $0x18] sm:$0xff] %v2563
        %2599 = vst [vmem:[%s348 + $0x20] sm:$0xff] %v2566
        %2600 = vst [vmem:[%s348 + $0x28] sm:$0xff] %v2568
        %2601 = vst [vmem:[%s348 + $0x30] sm:$0xff] %v2571
        %2602 = vst [vmem:[%s348 + $0x38] sm:$0xff] %v2573
        %2603 = vst [vmem:[%s348 + $0x40] sm:$0xff] %v2576
        %2604 = vst [vmem:[%s348 + $0x48] sm:$0xff] %v2578
        %2605 = vst [vmem:[%s348 + $0x50] sm:$0xff] %v2581
        %2606 = vst [vmem:[%s348 + $0x58] sm:$0xff] %v2583
        %2607 = vst [vmem:[%s348 + $0x60] sm:$0xff] %v2586
        %2608 = vst [vmem:[%s348 + $0x68] sm:$0xff] %v2588
        %2609 = vst [vmem:[%s348 + $0x70] sm:$0xff] %v2591
        %2610 = vst [vmem:[%s348 + $0x78] sm:$0xff] %v2593
        %s2611 = sand.u32 %s186, 1
        %s2612 = scalar_lea.sflag [#allocation4], %s2611
        %s2613 = sand.u32 %s186, 1
        %s2614 = smul.addr %s2613, 128
        %s2615 = scalar_lea.vmem [#allocation10], %s2614
        // Predicated region
        $region65: #{tpu_custom_call.1} parent=47 // pred_check
          %p2616 = pneg %p196
        $region66: #{tpu_custom_call.1} parent=47 // pred_check_branch
          %2618 = sbr.rel (%p2616) target = $region68
        $region67: #{tpu_custom_call.1} parent=47 // pred_region
          %s2619 = smul.u32 16, %s26
          %2621 = vsyncadd %s2612, 0
          %s2622 = smul.addr %s2619, 8
          %s2623 = scalar_lea.hbm %s7, %s2622
          %s2624 = sshll.u32 %s2615, 4
          %s2625 = int_to_ptr.vmem [resolvable:$true] %s2624
          %s2626 = sshll.u32 %s2623, 4
          %s2627 = int_to_ptr.hbm [resolvable:$true] %s2626
          %2632 = dma.vmem_to_hbm [thread:$0]  %s2625, 2048, %s2627, %s2612, 128, 128, 8
        $region68: #{tpu_custom_call.1} parent=47 // pred_fallthru
          _
      $region48: #{tpu_custom_call.1} parent=5 // pred_fallthru
        _
      %p2633 = scmp.le.s32.totalorder 2, %s21
      // Predicated region
      $region69: #{tpu_custom_call.1} parent=5 // pred_check
        %p2634 = pneg %p2633
      $region70: #{tpu_custom_call.1} parent=5 // pred_check_branch
        %2636 = sbr.rel (%p2634) target = $region72
      $region71: #{tpu_custom_call.1} parent=5 // pred_region
        %s2637 = ssub.s32 %s21, 2
        // Predicated region
        $region73: #{tpu_custom_call.1} parent=71 // pred_check
          %p2638 = pneg %p202
        $region74: #{tpu_custom_call.1} parent=71 // pred_check_branch
          %2640 = sbr.rel (%p2638) target = $region76
        $region75: #{tpu_custom_call.1} parent=71 // pred_region
          %s2641 = sand.u32 %s187, 1
          %s2642 = scalar_lea.sflag [#allocation4], %s2641
          %s2643 = sand.u32 %s187, 1
          %s2644 = smul.addr %s2643, 128
          %s2645 = scalar_lea.vmem [#allocation10], %s2644
          %2647 = dma.done %s2642, 2048
        $region76: #{tpu_custom_call.1} parent=71 // pred_fallthru
          _
      $region72: #{tpu_custom_call.1} parent=5 // pred_fallthru
        _
    $region6: #{tpu_custom_call.1} parent=1 // loop_footer
      %s25 = sadd.s32 1, %s21
    $region7: #{tpu_custom_call.1} parent=1 // loop_footer_branch
      %20 = sbr.rel target = $region3
    $region8: #{tpu_custom_call.1} parent=1 // loop_exit
      _
    %2648 = vsyncpa [#allocation3], 1
    %s2649 = scalar_lea.sflag [#allocation3], 1
    %2650 = vsyncpa %s2649, 1
    %2651 = vsyncpa [#allocation6], 1
    %2652 = vsyncpa [#allocation9], 1
    %2653 = vsyncpa [#allocation4], 1
    %s2654 = scalar_lea.sflag [#allocation4], 1
    %2655 = vsyncpa %s2654, 1

</llo_original>
